<compile_context>
chip_gen: v5e
topology: v5e:2x2
jax: 0.10.0
libtpu: 0.0.40
codegen_flags: <defaults>
</compile_context>

<pallas_src>
import functools

import jax
import jax.numpy as jnp
from jax import lax
from jax.experimental import pallas as pl
from jax.experimental.pallas import tpu as pltpu


def refine_kernel(p_ref, x_ref, o_ref, *, score_dtype, k_chunk):
    """One grid step = SB batch elements.

    p_ref : SMEM (4,)        -> [w1, b1, w2, b2]  (the two 1x1 convs)
    x_ref : VMEM (SB, 1, L)  -> x flattened, L in lanes
    o_ref : VMEM (SB, 1, L)
    """
    w1, b1 = p_ref[0], p_ref[1]
    w2, b2 = p_ref[2], p_ref[3]
    sb, _, L = x_ref.shape

    def one_element(s, carry):
        # Lane-dense row of this batch element; column layout derived in-kernel (one small
        # XLU relayout) instead of a second, lane-padded HBM input.
        x_row = x_ref[s]                               # (1, L) f32
        x_col = jnp.transpose(x_row)                   # (L, 1) f32

        # The 1x1 convs are scalar affine maps (in_dim == 1).
        a_row = (w1 * x_row + b1).astype(score_dtype)  # "query" values, lane axis = n
        c_col = (w2 * x_col + b2).astype(score_dtype)  # "key"   values, sublane axis = k
        x_val = x_col.astype(score_dtype)

        # Analytic row max of dep[n, k] = a_n * c_k over k: a_n*cmax if a_n >= 0 else a_n*cmin.
        # This equals the true row max, so softmax stability is preserved with no LxL max pass.
        cmax = jnp.max(c_col)
        cmin = jnp.min(c_col)
        csel = jnp.where(a_row >= 0, cmax, cmin)       # (1, L); a_n * csel_n == rowmax_n

        # Streamed softmax + x-weighted sum over the key (sublane) axis: only one k-chunk of
        # exp() scores is live at a time; accumulations stay in f32 even on the bf16 path.
        denom = jnp.zeros((1, L), jnp.float32)
        numer = jnp.zeros((1, L), jnp.float32)
        for k0 in range(0, L, k_chunk):                # static chunks
            c_blk = c_col[k0:k0 + k_chunk]             # (kc, 1)
            x_blk = x_val[k0:k0 + k_chunk]             # (kc, 1)
            # exp(dep - rowmax), computed in centered form a_n*(c_k - csel_n) <= 0 (EUP).
            e = jnp.exp(a_row * (c_blk - csel))        # (kc, L) score_dtype
            denom = denom + jnp.sum(e, axis=0, keepdims=True, dtype=jnp.float32)
            numer = numer + jnp.sum(e * x_blk, axis=0, keepdims=True, dtype=jnp.float32)

        # out_n = sum_k P[n,k]*x_k + x_n (residual).  EUP approx reciprocal + one Newton step
        # keeps f32 accuracy without a full-precision VPU divide.  Lane-dense row store.
        r = pl.reciprocal(denom, approx=True)
        r = r * (2.0 - denom * r)
        o_ref[s] = (numer * r + x_row).astype(o_ref.dtype)
        return carry

    lax.fori_loop(0, sb, one_element, 0, unroll=True)


def _score_dtype_for_device():
    """bf16 VPU/EUP exists on v6e / v7x; v5e and older keep the score path in f32."""
    try:
        kind = jax.devices()[0].device_kind.lower()
    except Exception:
        return jnp.float32
    if ("v6" in kind) or ("v7" in kind) or ("7x" in kind):
        return jnp.bfloat16
    return jnp.float32


def refine_forward(x, w1, b1, w2, b2, *, sub_batch=8, score_dtype=None):
    """x: (B, node_num, frame) float32 -> (B, 1, node_num, frame) float32."""
    B, node_num, frame = x.shape
    L = node_num * frame
    if score_dtype is None:
        score_dtype = _score_dtype_for_device()

    x = x.astype(jnp.float32)
    x_row = x.reshape(B, 1, L)                         # L in lanes

    # Sub-batch SB elements per grid step (amortize per-step overhead, dense output slab),
    # but keep the grid >= 2 steps whenever B >= 2 so v7x can use both TensorCores.
    SB = 1 if B < 2 else max(1, min(sub_batch, B // 2))
    Bp = pl.cdiv(B, SB) * SB
    if Bp != B:
        # Zero-padded rows are fully computed (well-defined, no NaN) and sliced off below.
        x_row = jnp.concatenate([x_row, jnp.zeros((Bp - B, 1, L), jnp.float32)], axis=0)

    params = jnp.stack([jnp.asarray(w1, jnp.float32).reshape(()),
                        jnp.asarray(b1, jnp.float32).reshape(()),
                        jnp.asarray(w2, jnp.float32).reshape(()),
                        jnp.asarray(b2, jnp.float32).reshape(())])       # (4,) -> SMEM

    kernel = functools.partial(refine_kernel, score_dtype=score_dtype,
                               k_chunk=min(64, L))
    out = pl.pallas_call(
        kernel,
        out_shape=jax.ShapeDtypeStruct((Bp, 1, L), jnp.float32),
        grid=(Bp // SB,),
        in_specs=[
            pl.BlockSpec(memory_space=pltpu.MemorySpace.SMEM),     # conv scalars
            pl.BlockSpec((SB, 1, L), lambda g: (g, 0, 0)),         # x, lane-dense rows
        ],
        out_specs=pl.BlockSpec((SB, 1, L), lambda g: (g, 0, 0)),
        compiler_params=pltpu.CompilerParams(dimension_semantics=("parallel",)),
    )(params, x_row)
    return out[:B].reshape(B, 1, node_num, frame)


# ----------------------------- pure-JAX reference ----------------------------
def reference(x, conv1_w, conv1_b, conv2_w, conv2_b):
    B, node_num, frame = x.shape
    L = node_num * frame
    x4 = x.reshape(B, 1, node_num, frame)
    a = conv1_w.reshape(()) * x4 + conv1_b.reshape(())      # 1x1 conv, 1 channel
    c = conv2_w.reshape(()) * x4 + conv2_b.reshape(())
    dep_1 = a.reshape(B, 1, L).transpose(0, 2, 1)            # (B, L, 1)
    dep_2 = c.reshape(B, 1, L)                               # (B, 1, L)
    dep = jnp.matmul(dep_1, dep_2)                           # (B, L, L)
    impli = jax.nn.softmax(dep, axis=-1)
    proj = x4.reshape(B, 1, L)
    out = jnp.matmul(proj, impli.transpose(0, 2, 1))         # (B, 1, L)
    return out.reshape(B, 1, node_num, frame) + x4


if __name__ == "__main__":
    key = jax.random.PRNGKey(0)
    kx, kw1, kb1, kw2, kb2 = jax.random.split(key, 5)

    # B=16, node_num=16, frame=8 -> L = 128 (one lane-width); SB=8 -> grid=(2,) parallel steps.
    B, node_num, frame = 16, 16, 8
    x = jax.random.normal(kx, (B, node_num, frame), dtype=jnp.float32)
    conv1_w = 0.25 * jax.random.normal(kw1, (1, 1, 1, 1), dtype=jnp.float32)
    conv1_b = 0.1 * jax.random.normal(kb1, (1,), dtype=jnp.float32)
    conv2_w = 0.25 * jax.random.normal(kw2, (1, 1, 1, 1), dtype=jnp.float32)
    conv2_b = 0.1 * jax.random.normal(kb2, (1,), dtype=jnp.float32)

    ref = reference(x, conv1_w, conv1_b, conv2_w, conv2_b)

    # 1) f32 score path (valid on every TPU generation): near-exact vs. the reference.
    out_f32 = refine_forward(x, conv1_w, conv1_b, conv2_w, conv2_b,
                             score_dtype=jnp.float32)
    out_f32 = jax.block_until_ready(out_f32)
    assert out_f32.shape == (B, 1, node_num, frame), out_f32.shape
    err_f32 = float(jnp.max(jnp.abs(out_f32 - ref)))
    assert err_f32 < 1e-3, f"f32 path: max abs error vs reference {err_f32}"

    # 2) Auto path: bf16 scores/exp with f32 accumulation on v6e/v7x, pure f32 elsewhere.
    #    bf16 rounding of the L-wide softmax logits costs ~2-3 bits, hence the looser bound.
    sd = _score_dtype_for_device()
    out_auto = refine_forward(x, conv1_w, conv1_b, conv2_w, conv2_b, score_dtype=sd)
    out_auto = jax.block_until_ready(out_auto)
    err_auto = float(jnp.max(jnp.abs(out_auto - ref)))
    tol_auto = 1e-3 if sd == jnp.float32 else 1e-1
    assert err_auto < tol_auto, f"auto ({sd}) path: max abs error vs reference {err_auto}"

    print("KERNEL_OK")
</pallas_src>

<mosaic_0001>
module attributes {stable_mosaic.version = 11 : i64} {
  func.func @refine_kernel(%arg0: i32, %arg1: memref<4xf32, #tpu.memory_space<smem>>, %arg2: memref<8x1x128xf32, #tpu.memory_space<vmem>>, %arg3: memref<8x1x128xf32, #tpu.memory_space<vmem>>) attributes {dimension_semantics = [#tpu.dimension_semantics<parallel>], iteration_bounds = array<i64: 2>, scalar_prefetch = 0 : i64, scratch_operands = 0 : i64, tpu.core_type = #tpu.core_type<tc>, window_params = [{transform_indices = @transform_0, window_bounds = array<i64: 4>}, {transform_indices = @transform_1, window_bounds = array<i64: 8, 1, 128>}, {transform_indices = @transform_2, window_bounds = array<i64: 8, 1, 128>}]} {
    %c0 = arith.constant 0 : index
    %0 = memref.load %arg1[%c0] : memref<4xf32, #tpu.memory_space<smem>>
    %c1 = arith.constant 1 : index
    %1 = memref.load %arg1[%c1] : memref<4xf32, #tpu.memory_space<smem>>
    %c2 = arith.constant 2 : index
    %2 = memref.load %arg1[%c2] : memref<4xf32, #tpu.memory_space<smem>>
    %c3 = arith.constant 3 : index
    %3 = memref.load %arg1[%c3] : memref<4xf32, #tpu.memory_space<smem>>
    %c0_i32 = arith.constant 0 : i32
    %4 = arith.index_cast %c0_i32 : i32 to index
    %c0_0 = arith.constant 0 : index
    %c0_1 = arith.constant 0 : index
    %5 = vector.load %arg2[%4, %c0_0, %c0_1] : memref<8x1x128xf32, #tpu.memory_space<vmem>>, vector<1x1x128xf32>
    %6 = vector.shape_cast %5 : vector<1x1x128xf32> to vector<1x128xf32>
    %7 = tpu.transpose %6, [1, 0] : vector<1x128xf32> -> vector<128x1xf32>
    %8 = vector.broadcast %0 : f32 to vector<1x128xf32>
    %9 = arith.mulf %8, %6 : vector<1x128xf32>
    %10 = vector.broadcast %1 : f32 to vector<1x128xf32>
    %11 = arith.addf %9, %10 : vector<1x128xf32>
    %12 = vector.broadcast %2 : f32 to vector<128x1xf32>
    %13 = arith.mulf %12, %7 : vector<128x1xf32>
    %14 = vector.broadcast %3 : f32 to vector<128x1xf32>
    %15 = arith.addf %13, %14 : vector<128x1xf32>
    %16 = vector.shape_cast %15 : vector<128x1xf32> to vector<1x128x1xf32>
    %cst = arith.constant dense<0xFF800000> : vector<1xf32>
    %17 = vector.multi_reduction <maximumf>, %16, %cst [1, 2] : vector<1x128x1xf32> to vector<1xf32>
    %18 = vector.shape_cast %17 : vector<1xf32> to vector<1x1x1xf32>
    %19 = vector.extract %18[0, 0, 0] : f32 from vector<1x1x1xf32>
    %20 = vector.shape_cast %15 : vector<128x1xf32> to vector<1x128x1xf32>
    %cst_2 = arith.constant dense<0x7F800000> : vector<1xf32>
    %21 = vector.multi_reduction <minimumf>, %20, %cst_2 [1, 2] : vector<1x128x1xf32> to vector<1xf32>
    %22 = vector.shape_cast %21 : vector<1xf32> to vector<1x1x1xf32>
    %23 = vector.extract %22[0, 0, 0] : f32 from vector<1x1x1xf32>
    %cst_3 = arith.constant 0.000000e+00 : f32
    %24 = vector.broadcast %cst_3 : f32 to vector<1x128xf32>
    %25 = arith.cmpf oge, %11, %24 : vector<1x128xf32>
    %26 = vector.broadcast %19 : f32 to vector<1x128xf32>
    %27 = vector.broadcast %23 : f32 to vector<1x128xf32>
    %28 = arith.select %25, %26, %27 : vector<1x128xi1>, vector<1x128xf32>
    %cst_4 = arith.constant 0.000000e+00 : f32
    %29 = vector.broadcast %cst_4 : f32 to vector<1x128xf32>
    %cst_5 = arith.constant 0.000000e+00 : f32
    %30 = vector.broadcast %cst_5 : f32 to vector<1x128xf32>
    %31 = vector.extract_strided_slice %15 {offsets = [0, 0], sizes = [64, 1], strides = [1, 1]} : vector<128x1xf32> to vector<64x1xf32>
    %32 = vector.extract_strided_slice %7 {offsets = [0, 0], sizes = [64, 1], strides = [1, 1]} : vector<128x1xf32> to vector<64x1xf32>
    %33 = vector.broadcast %31 : vector<64x1xf32> to vector<64x128xf32>
    %34 = vector.broadcast %28 : vector<1x128xf32> to vector<64x128xf32>
    %35 = arith.subf %33, %34 : vector<64x128xf32>
    %36 = vector.broadcast %11 : vector<1x128xf32> to vector<64x128xf32>
    %37 = arith.mulf %36, %35 : vector<64x128xf32>
    %38 = math.exp %37 : vector<64x128xf32>
    %cst_6 = arith.constant dense<0.000000e+00> : vector<128xf32>
    %39 = vector.multi_reduction <add>, %38, %cst_6 [0] : vector<64x128xf32> to vector<128xf32>
    %40 = vector.shape_cast %39 : vector<128xf32> to vector<1x128xf32>
    %41 = arith.addf %29, %40 : vector<1x128xf32>
    %42 = vector.broadcast %32 : vector<64x1xf32> to vector<64x128xf32>
    %43 = arith.mulf %38, %42 : vector<64x128xf32>
    %cst_7 = arith.constant dense<0.000000e+00> : vector<128xf32>
    %44 = vector.multi_reduction <add>, %43, %cst_7 [0] : vector<64x128xf32> to vector<128xf32>
    %45 = vector.shape_cast %44 : vector<128xf32> to vector<1x128xf32>
    %46 = arith.addf %30, %45 : vector<1x128xf32>
    %47 = vector.extract_strided_slice %15 {offsets = [64, 0], sizes = [64, 1], strides = [1, 1]} : vector<128x1xf32> to vector<64x1xf32>
    %48 = vector.extract_strided_slice %7 {offsets = [64, 0], sizes = [64, 1], strides = [1, 1]} : vector<128x1xf32> to vector<64x1xf32>
    %49 = vector.broadcast %47 : vector<64x1xf32> to vector<64x128xf32>
    %50 = vector.broadcast %28 : vector<1x128xf32> to vector<64x128xf32>
    %51 = arith.subf %49, %50 : vector<64x128xf32>
    %52 = vector.broadcast %11 : vector<1x128xf32> to vector<64x128xf32>
    %53 = arith.mulf %52, %51 : vector<64x128xf32>
    %54 = math.exp %53 : vector<64x128xf32>
    %cst_8 = arith.constant dense<0.000000e+00> : vector<128xf32>
    %55 = vector.multi_reduction <add>, %54, %cst_8 [0] : vector<64x128xf32> to vector<128xf32>
    %56 = vector.shape_cast %55 : vector<128xf32> to vector<1x128xf32>
    %57 = arith.addf %41, %56 : vector<1x128xf32>
    %58 = vector.broadcast %48 : vector<64x1xf32> to vector<64x128xf32>
    %59 = arith.mulf %54, %58 : vector<64x128xf32>
    %cst_9 = arith.constant dense<0.000000e+00> : vector<128xf32>
    %60 = vector.multi_reduction <add>, %59, %cst_9 [0] : vector<64x128xf32> to vector<128xf32>
    %61 = vector.shape_cast %60 : vector<128xf32> to vector<1x128xf32>
    %62 = arith.addf %46, %61 : vector<1x128xf32>
    %63 = tpu.reciprocal %57 {approx = true} : vector<1x128xf32> -> vector<1x128xf32>
    %64 = arith.mulf %57, %63 : vector<1x128xf32>
    %cst_10 = arith.constant 2.000000e+00 : f32
    %65 = vector.broadcast %cst_10 : f32 to vector<1x128xf32>
    %66 = arith.subf %65, %64 : vector<1x128xf32>
    %67 = arith.mulf %63, %66 : vector<1x128xf32>
    %68 = arith.mulf %62, %67 : vector<1x128xf32>
    %69 = arith.addf %68, %6 : vector<1x128xf32>
    %70 = arith.index_cast %c0_i32 : i32 to index
    %c0_11 = arith.constant 0 : index
    %c0_12 = arith.constant 0 : index
    %71 = vector.load %arg3[%70, %c0_11, %c0_12] : memref<8x1x128xf32, #tpu.memory_space<vmem>>, vector<1x1x128xf32>
    %72 = vector.shape_cast %71 : vector<1x1x128xf32> to vector<1x128xf32>
    %73 = vector.shape_cast %69 : vector<1x128xf32> to vector<1x1x128xf32>
    tpu.vector_store %arg3[%70, %c0_11, %c0_12], %73 {strides = array<i32>} : memref<8x1x128xf32, #tpu.memory_space<vmem>>, vector<1x1x128xf32>,
    %c1_i32 = arith.constant 1 : i32
    %74 = arith.index_cast %c1_i32 : i32 to index
    %c0_13 = arith.constant 0 : index
    %c0_14 = arith.constant 0 : index
    %75 = vector.load %arg2[%74, %c0_13, %c0_14] : memref<8x1x128xf32, #tpu.memory_space<vmem>>, vector<1x1x128xf32>
    %76 = vector.shape_cast %75 : vector<1x1x128xf32> to vector<1x128xf32>
    %77 = tpu.transpose %76, [1, 0] : vector<1x128xf32> -> vector<128x1xf32>
    %78 = vector.broadcast %0 : f32 to vector<1x128xf32>
    %79 = arith.mulf %78, %76 : vector<1x128xf32>
    %80 = vector.broadcast %1 : f32 to vector<1x128xf32>
    %81 = arith.addf %79, %80 : vector<1x128xf32>
    %82 = vector.broadcast %2 : f32 to vector<128x1xf32>
    %83 = arith.mulf %82, %77 : vector<128x1xf32>
    %84 = vector.broadcast %3 : f32 to vector<128x1xf32>
    %85 = arith.addf %83, %84 : vector<128x1xf32>
    %86 = vector.shape_cast %85 : vector<128x1xf32> to vector<1x128x1xf32>
    %cst_15 = arith.constant dense<0xFF800000> : vector<1xf32>
    %87 = vector.multi_reduction <maximumf>, %86, %cst_15 [1, 2] : vector<1x128x1xf32> to vector<1xf32>
    %88 = vector.shape_cast %87 : vector<1xf32> to vector<1x1x1xf32>
    %89 = vector.extract %88[0, 0, 0] : f32 from vector<1x1x1xf32>
    %90 = vector.shape_cast %85 : vector<128x1xf32> to vector<1x128x1xf32>
    %cst_16 = arith.constant dense<0x7F800000> : vector<1xf32>
    %91 = vector.multi_reduction <minimumf>, %90, %cst_16 [1, 2] : vector<1x128x1xf32> to vector<1xf32>
    %92 = vector.shape_cast %91 : vector<1xf32> to vector<1x1x1xf32>
    %93 = vector.extract %92[0, 0, 0] : f32 from vector<1x1x1xf32>
    %cst_17 = arith.constant 0.000000e+00 : f32
    %94 = vector.broadcast %cst_17 : f32 to vector<1x128xf32>
    %95 = arith.cmpf oge, %81, %94 : vector<1x128xf32>
    %96 = vector.broadcast %89 : f32 to vector<1x128xf32>
    %97 = vector.broadcast %93 : f32 to vector<1x128xf32>
    %98 = arith.select %95, %96, %97 : vector<1x128xi1>, vector<1x128xf32>
    %cst_18 = arith.constant 0.000000e+00 : f32
    %99 = vector.broadcast %cst_18 : f32 to vector<1x128xf32>
    %cst_19 = arith.constant 0.000000e+00 : f32
    %100 = vector.broadcast %cst_19 : f32 to vector<1x128xf32>
    %101 = vector.extract_strided_slice %85 {offsets = [0, 0], sizes = [64, 1], strides = [1, 1]} : vector<128x1xf32> to vector<64x1xf32>
    %102 = vector.extract_strided_slice %77 {offsets = [0, 0], sizes = [64, 1], strides = [1, 1]} : vector<128x1xf32> to vector<64x1xf32>
    %103 = vector.broadcast %101 : vector<64x1xf32> to vector<64x128xf32>
    %104 = vector.broadcast %98 : vector<1x128xf32> to vector<64x128xf32>
    %105 = arith.subf %103, %104 : vector<64x128xf32>
    %106 = vector.broadcast %81 : vector<1x128xf32> to vector<64x128xf32>
    %107 = arith.mulf %106, %105 : vector<64x128xf32>
    %108 = math.exp %107 : vector<64x128xf32>
    %cst_20 = arith.constant dense<0.000000e+00> : vector<128xf32>
    %109 = vector.multi_reduction <add>, %108, %cst_20 [0] : vector<64x128xf32> to vector<128xf32>
    %110 = vector.shape_cast %109 : vector<128xf32> to vector<1x128xf32>
    %111 = arith.addf %99, %110 : vector<1x128xf32>
    %112 = vector.broadcast %102 : vector<64x1xf32> to vector<64x128xf32>
    %113 = arith.mulf %108, %112 : vector<64x128xf32>
    %cst_21 = arith.constant dense<0.000000e+00> : vector<128xf32>
    %114 = vector.multi_reduction <add>, %113, %cst_21 [0] : vector<64x128xf32> to vector<128xf32>
    %115 = vector.shape_cast %114 : vector<128xf32> to vector<1x128xf32>
    %116 = arith.addf %100, %115 : vector<1x128xf32>
    %117 = vector.extract_strided_slice %85 {offsets = [64, 0], sizes = [64, 1], strides = [1, 1]} : vector<128x1xf32> to vector<64x1xf32>
    %118 = vector.extract_strided_slice %77 {offsets = [64, 0], sizes = [64, 1], strides = [1, 1]} : vector<128x1xf32> to vector<64x1xf32>
    %119 = vector.broadcast %117 : vector<64x1xf32> to vector<64x128xf32>
    %120 = vector.broadcast %98 : vector<1x128xf32> to vector<64x128xf32>
    %121 = arith.subf %119, %120 : vector<64x128xf32>
    %122 = vector.broadcast %81 : vector<1x128xf32> to vector<64x128xf32>
    %123 = arith.mulf %122, %121 : vector<64x128xf32>
    %124 = math.exp %123 : vector<64x128xf32>
    %cst_22 = arith.constant dense<0.000000e+00> : vector<128xf32>
    %125 = vector.multi_reduction <add>, %124, %cst_22 [0] : vector<64x128xf32> to vector<128xf32>
    %126 = vector.shape_cast %125 : vector<128xf32> to vector<1x128xf32>
    %127 = arith.addf %111, %126 : vector<1x128xf32>
    %128 = vector.broadcast %118 : vector<64x1xf32> to vector<64x128xf32>
    %129 = arith.mulf %124, %128 : vector<64x128xf32>
    %cst_23 = arith.constant dense<0.000000e+00> : vector<128xf32>
    %130 = vector.multi_reduction <add>, %129, %cst_23 [0] : vector<64x128xf32> to vector<128xf32>
    %131 = vector.shape_cast %130 : vector<128xf32> to vector<1x128xf32>
    %132 = arith.addf %116, %131 : vector<1x128xf32>
    %133 = tpu.reciprocal %127 {approx = true} : vector<1x128xf32> -> vector<1x128xf32>
    %134 = arith.mulf %127, %133 : vector<1x128xf32>
    %cst_24 = arith.constant 2.000000e+00 : f32
    %135 = vector.broadcast %cst_24 : f32 to vector<1x128xf32>
    %136 = arith.subf %135, %134 : vector<1x128xf32>
    %137 = arith.mulf %133, %136 : vector<1x128xf32>
    %138 = arith.mulf %132, %137 : vector<1x128xf32>
    %139 = arith.addf %138, %76 : vector<1x128xf32>
    %140 = arith.index_cast %c1_i32 : i32 to index
    %c0_25 = arith.constant 0 : index
    %c0_26 = arith.constant 0 : index
    %141 = vector.load %arg3[%140, %c0_25, %c0_26] : memref<8x1x128xf32, #tpu.memory_space<vmem>>, vector<1x1x128xf32>
    %142 = vector.shape_cast %141 : vector<1x1x128xf32> to vector<1x128xf32>
    %143 = vector.shape_cast %139 : vector<1x128xf32> to vector<1x1x128xf32>
    tpu.vector_store %arg3[%140, %c0_25, %c0_26], %143 {strides = array<i32>} : memref<8x1x128xf32, #tpu.memory_space<vmem>>, vector<1x1x128xf32>,
    %c2_i32 = arith.constant 2 : i32
    %144 = arith.index_cast %c2_i32 : i32 to index
    %c0_27 = arith.constant 0 : index
    %c0_28 = arith.constant 0 : index
    %145 = vector.load %arg2[%144, %c0_27, %c0_28] : memref<8x1x128xf32, #tpu.memory_space<vmem>>, vector<1x1x128xf32>
    %146 = vector.shape_cast %145 : vector<1x1x128xf32> to vector<1x128xf32>
    %147 = tpu.transpose %146, [1, 0] : vector<1x128xf32> -> vector<128x1xf32>
    %148 = vector.broadcast %0 : f32 to vector<1x128xf32>
    %149 = arith.mulf %148, %146 : vector<1x128xf32>
    %150 = vector.broadcast %1 : f32 to vector<1x128xf32>
    %151 = arith.addf %149, %150 : vector<1x128xf32>
    %152 = vector.broadcast %2 : f32 to vector<128x1xf32>
    %153 = arith.mulf %152, %147 : vector<128x1xf32>
    %154 = vector.broadcast %3 : f32 to vector<128x1xf32>
    %155 = arith.addf %153, %154 : vector<128x1xf32>
    %156 = vector.shape_cast %155 : vector<128x1xf32> to vector<1x128x1xf32>
    %cst_29 = arith.constant dense<0xFF800000> : vector<1xf32>
    %157 = vector.multi_reduction <maximumf>, %156, %cst_29 [1, 2] : vector<1x128x1xf32> to vector<1xf32>
    %158 = vector.shape_cast %157 : vector<1xf32> to vector<1x1x1xf32>
    %159 = vector.extract %158[0, 0, 0] : f32 from vector<1x1x1xf32>
    %160 = vector.shape_cast %155 : vector<128x1xf32> to vector<1x128x1xf32>
    %cst_30 = arith.constant dense<0x7F800000> : vector<1xf32>
    %161 = vector.multi_reduction <minimumf>, %160, %cst_30 [1, 2] : vector<1x128x1xf32> to vector<1xf32>
    %162 = vector.shape_cast %161 : vector<1xf32> to vector<1x1x1xf32>
    %163 = vector.extract %162[0, 0, 0] : f32 from vector<1x1x1xf32>
    %cst_31 = arith.constant 0.000000e+00 : f32
    %164 = vector.broadcast %cst_31 : f32 to vector<1x128xf32>
    %165 = arith.cmpf oge, %151, %164 : vector<1x128xf32>
    %166 = vector.broadcast %159 : f32 to vector<1x128xf32>
    %167 = vector.broadcast %163 : f32 to vector<1x128xf32>
    %168 = arith.select %165, %166, %167 : vector<1x128xi1>, vector<1x128xf32>
    %cst_32 = arith.constant 0.000000e+00 : f32
    %169 = vector.broadcast %cst_32 : f32 to vector<1x128xf32>
    %cst_33 = arith.constant 0.000000e+00 : f32
    %170 = vector.broadcast %cst_33 : f32 to vector<1x128xf32>
    %171 = vector.extract_strided_slice %155 {offsets = [0, 0], sizes = [64, 1], strides = [1, 1]} : vector<128x1xf32> to vector<64x1xf32>
    %172 = vector.extract_strided_slice %147 {offsets = [0, 0], sizes = [64, 1], strides = [1, 1]} : vector<128x1xf32> to vector<64x1xf32>
    %173 = vector.broadcast %171 : vector<64x1xf32> to vector<64x128xf32>
    %174 = vector.broadcast %168 : vector<1x128xf32> to vector<64x128xf32>
    %175 = arith.subf %173, %174 : vector<64x128xf32>
    %176 = vector.broadcast %151 : vector<1x128xf32> to vector<64x128xf32>
    %177 = arith.mulf %176, %175 : vector<64x128xf32>
    %178 = math.exp %177 : vector<64x128xf32>
    %cst_34 = arith.constant dense<0.000000e+00> : vector<128xf32>
    %179 = vector.multi_reduction <add>, %178, %cst_34 [0] : vector<64x128xf32> to vector<128xf32>
    %180 = vector.shape_cast %179 : vector<128xf32> to vector<1x128xf32>
    %181 = arith.addf %169, %180 : vector<1x128xf32>
    %182 = vector.broadcast %172 : vector<64x1xf32> to vector<64x128xf32>
    %183 = arith.mulf %178, %182 : vector<64x128xf32>
    %cst_35 = arith.constant dense<0.000000e+00> : vector<128xf32>
    %184 = vector.multi_reduction <add>, %183, %cst_35 [0] : vector<64x128xf32> to vector<128xf32>
    %185 = vector.shape_cast %184 : vector<128xf32> to vector<1x128xf32>
    %186 = arith.addf %170, %185 : vector<1x128xf32>
    %187 = vector.extract_strided_slice %155 {offsets = [64, 0], sizes = [64, 1], strides = [1, 1]} : vector<128x1xf32> to vector<64x1xf32>
    %188 = vector.extract_strided_slice %147 {offsets = [64, 0], sizes = [64, 1], strides = [1, 1]} : vector<128x1xf32> to vector<64x1xf32>
    %189 = vector.broadcast %187 : vector<64x1xf32> to vector<64x128xf32>
    %190 = vector.broadcast %168 : vector<1x128xf32> to vector<64x128xf32>
    %191 = arith.subf %189, %190 : vector<64x128xf32>
    %192 = vector.broadcast %151 : vector<1x128xf32> to vector<64x128xf32>
    %193 = arith.mulf %192, %191 : vector<64x128xf32>
    %194 = math.exp %193 : vector<64x128xf32>
    %cst_36 = arith.constant dense<0.000000e+00> : vector<128xf32>
    %195 = vector.multi_reduction <add>, %194, %cst_36 [0] : vector<64x128xf32> to vector<128xf32>
    %196 = vector.shape_cast %195 : vector<128xf32> to vector<1x128xf32>
    %197 = arith.addf %181, %196 : vector<1x128xf32>
    %198 = vector.broadcast %188 : vector<64x1xf32> to vector<64x128xf32>
    %199 = arith.mulf %194, %198 : vector<64x128xf32>
    %cst_37 = arith.constant dense<0.000000e+00> : vector<128xf32>
    %200 = vector.multi_reduction <add>, %199, %cst_37 [0] : vector<64x128xf32> to vector<128xf32>
    %201 = vector.shape_cast %200 : vector<128xf32> to vector<1x128xf32>
    %202 = arith.addf %186, %201 : vector<1x128xf32>
    %203 = tpu.reciprocal %197 {approx = true} : vector<1x128xf32> -> vector<1x128xf32>
    %204 = arith.mulf %197, %203 : vector<1x128xf32>
    %cst_38 = arith.constant 2.000000e+00 : f32
    %205 = vector.broadcast %cst_38 : f32 to vector<1x128xf32>
    %206 = arith.subf %205, %204 : vector<1x128xf32>
    %207 = arith.mulf %203, %206 : vector<1x128xf32>
    %208 = arith.mulf %202, %207 : vector<1x128xf32>
    %209 = arith.addf %208, %146 : vector<1x128xf32>
    %210 = arith.index_cast %c2_i32 : i32 to index
    %c0_39 = arith.constant 0 : index
    %c0_40 = arith.constant 0 : index
    %211 = vector.load %arg3[%210, %c0_39, %c0_40] : memref<8x1x128xf32, #tpu.memory_space<vmem>>, vector<1x1x128xf32>
    %212 = vector.shape_cast %211 : vector<1x1x128xf32> to vector<1x128xf32>
    %213 = vector.shape_cast %209 : vector<1x128xf32> to vector<1x1x128xf32>
    tpu.vector_store %arg3[%210, %c0_39, %c0_40], %213 {strides = array<i32>} : memref<8x1x128xf32, #tpu.memory_space<vmem>>, vector<1x1x128xf32>,
    %c3_i32 = arith.constant 3 : i32
    %214 = arith.index_cast %c3_i32 : i32 to index
    %c0_41 = arith.constant 0 : index
    %c0_42 = arith.constant 0 : index
    %215 = vector.load %arg2[%214, %c0_41, %c0_42] : memref<8x1x128xf32, #tpu.memory_space<vmem>>, vector<1x1x128xf32>
    %216 = vector.shape_cast %215 : vector<1x1x128xf32> to vector<1x128xf32>
    %217 = tpu.transpose %216, [1, 0] : vector<1x128xf32> -> vector<128x1xf32>
    %218 = vector.broadcast %0 : f32 to vector<1x128xf32>
    %219 = arith.mulf %218, %216 : vector<1x128xf32>
    %220 = vector.broadcast %1 : f32 to vector<1x128xf32>
    %221 = arith.addf %219, %220 : vector<1x128xf32>
    %222 = vector.broadcast %2 : f32 to vector<128x1xf32>
    %223 = arith.mulf %222, %217 : vector<128x1xf32>
    %224 = vector.broadcast %3 : f32 to vector<128x1xf32>
    %225 = arith.addf %223, %224 : vector<128x1xf32>
    %226 = vector.shape_cast %225 : vector<128x1xf32> to vector<1x128x1xf32>
    %cst_43 = arith.constant dense<0xFF800000> : vector<1xf32>
    %227 = vector.multi_reduction <maximumf>, %226, %cst_43 [1, 2] : vector<1x128x1xf32> to vector<1xf32>
    %228 = vector.shape_cast %227 : vector<1xf32> to vector<1x1x1xf32>
    %229 = vector.extract %228[0, 0, 0] : f32 from vector<1x1x1xf32>
    %230 = vector.shape_cast %225 : vector<128x1xf32> to vector<1x128x1xf32>
    %cst_44 = arith.constant dense<0x7F800000> : vector<1xf32>
    %231 = vector.multi_reduction <minimumf>, %230, %cst_44 [1, 2] : vector<1x128x1xf32> to vector<1xf32>
    %232 = vector.shape_cast %231 : vector<1xf32> to vector<1x1x1xf32>
    %233 = vector.extract %232[0, 0, 0] : f32 from vector<1x1x1xf32>
    %cst_45 = arith.constant 0.000000e+00 : f32
    %234 = vector.broadcast %cst_45 : f32 to vector<1x128xf32>
    %235 = arith.cmpf oge, %221, %234 : vector<1x128xf32>
    %236 = vector.broadcast %229 : f32 to vector<1x128xf32>
    %237 = vector.broadcast %233 : f32 to vector<1x128xf32>
    %238 = arith.select %235, %236, %237 : vector<1x128xi1>, vector<1x128xf32>
    %cst_46 = arith.constant 0.000000e+00 : f32
    %239 = vector.broadcast %cst_46 : f32 to vector<1x128xf32>
    %cst_47 = arith.constant 0.000000e+00 : f32
    %240 = vector.broadcast %cst_47 : f32 to vector<1x128xf32>
    %241 = vector.extract_strided_slice %225 {offsets = [0, 0], sizes = [64, 1], strides = [1, 1]} : vector<128x1xf32> to vector<64x1xf32>
    %242 = vector.extract_strided_slice %217 {offsets = [0, 0], sizes = [64, 1], strides = [1, 1]} : vector<128x1xf32> to vector<64x1xf32>
    %243 = vector.broadcast %241 : vector<64x1xf32> to vector<64x128xf32>
    %244 = vector.broadcast %238 : vector<1x128xf32> to vector<64x128xf32>
    %245 = arith.subf %243, %244 : vector<64x128xf32>
    %246 = vector.broadcast %221 : vector<1x128xf32> to vector<64x128xf32>
    %247 = arith.mulf %246, %245 : vector<64x128xf32>
    %248 = math.exp %247 : vector<64x128xf32>
    %cst_48 = arith.constant dense<0.000000e+00> : vector<128xf32>
    %249 = vector.multi_reduction <add>, %248, %cst_48 [0] : vector<64x128xf32> to vector<128xf32>
    %250 = vector.shape_cast %249 : vector<128xf32> to vector<1x128xf32>
    %251 = arith.addf %239, %250 : vector<1x128xf32>
    %252 = vector.broadcast %242 : vector<64x1xf32> to vector<64x128xf32>
    %253 = arith.mulf %248, %252 : vector<64x128xf32>
    %cst_49 = arith.constant dense<0.000000e+00> : vector<128xf32>
    %254 = vector.multi_reduction <add>, %253, %cst_49 [0] : vector<64x128xf32> to vector<128xf32>
    %255 = vector.shape_cast %254 : vector<128xf32> to vector<1x128xf32>
    %256 = arith.addf %240, %255 : vector<1x128xf32>
    %257 = vector.extract_strided_slice %225 {offsets = [64, 0], sizes = [64, 1], strides = [1, 1]} : vector<128x1xf32> to vector<64x1xf32>
    %258 = vector.extract_strided_slice %217 {offsets = [64, 0], sizes = [64, 1], strides = [1, 1]} : vector<128x1xf32> to vector<64x1xf32>
    %259 = vector.broadcast %257 : vector<64x1xf32> to vector<64x128xf32>
    %260 = vector.broadcast %238 : vector<1x128xf32> to vector<64x128xf32>
    %261 = arith.subf %259, %260 : vector<64x128xf32>
    %262 = vector.broadcast %221 : vector<1x128xf32> to vector<64x128xf32>
    %263 = arith.mulf %262, %261 : vector<64x128xf32>
    %264 = math.exp %263 : vector<64x128xf32>
    %cst_50 = arith.constant dense<0.000000e+00> : vector<128xf32>
    %265 = vector.multi_reduction <add>, %264, %cst_50 [0] : vector<64x128xf32> to vector<128xf32>
    %266 = vector.shape_cast %265 : vector<128xf32> to vector<1x128xf32>
    %267 = arith.addf %251, %266 : vector<1x128xf32>
    %268 = vector.broadcast %258 : vector<64x1xf32> to vector<64x128xf32>
    %269 = arith.mulf %264, %268 : vector<64x128xf32>
    %cst_51 = arith.constant dense<0.000000e+00> : vector<128xf32>
    %270 = vector.multi_reduction <add>, %269, %cst_51 [0] : vector<64x128xf32> to vector<128xf32>
    %271 = vector.shape_cast %270 : vector<128xf32> to vector<1x128xf32>
    %272 = arith.addf %256, %271 : vector<1x128xf32>
    %273 = tpu.reciprocal %267 {approx = true} : vector<1x128xf32> -> vector<1x128xf32>
    %274 = arith.mulf %267, %273 : vector<1x128xf32>
    %cst_52 = arith.constant 2.000000e+00 : f32
    %275 = vector.broadcast %cst_52 : f32 to vector<1x128xf32>
    %276 = arith.subf %275, %274 : vector<1x128xf32>
    %277 = arith.mulf %273, %276 : vector<1x128xf32>
    %278 = arith.mulf %272, %277 : vector<1x128xf32>
    %279 = arith.addf %278, %216 : vector<1x128xf32>
    %280 = arith.index_cast %c3_i32 : i32 to index
    %c0_53 = arith.constant 0 : index
    %c0_54 = arith.constant 0 : index
    %281 = vector.load %arg3[%280, %c0_53, %c0_54] : memref<8x1x128xf32, #tpu.memory_space<vmem>>, vector<1x1x128xf32>
    %282 = vector.shape_cast %281 : vector<1x1x128xf32> to vector<1x128xf32>
    %283 = vector.shape_cast %279 : vector<1x128xf32> to vector<1x1x128xf32>
    tpu.vector_store %arg3[%280, %c0_53, %c0_54], %283 {strides = array<i32>} : memref<8x1x128xf32, #tpu.memory_space<vmem>>, vector<1x1x128xf32>,
    %c4_i32 = arith.constant 4 : i32
    %284 = arith.index_cast %c4_i32 : i32 to index
    %c0_55 = arith.constant 0 : index
    %c0_56 = arith.constant 0 : index
    %285 = vector.load %arg2[%284, %c0_55, %c0_56] : memref<8x1x128xf32, #tpu.memory_space<vmem>>, vector<1x1x128xf32>
    %286 = vector.shape_cast %285 : vector<1x1x128xf32> to vector<1x128xf32>
    %287 = tpu.transpose %286, [1, 0] : vector<1x128xf32> -> vector<128x1xf32>
    %288 = vector.broadcast %0 : f32 to vector<1x128xf32>
    %289 = arith.mulf %288, %286 : vector<1x128xf32>
    %290 = vector.broadcast %1 : f32 to vector<1x128xf32>
    %291 = arith.addf %289, %290 : vector<1x128xf32>
    %292 = vector.broadcast %2 : f32 to vector<128x1xf32>
    %293 = arith.mulf %292, %287 : vector<128x1xf32>
    %294 = vector.broadcast %3 : f32 to vector<128x1xf32>
    %295 = arith.addf %293, %294 : vector<128x1xf32>
    %296 = vector.shape_cast %295 : vector<128x1xf32> to vector<1x128x1xf32>
    %cst_57 = arith.constant dense<0xFF800000> : vector<1xf32>
    %297 = vector.multi_reduction <maximumf>, %296, %cst_57 [1, 2] : vector<1x128x1xf32> to vector<1xf32>
    %298 = vector.shape_cast %297 : vector<1xf32> to vector<1x1x1xf32>
    %299 = vector.extract %298[0, 0, 0] : f32 from vector<1x1x1xf32>
    %300 = vector.shape_cast %295 : vector<128x1xf32> to vector<1x128x1xf32>
    %cst_58 = arith.constant dense<0x7F800000> : vector<1xf32>
    %301 = vector.multi_reduction <minimumf>, %300, %cst_58 [1, 2] : vector<1x128x1xf32> to vector<1xf32>
    %302 = vector.shape_cast %301 : vector<1xf32> to vector<1x1x1xf32>
    %303 = vector.extract %302[0, 0, 0] : f32 from vector<1x1x1xf32>
    %cst_59 = arith.constant 0.000000e+00 : f32
    %304 = vector.broadcast %cst_59 : f32 to vector<1x128xf32>
    %305 = arith.cmpf oge, %291, %304 : vector<1x128xf32>
    %306 = vector.broadcast %299 : f32 to vector<1x128xf32>
    %307 = vector.broadcast %303 : f32 to vector<1x128xf32>
    %308 = arith.select %305, %306, %307 : vector<1x128xi1>, vector<1x128xf32>
    %cst_60 = arith.constant 0.000000e+00 : f32
    %309 = vector.broadcast %cst_60 : f32 to vector<1x128xf32>
    %cst_61 = arith.constant 0.000000e+00 : f32
    %310 = vector.broadcast %cst_61 : f32 to vector<1x128xf32>
    %311 = vector.extract_strided_slice %295 {offsets = [0, 0], sizes = [64, 1], strides = [1, 1]} : vector<128x1xf32> to vector<64x1xf32>
    %312 = vector.extract_strided_slice %287 {offsets = [0, 0], sizes = [64, 1], strides = [1, 1]} : vector<128x1xf32> to vector<64x1xf32>
    %313 = vector.broadcast %311 : vector<64x1xf32> to vector<64x128xf32>
    %314 = vector.broadcast %308 : vector<1x128xf32> to vector<64x128xf32>
    %315 = arith.subf %313, %314 : vector<64x128xf32>
    %316 = vector.broadcast %291 : vector<1x128xf32> to vector<64x128xf32>
    %317 = arith.mulf %316, %315 : vector<64x128xf32>
    %318 = math.exp %317 : vector<64x128xf32>
    %cst_62 = arith.constant dense<0.000000e+00> : vector<128xf32>
    %319 = vector.multi_reduction <add>, %318, %cst_62 [0] : vector<64x128xf32> to vector<128xf32>
    %320 = vector.shape_cast %319 : vector<128xf32> to vector<1x128xf32>
    %321 = arith.addf %309, %320 : vector<1x128xf32>
    %322 = vector.broadcast %312 : vector<64x1xf32> to vector<64x128xf32>
    %323 = arith.mulf %318, %322 : vector<64x128xf32>
    %cst_63 = arith.constant dense<0.000000e+00> : vector<128xf32>
    %324 = vector.multi_reduction <add>, %323, %cst_63 [0] : vector<64x128xf32> to vector<128xf32>
    %325 = vector.shape_cast %324 : vector<128xf32> to vector<1x128xf32>
    %326 = arith.addf %310, %325 : vector<1x128xf32>
    %327 = vector.extract_strided_slice %295 {offsets = [64, 0], sizes = [64, 1], strides = [1, 1]} : vector<128x1xf32> to vector<64x1xf32>
    %328 = vector.extract_strided_slice %287 {offsets = [64, 0], sizes = [64, 1], strides = [1, 1]} : vector<128x1xf32> to vector<64x1xf32>
    %329 = vector.broadcast %327 : vector<64x1xf32> to vector<64x128xf32>
    %330 = vector.broadcast %308 : vector<1x128xf32> to vector<64x128xf32>
    %331 = arith.subf %329, %330 : vector<64x128xf32>
    %332 = vector.broadcast %291 : vector<1x128xf32> to vector<64x128xf32>
    %333 = arith.mulf %332, %331 : vector<64x128xf32>
    %334 = math.exp %333 : vector<64x128xf32>
    %cst_64 = arith.constant dense<0.000000e+00> : vector<128xf32>
    %335 = vector.multi_reduction <add>, %334, %cst_64 [0] : vector<64x128xf32> to vector<128xf32>
    %336 = vector.shape_cast %335 : vector<128xf32> to vector<1x128xf32>
    %337 = arith.addf %321, %336 : vector<1x128xf32>
    %338 = vector.broadcast %328 : vector<64x1xf32> to vector<64x128xf32>
    %339 = arith.mulf %334, %338 : vector<64x128xf32>
    %cst_65 = arith.constant dense<0.000000e+00> : vector<128xf32>
    %340 = vector.multi_reduction <add>, %339, %cst_65 [0] : vector<64x128xf32> to vector<128xf32>
    %341 = vector.shape_cast %340 : vector<128xf32> to vector<1x128xf32>
    %342 = arith.addf %326, %341 : vector<1x128xf32>
    %343 = tpu.reciprocal %337 {approx = true} : vector<1x128xf32> -> vector<1x128xf32>
    %344 = arith.mulf %337, %343 : vector<1x128xf32>
    %cst_66 = arith.constant 2.000000e+00 : f32
    %345 = vector.broadcast %cst_66 : f32 to vector<1x128xf32>
    %346 = arith.subf %345, %344 : vector<1x128xf32>
    %347 = arith.mulf %343, %346 : vector<1x128xf32>
    %348 = arith.mulf %342, %347 : vector<1x128xf32>
    %349 = arith.addf %348, %286 : vector<1x128xf32>
    %350 = arith.index_cast %c4_i32 : i32 to index
    %c0_67 = arith.constant 0 : index
    %c0_68 = arith.constant 0 : index
    %351 = vector.load %arg3[%350, %c0_67, %c0_68] : memref<8x1x128xf32, #tpu.memory_space<vmem>>, vector<1x1x128xf32>
    %352 = vector.shape_cast %351 : vector<1x1x128xf32> to vector<1x128xf32>
    %353 = vector.shape_cast %349 : vector<1x128xf32> to vector<1x1x128xf32>
    tpu.vector_store %arg3[%350, %c0_67, %c0_68], %353 {strides = array<i32>} : memref<8x1x128xf32, #tpu.memory_space<vmem>>, vector<1x1x128xf32>,
    %c5_i32 = arith.constant 5 : i32
    %354 = arith.index_cast %c5_i32 : i32 to index
    %c0_69 = arith.constant 0 : index
    %c0_70 = arith.constant 0 : index
    %355 = vector.load %arg2[%354, %c0_69, %c0_70] : memref<8x1x128xf32, #tpu.memory_space<vmem>>, vector<1x1x128xf32>
    %356 = vector.shape_cast %355 : vector<1x1x128xf32> to vector<1x128xf32>
    %357 = tpu.transpose %356, [1, 0] : vector<1x128xf32> -> vector<128x1xf32>
    %358 = vector.broadcast %0 : f32 to vector<1x128xf32>
    %359 = arith.mulf %358, %356 : vector<1x128xf32>
    %360 = vector.broadcast %1 : f32 to vector<1x128xf32>
    %361 = arith.addf %359, %360 : vector<1x128xf32>
    %362 = vector.broadcast %2 : f32 to vector<128x1xf32>
    %363 = arith.mulf %362, %357 : vector<128x1xf32>
    %364 = vector.broadcast %3 : f32 to vector<128x1xf32>
    %365 = arith.addf %363, %364 : vector<128x1xf32>
    %366 = vector.shape_cast %365 : vector<128x1xf32> to vector<1x128x1xf32>
    %cst_71 = arith.constant dense<0xFF800000> : vector<1xf32>
    %367 = vector.multi_reduction <maximumf>, %366, %cst_71 [1, 2] : vector<1x128x1xf32> to vector<1xf32>
    %368 = vector.shape_cast %367 : vector<1xf32> to vector<1x1x1xf32>
    %369 = vector.extract %368[0, 0, 0] : f32 from vector<1x1x1xf32>
    %370 = vector.shape_cast %365 : vector<128x1xf32> to vector<1x128x1xf32>
    %cst_72 = arith.constant dense<0x7F800000> : vector<1xf32>
    %371 = vector.multi_reduction <minimumf>, %370, %cst_72 [1, 2] : vector<1x128x1xf32> to vector<1xf32>
    %372 = vector.shape_cast %371 : vector<1xf32> to vector<1x1x1xf32>
    %373 = vector.extract %372[0, 0, 0] : f32 from vector<1x1x1xf32>
    %cst_73 = arith.constant 0.000000e+00 : f32
    %374 = vector.broadcast %cst_73 : f32 to vector<1x128xf32>
    %375 = arith.cmpf oge, %361, %374 : vector<1x128xf32>
    %376 = vector.broadcast %369 : f32 to vector<1x128xf32>
    %377 = vector.broadcast %373 : f32 to vector<1x128xf32>
    %378 = arith.select %375, %376, %377 : vector<1x128xi1>, vector<1x128xf32>
    %cst_74 = arith.constant 0.000000e+00 : f32
    %379 = vector.broadcast %cst_74 : f32 to vector<1x128xf32>
    %cst_75 = arith.constant 0.000000e+00 : f32
    %380 = vector.broadcast %cst_75 : f32 to vector<1x128xf32>
    %381 = vector.extract_strided_slice %365 {offsets = [0, 0], sizes = [64, 1], strides = [1, 1]} : vector<128x1xf32> to vector<64x1xf32>
    %382 = vector.extract_strided_slice %357 {offsets = [0, 0], sizes = [64, 1], strides = [1, 1]} : vector<128x1xf32> to vector<64x1xf32>
    %383 = vector.broadcast %381 : vector<64x1xf32> to vector<64x128xf32>
    %384 = vector.broadcast %378 : vector<1x128xf32> to vector<64x128xf32>
    %385 = arith.subf %383, %384 : vector<64x128xf32>
    %386 = vector.broadcast %361 : vector<1x128xf32> to vector<64x128xf32>
    %387 = arith.mulf %386, %385 : vector<64x128xf32>
    %388 = math.exp %387 : vector<64x128xf32>
    %cst_76 = arith.constant dense<0.000000e+00> : vector<128xf32>
    %389 = vector.multi_reduction <add>, %388, %cst_76 [0] : vector<64x128xf32> to vector<128xf32>
    %390 = vector.shape_cast %389 : vector<128xf32> to vector<1x128xf32>
    %391 = arith.addf %379, %390 : vector<1x128xf32>
    %392 = vector.broadcast %382 : vector<64x1xf32> to vector<64x128xf32>
    %393 = arith.mulf %388, %392 : vector<64x128xf32>
    %cst_77 = arith.constant dense<0.000000e+00> : vector<128xf32>
    %394 = vector.multi_reduction <add>, %393, %cst_77 [0] : vector<64x128xf32> to vector<128xf32>
    %395 = vector.shape_cast %394 : vector<128xf32> to vector<1x128xf32>
    %396 = arith.addf %380, %395 : vector<1x128xf32>
    %397 = vector.extract_strided_slice %365 {offsets = [64, 0], sizes = [64, 1], strides = [1, 1]} : vector<128x1xf32> to vector<64x1xf32>
    %398 = vector.extract_strided_slice %357 {offsets = [64, 0], sizes = [64, 1], strides = [1, 1]} : vector<128x1xf32> to vector<64x1xf32>
    %399 = vector.broadcast %397 : vector<64x1xf32> to vector<64x128xf32>
    %400 = vector.broadcast %378 : vector<1x128xf32> to vector<64x128xf32>
    %401 = arith.subf %399, %400 : vector<64x128xf32>
    %402 = vector.broadcast %361 : vector<1x128xf32> to vector<64x128xf32>
    %403 = arith.mulf %402, %401 : vector<64x128xf32>
    %404 = math.exp %403 : vector<64x128xf32>
    %cst_78 = arith.constant dense<0.000000e+00> : vector<128xf32>
    %405 = vector.multi_reduction <add>, %404, %cst_78 [0] : vector<64x128xf32> to vector<128xf32>
    %406 = vector.shape_cast %405 : vector<128xf32> to vector<1x128xf32>
    %407 = arith.addf %391, %406 : vector<1x128xf32>
    %408 = vector.broadcast %398 : vector<64x1xf32> to vector<64x128xf32>
    %409 = arith.mulf %404, %408 : vector<64x128xf32>
    %cst_79 = arith.constant dense<0.000000e+00> : vector<128xf32>
    %410 = vector.multi_reduction <add>, %409, %cst_79 [0] : vector<64x128xf32> to vector<128xf32>
    %411 = vector.shape_cast %410 : vector<128xf32> to vector<1x128xf32>
    %412 = arith.addf %396, %411 : vector<1x128xf32>
    %413 = tpu.reciprocal %407 {approx = true} : vector<1x128xf32> -> vector<1x128xf32>
    %414 = arith.mulf %407, %413 : vector<1x128xf32>
    %cst_80 = arith.constant 2.000000e+00 : f32
    %415 = vector.broadcast %cst_80 : f32 to vector<1x128xf32>
    %416 = arith.subf %415, %414 : vector<1x128xf32>
    %417 = arith.mulf %413, %416 : vector<1x128xf32>
    %418 = arith.mulf %412, %417 : vector<1x128xf32>
    %419 = arith.addf %418, %356 : vector<1x128xf32>
    %420 = arith.index_cast %c5_i32 : i32 to index
    %c0_81 = arith.constant 0 : index
    %c0_82 = arith.constant 0 : index
    %421 = vector.load %arg3[%420, %c0_81, %c0_82] : memref<8x1x128xf32, #tpu.memory_space<vmem>>, vector<1x1x128xf32>
    %422 = vector.shape_cast %421 : vector<1x1x128xf32> to vector<1x128xf32>
    %423 = vector.shape_cast %419 : vector<1x128xf32> to vector<1x1x128xf32>
    tpu.vector_store %arg3[%420, %c0_81, %c0_82], %423 {strides = array<i32>} : memref<8x1x128xf32, #tpu.memory_space<vmem>>, vector<1x1x128xf32>,
    %c6_i32 = arith.constant 6 : i32
    %424 = arith.index_cast %c6_i32 : i32 to index
    %c0_83 = arith.constant 0 : index
    %c0_84 = arith.constant 0 : index
    %425 = vector.load %arg2[%424, %c0_83, %c0_84] : memref<8x1x128xf32, #tpu.memory_space<vmem>>, vector<1x1x128xf32>
    %426 = vector.shape_cast %425 : vector<1x1x128xf32> to vector<1x128xf32>
    %427 = tpu.transpose %426, [1, 0] : vector<1x128xf32> -> vector<128x1xf32>
    %428 = vector.broadcast %0 : f32 to vector<1x128xf32>
    %429 = arith.mulf %428, %426 : vector<1x128xf32>
    %430 = vector.broadcast %1 : f32 to vector<1x128xf32>
    %431 = arith.addf %429, %430 : vector<1x128xf32>
    %432 = vector.broadcast %2 : f32 to vector<128x1xf32>
    %433 = arith.mulf %432, %427 : vector<128x1xf32>
    %434 = vector.broadcast %3 : f32 to vector<128x1xf32>
    %435 = arith.addf %433, %434 : vector<128x1xf32>
    %436 = vector.shape_cast %435 : vector<128x1xf32> to vector<1x128x1xf32>
    %cst_85 = arith.constant dense<0xFF800000> : vector<1xf32>
    %437 = vector.multi_reduction <maximumf>, %436, %cst_85 [1, 2] : vector<1x128x1xf32> to vector<1xf32>
    %438 = vector.shape_cast %437 : vector<1xf32> to vector<1x1x1xf32>
    %439 = vector.extract %438[0, 0, 0] : f32 from vector<1x1x1xf32>
    %440 = vector.shape_cast %435 : vector<128x1xf32> to vector<1x128x1xf32>
    %cst_86 = arith.constant dense<0x7F800000> : vector<1xf32>
    %441 = vector.multi_reduction <minimumf>, %440, %cst_86 [1, 2] : vector<1x128x1xf32> to vector<1xf32>
    %442 = vector.shape_cast %441 : vector<1xf32> to vector<1x1x1xf32>
    %443 = vector.extract %442[0, 0, 0] : f32 from vector<1x1x1xf32>
    %cst_87 = arith.constant 0.000000e+00 : f32
    %444 = vector.broadcast %cst_87 : f32 to vector<1x128xf32>
    %445 = arith.cmpf oge, %431, %444 : vector<1x128xf32>
    %446 = vector.broadcast %439 : f32 to vector<1x128xf32>
    %447 = vector.broadcast %443 : f32 to vector<1x128xf32>
    %448 = arith.select %445, %446, %447 : vector<1x128xi1>, vector<1x128xf32>
    %cst_88 = arith.constant 0.000000e+00 : f32
    %449 = vector.broadcast %cst_88 : f32 to vector<1x128xf32>
    %cst_89 = arith.constant 0.000000e+00 : f32
    %450 = vector.broadcast %cst_89 : f32 to vector<1x128xf32>
    %451 = vector.extract_strided_slice %435 {offsets = [0, 0], sizes = [64, 1], strides = [1, 1]} : vector<128x1xf32> to vector<64x1xf32>
    %452 = vector.extract_strided_slice %427 {offsets = [0, 0], sizes = [64, 1], strides = [1, 1]} : vector<128x1xf32> to vector<64x1xf32>
    %453 = vector.broadcast %451 : vector<64x1xf32> to vector<64x128xf32>
    %454 = vector.broadcast %448 : vector<1x128xf32> to vector<64x128xf32>
    %455 = arith.subf %453, %454 : vector<64x128xf32>
    %456 = vector.broadcast %431 : vector<1x128xf32> to vector<64x128xf32>
    %457 = arith.mulf %456, %455 : vector<64x128xf32>
    %458 = math.exp %457 : vector<64x128xf32>
    %cst_90 = arith.constant dense<0.000000e+00> : vector<128xf32>
    %459 = vector.multi_reduction <add>, %458, %cst_90 [0] : vector<64x128xf32> to vector<128xf32>
    %460 = vector.shape_cast %459 : vector<128xf32> to vector<1x128xf32>
    %461 = arith.addf %449, %460 : vector<1x128xf32>
    %462 = vector.broadcast %452 : vector<64x1xf32> to vector<64x128xf32>
    %463 = arith.mulf %458, %462 : vector<64x128xf32>
    %cst_91 = arith.constant dense<0.000000e+00> : vector<128xf32>
    %464 = vector.multi_reduction <add>, %463, %cst_91 [0] : vector<64x128xf32> to vector<128xf32>
    %465 = vector.shape_cast %464 : vector<128xf32> to vector<1x128xf32>
    %466 = arith.addf %450, %465 : vector<1x128xf32>
    %467 = vector.extract_strided_slice %435 {offsets = [64, 0], sizes = [64, 1], strides = [1, 1]} : vector<128x1xf32> to vector<64x1xf32>
    %468 = vector.extract_strided_slice %427 {offsets = [64, 0], sizes = [64, 1], strides = [1, 1]} : vector<128x1xf32> to vector<64x1xf32>
    %469 = vector.broadcast %467 : vector<64x1xf32> to vector<64x128xf32>
    %470 = vector.broadcast %448 : vector<1x128xf32> to vector<64x128xf32>
    %471 = arith.subf %469, %470 : vector<64x128xf32>
    %472 = vector.broadcast %431 : vector<1x128xf32> to vector<64x128xf32>
    %473 = arith.mulf %472, %471 : vector<64x128xf32>
    %474 = math.exp %473 : vector<64x128xf32>
    %cst_92 = arith.constant dense<0.000000e+00> : vector<128xf32>
    %475 = vector.multi_reduction <add>, %474, %cst_92 [0] : vector<64x128xf32> to vector<128xf32>
    %476 = vector.shape_cast %475 : vector<128xf32> to vector<1x128xf32>
    %477 = arith.addf %461, %476 : vector<1x128xf32>
    %478 = vector.broadcast %468 : vector<64x1xf32> to vector<64x128xf32>
    %479 = arith.mulf %474, %478 : vector<64x128xf32>
    %cst_93 = arith.constant dense<0.000000e+00> : vector<128xf32>
    %480 = vector.multi_reduction <add>, %479, %cst_93 [0] : vector<64x128xf32> to vector<128xf32>
    %481 = vector.shape_cast %480 : vector<128xf32> to vector<1x128xf32>
    %482 = arith.addf %466, %481 : vector<1x128xf32>
    %483 = tpu.reciprocal %477 {approx = true} : vector<1x128xf32> -> vector<1x128xf32>
    %484 = arith.mulf %477, %483 : vector<1x128xf32>
    %cst_94 = arith.constant 2.000000e+00 : f32
    %485 = vector.broadcast %cst_94 : f32 to vector<1x128xf32>
    %486 = arith.subf %485, %484 : vector<1x128xf32>
    %487 = arith.mulf %483, %486 : vector<1x128xf32>
    %488 = arith.mulf %482, %487 : vector<1x128xf32>
    %489 = arith.addf %488, %426 : vector<1x128xf32>
    %490 = arith.index_cast %c6_i32 : i32 to index
    %c0_95 = arith.constant 0 : index
    %c0_96 = arith.constant 0 : index
    %491 = vector.load %arg3[%490, %c0_95, %c0_96] : memref<8x1x128xf32, #tpu.memory_space<vmem>>, vector<1x1x128xf32>
    %492 = vector.shape_cast %491 : vector<1x1x128xf32> to vector<1x128xf32>
    %493 = vector.shape_cast %489 : vector<1x128xf32> to vector<1x1x128xf32>
    tpu.vector_store %arg3[%490, %c0_95, %c0_96], %493 {strides = array<i32>} : memref<8x1x128xf32, #tpu.memory_space<vmem>>, vector<1x1x128xf32>,
    %c7_i32 = arith.constant 7 : i32
    %494 = arith.index_cast %c7_i32 : i32 to index
    %c0_97 = arith.constant 0 : index
    %c0_98 = arith.constant 0 : index
    %495 = vector.load %arg2[%494, %c0_97, %c0_98] : memref<8x1x128xf32, #tpu.memory_space<vmem>>, vector<1x1x128xf32>
    %496 = vector.shape_cast %495 : vector<1x1x128xf32> to vector<1x128xf32>
    %497 = tpu.transpose %496, [1, 0] : vector<1x128xf32> -> vector<128x1xf32>
    %498 = vector.broadcast %0 : f32 to vector<1x128xf32>
    %499 = arith.mulf %498, %496 : vector<1x128xf32>
    %500 = vector.broadcast %1 : f32 to vector<1x128xf32>
    %501 = arith.addf %499, %500 : vector<1x128xf32>
    %502 = vector.broadcast %2 : f32 to vector<128x1xf32>
    %503 = arith.mulf %502, %497 : vector<128x1xf32>
    %504 = vector.broadcast %3 : f32 to vector<128x1xf32>
    %505 = arith.addf %503, %504 : vector<128x1xf32>
    %506 = vector.shape_cast %505 : vector<128x1xf32> to vector<1x128x1xf32>
    %cst_99 = arith.constant dense<0xFF800000> : vector<1xf32>
    %507 = vector.multi_reduction <maximumf>, %506, %cst_99 [1, 2] : vector<1x128x1xf32> to vector<1xf32>
    %508 = vector.shape_cast %507 : vector<1xf32> to vector<1x1x1xf32>
    %509 = vector.extract %508[0, 0, 0] : f32 from vector<1x1x1xf32>
    %510 = vector.shape_cast %505 : vector<128x1xf32> to vector<1x128x1xf32>
    %cst_100 = arith.constant dense<0x7F800000> : vector<1xf32>
    %511 = vector.multi_reduction <minimumf>, %510, %cst_100 [1, 2] : vector<1x128x1xf32> to vector<1xf32>
    %512 = vector.shape_cast %511 : vector<1xf32> to vector<1x1x1xf32>
    %513 = vector.extract %512[0, 0, 0] : f32 from vector<1x1x1xf32>
    %cst_101 = arith.constant 0.000000e+00 : f32
    %514 = vector.broadcast %cst_101 : f32 to vector<1x128xf32>
    %515 = arith.cmpf oge, %501, %514 : vector<1x128xf32>
    %516 = vector.broadcast %509 : f32 to vector<1x128xf32>
    %517 = vector.broadcast %513 : f32 to vector<1x128xf32>
    %518 = arith.select %515, %516, %517 : vector<1x128xi1>, vector<1x128xf32>
    %cst_102 = arith.constant 0.000000e+00 : f32
    %519 = vector.broadcast %cst_102 : f32 to vector<1x128xf32>
    %cst_103 = arith.constant 0.000000e+00 : f32
    %520 = vector.broadcast %cst_103 : f32 to vector<1x128xf32>
    %521 = vector.extract_strided_slice %505 {offsets = [0, 0], sizes = [64, 1], strides = [1, 1]} : vector<128x1xf32> to vector<64x1xf32>
    %522 = vector.extract_strided_slice %497 {offsets = [0, 0], sizes = [64, 1], strides = [1, 1]} : vector<128x1xf32> to vector<64x1xf32>
    %523 = vector.broadcast %521 : vector<64x1xf32> to vector<64x128xf32>
    %524 = vector.broadcast %518 : vector<1x128xf32> to vector<64x128xf32>
    %525 = arith.subf %523, %524 : vector<64x128xf32>
    %526 = vector.broadcast %501 : vector<1x128xf32> to vector<64x128xf32>
    %527 = arith.mulf %526, %525 : vector<64x128xf32>
    %528 = math.exp %527 : vector<64x128xf32>
    %cst_104 = arith.constant dense<0.000000e+00> : vector<128xf32>
    %529 = vector.multi_reduction <add>, %528, %cst_104 [0] : vector<64x128xf32> to vector<128xf32>
    %530 = vector.shape_cast %529 : vector<128xf32> to vector<1x128xf32>
    %531 = arith.addf %519, %530 : vector<1x128xf32>
    %532 = vector.broadcast %522 : vector<64x1xf32> to vector<64x128xf32>
    %533 = arith.mulf %528, %532 : vector<64x128xf32>
    %cst_105 = arith.constant dense<0.000000e+00> : vector<128xf32>
    %534 = vector.multi_reduction <add>, %533, %cst_105 [0] : vector<64x128xf32> to vector<128xf32>
    %535 = vector.shape_cast %534 : vector<128xf32> to vector<1x128xf32>
    %536 = arith.addf %520, %535 : vector<1x128xf32>
    %537 = vector.extract_strided_slice %505 {offsets = [64, 0], sizes = [64, 1], strides = [1, 1]} : vector<128x1xf32> to vector<64x1xf32>
    %538 = vector.extract_strided_slice %497 {offsets = [64, 0], sizes = [64, 1], strides = [1, 1]} : vector<128x1xf32> to vector<64x1xf32>
    %539 = vector.broadcast %537 : vector<64x1xf32> to vector<64x128xf32>
    %540 = vector.broadcast %518 : vector<1x128xf32> to vector<64x128xf32>
    %541 = arith.subf %539, %540 : vector<64x128xf32>
    %542 = vector.broadcast %501 : vector<1x128xf32> to vector<64x128xf32>
    %543 = arith.mulf %542, %541 : vector<64x128xf32>
    %544 = math.exp %543 : vector<64x128xf32>
    %cst_106 = arith.constant dense<0.000000e+00> : vector<128xf32>
    %545 = vector.multi_reduction <add>, %544, %cst_106 [0] : vector<64x128xf32> to vector<128xf32>
    %546 = vector.shape_cast %545 : vector<128xf32> to vector<1x128xf32>
    %547 = arith.addf %531, %546 : vector<1x128xf32>
    %548 = vector.broadcast %538 : vector<64x1xf32> to vector<64x128xf32>
    %549 = arith.mulf %544, %548 : vector<64x128xf32>
    %cst_107 = arith.constant dense<0.000000e+00> : vector<128xf32>
    %550 = vector.multi_reduction <add>, %549, %cst_107 [0] : vector<64x128xf32> to vector<128xf32>
    %551 = vector.shape_cast %550 : vector<128xf32> to vector<1x128xf32>
    %552 = arith.addf %536, %551 : vector<1x128xf32>
    %553 = tpu.reciprocal %547 {approx = true} : vector<1x128xf32> -> vector<1x128xf32>
    %554 = arith.mulf %547, %553 : vector<1x128xf32>
    %cst_108 = arith.constant 2.000000e+00 : f32
    %555 = vector.broadcast %cst_108 : f32 to vector<1x128xf32>
    %556 = arith.subf %555, %554 : vector<1x128xf32>
    %557 = arith.mulf %553, %556 : vector<1x128xf32>
    %558 = arith.mulf %552, %557 : vector<1x128xf32>
    %559 = arith.addf %558, %496 : vector<1x128xf32>
    %560 = arith.index_cast %c7_i32 : i32 to index
    %c0_109 = arith.constant 0 : index
    %c0_110 = arith.constant 0 : index
    %561 = vector.load %arg3[%560, %c0_109, %c0_110] : memref<8x1x128xf32, #tpu.memory_space<vmem>>, vector<1x1x128xf32>
    %562 = vector.shape_cast %561 : vector<1x1x128xf32> to vector<1x128xf32>
    %563 = vector.shape_cast %559 : vector<1x128xf32> to vector<1x1x128xf32>
    tpu.vector_store %arg3[%560, %c0_109, %c0_110], %563 {strides = array<i32>} : memref<8x1x128xf32, #tpu.memory_space<vmem>>, vector<1x1x128xf32>,
    %c8_i32 = arith.constant 8 : i32
    return
  }
  func.func @transform_0(%arg0: i32) -> i32 {
    %c0_i32 = arith.constant 0 : i32
    %c0_i32_0 = arith.constant 0 : i32
    return %c0_i32 : i32
  }
  func.func @transform_1(%arg0: i32) -> (i32, i32, i32) {
    %c0_i32 = arith.constant 0 : i32
    %c0_i32_0 = arith.constant 0 : i32
    %c0_i32_1 = arith.constant 0 : i32
    return %arg0, %c0_i32, %c0_i32_0 : i32, i32, i32
  }
  func.func @transform_2(%arg0: i32) -> (i32, i32, i32) {
    %c0_i32 = arith.constant 0 : i32
    %c0_i32_0 = arith.constant 0 : i32
    %c0_i32_1 = arith.constant 0 : i32
    return %arg0, %c0_i32, %c0_i32_0 : i32, i32, i32
  }
}

</mosaic_0001>

<llo_original>
// kernel: tpu_custom_call.1
$region0: #{tpu_custom_call.1}
  #allocation0 [shape = 'u32[]', space=smem, size = 0x4, offset = 0x4, fixed_abs, tag = 'smem constant byte address 0x4 - core index']
  #allocation1 [shape = 'u32[72,128]{1,0:T(1,128)}', space=vmem, size = 0x9000, scoped, tag = 'internal scratch']
  %s0 = inlined_call_operand.hbm [shape: f32[4], index: 0, kind: input, shape index: {}]
  %s1 = inlined_call_operand.hbm [shape: f32[16,1,128], index: 1, kind: input, shape index: {}]
  %s2 = inlined_call_operand.hbm [shape: f32[16,1,128], index: 2, kind: output, shape index: {}]
  %s3 = sld [smem:[#allocation0]]
  $region49: #{tpu_custom_call.1} parent=0
    _
  %s5 = ssub.s32 1, %s3
  %s6 = scalar_select 0, %s5, %s3
  $region1: #{tpu_custom_call.1} parent=0
    #allocation2 [shape = 'u8[512]{0}', space=smem, size = 0x200, scoped, tag = 'input window, operand 0, single buffered']
    #allocation3 [shape = 's32[2]{0}', space=sflag, size = 0x8, scoped, tag = 'scoped memory for tpu_custom_call.1']
    #allocation4 [shape = 's32[2]{0}', space=sflag, size = 0x8, scoped, tag = 'scoped memory for tpu_custom_call.1']
    #allocation5 [shape = 's32[2]{0}', space=sflag, size = 0x8, scoped, tag = 'scoped memory for tpu_custom_call.1']
    #allocation6 [shape = 'u8[8192]{0}', space=vmem, size = 0x2000, scoped, tag = 'input window, operand 1']
    #allocation7 [shape = 'u8[8192]{0}', space=vmem, size = 0x2000, scoped, tag = 'output window, operand 0']
    %7 = vsyncpa [#allocation5], 0
    %8 = vsyncpa [#allocation3], 0
    %s9 = scalar_lea.sflag [#allocation3], 1
    %10 = vsyncpa %s9, 0
    %11 = vsyncpa [#allocation4], 0
    %s12 = scalar_lea.sflag [#allocation4], 1
    %13 = vsyncpa %s12, 0
    loop: start=0, step=1, limit=4
    $region2: #{tpu_custom_call.1} parent=1 // loop_pre_header
      _
    $region3: #{tpu_custom_call.1} parent=1 // loop_header
      %s15 = sphi 0, %s19
      %p16 = scmp.ge.s32.totalorder %s15, 4
      %s23 = sphi 0, %s23
      %s25 = sphi 0, %s23
      %s26 = sphi 0, %s25
      %s40 = sphi 0, %s26
      %s46 = sphi 0, %s48
      %s49 = sphi 0, %s46
      %s50 = sphi 0, %s49
      %s66 = sphi 0, %s50
      %s72 = sphi 0, %s74
      %s75 = sphi 0, %s72
      %s76 = sphi 0, %s75
      %s92 = sphi 0, %s76
    $region4: #{tpu_custom_call.1} parent=1 // loop_header_branch
      %18 = sbr.rel (%p16) target = $region8
    $region5: #{tpu_custom_call.1} parent=1 // loop_body
      %s20 = ssub.s32 %s15, 1
      %s21 = ssub.s32 %s15, 2
      %s22 = sadd.s32 %s15, 1
      %s24 = sadd.s32 %s23, 1
      %p27 = scmp.eq.s32.totalorder %s15, 1
      %p28 = scmp.ne.s32.totalorder %s23, %s25
      %p29 = scmp.eq.s32.totalorder %s15, 0
      %p30 = por %p28, %p29
      %p31 = scmp.ne.s32.totalorder %s23, %s25
      %p32 = scmp.eq.s32.totalorder %s20, 1
      %p33 = por %p31, %p32
      %p34 = scmp.ne.s32.totalorder %s25, %s26
      %p35 = scmp.eq.s32.totalorder %s20, 0
      %p36 = por %p34, %p35
      %p37 = scmp.ne.s32.totalorder %s25, %s26
      %p38 = scmp.eq.s32.totalorder %s21, 1
      %p39 = por %p37, %p38
      %p41 = scmp.ne.s32.totalorder %s26, %s40
      %p42 = scmp.eq.s32.totalorder %s21, 0
      %p43 = por %p41, %p42
      %s44 = ssub.s32 %s15, %s22
      %p45 = scmp.eq.s32.totalorder %s44, 0
      %s47 = sadd.s32 %s46, 1
      %s48 = scalar_select %p45, %s46, %s47
      %p51 = pneg %p45
      %p52 = scmp.eq.s32.totalorder %s15, 1
      %p53 = por %p51, %p52
      %p54 = scmp.ne.s32.totalorder %s46, %s49
      %p55 = scmp.eq.s32.totalorder %s15, 0
      %p56 = por %p54, %p55
      %p57 = scmp.ne.s32.totalorder %s46, %s49
      %p58 = scmp.eq.s32.totalorder %s20, 1
      %p59 = por %p57, %p58
      %p60 = scmp.ne.s32.totalorder %s49, %s50
      %p61 = scmp.eq.s32.totalorder %s20, 0
      %p62 = por %p60, %p61
      %p63 = scmp.ne.s32.totalorder %s49, %s50
      %p64 = scmp.eq.s32.totalorder %s21, 1
      %p65 = por %p63, %p64
      %p67 = scmp.ne.s32.totalorder %s50, %s66
      %p68 = scmp.eq.s32.totalorder %s21, 0
      %p69 = por %p67, %p68
      %s70 = ssub.s32 %s15, %s22
      %p71 = scmp.eq.s32.totalorder %s70, 0
      %s73 = sadd.s32 %s72, 1
      %s74 = scalar_select %p71, %s72, %s73
      %p77 = pneg %p71
      %p78 = scmp.eq.s32.totalorder %s15, 1
      %p79 = por %p77, %p78
      %p80 = scmp.ne.s32.totalorder %s72, %s75
      %p81 = scmp.eq.s32.totalorder %s15, 0
      %p82 = por %p80, %p81
      %p83 = scmp.ne.s32.totalorder %s72, %s75
      %p84 = scmp.eq.s32.totalorder %s20, 1
      %p85 = por %p83, %p84
      %p86 = scmp.ne.s32.totalorder %s75, %s76
      %p87 = scmp.eq.s32.totalorder %s20, 0
      %p88 = por %p86, %p87
      %p89 = scmp.ne.s32.totalorder %s75, %s76
      %p90 = scmp.eq.s32.totalorder %s21, 1
      %p91 = por %p89, %p90
      %p93 = scmp.ne.s32.totalorder %s76, %s92
      %p94 = scmp.eq.s32.totalorder %s21, 0
      %p95 = por %p93, %p94
      %p96 = scmp.le.s32.totalorder 1, %s15
      %p97 = scmp.lt.s32.totalorder %s15, 3
      %p98 = pnand %p96, %p97
      %p99 = pneg %p98
      // Predicated region
      $region9: #{tpu_custom_call.1} parent=5 // pred_check
        _
      $region10: #{tpu_custom_call.1} parent=5 // pred_check_branch
        %101 = sbr.rel (%p98) target = $region12
      $region11: #{tpu_custom_call.1} parent=5 // pred_region
        %s102 = ssub.s32 %s15, 1
        // Predicated region
        $region13: #{tpu_custom_call.1} parent=11 // pred_check
          %p103 = pneg %p36
        $region14: #{tpu_custom_call.1} parent=11 // pred_check_branch
          %105 = sbr.rel (%p103) target = $region16
        $region15: #{tpu_custom_call.1} parent=11 // pred_region
          %107 = vsyncadd [#allocation5], 0
          %s109 = sshll.u32 %s0, 4
          %s110 = int_to_ptr.hbm [resolvable:$true] %s109
          %112 = dma.hbm_to_smem %s110, 16, [#allocation2], [#allocation5]
        $region16: #{tpu_custom_call.1} parent=11 // pred_fallthru
          _
      $region12: #{tpu_custom_call.1} parent=5 // pred_fallthru
        _
      %p113 = scmp.lt.s32.totalorder %s15, 2
      // Predicated region
      $region17: #{tpu_custom_call.1} parent=5 // pred_check
        %p114 = pneg %p113
      $region18: #{tpu_custom_call.1} parent=5 // pred_check_branch
        %116 = sbr.rel (%p114) target = $region20
      $region19: #{tpu_custom_call.1} parent=5 // pred_region
        // Predicated region
        $region21: #{tpu_custom_call.1} parent=19 // pred_check
          %p117 = pneg %p56
        $region22: #{tpu_custom_call.1} parent=19 // pred_check_branch
          %119 = sbr.rel (%p117) target = $region24
        $region23: #{tpu_custom_call.1} parent=19 // pred_region
          %s120 = sand.u32 %s46, 1
          %s121 = scalar_lea.sflag [#allocation3], %s120
          %s122 = sand.u32 %s46, 1
          %s123 = smul.addr %s122, 8
          %s124 = scalar_lea.vmem [#allocation6], %s123
          %s125 = smul.u32 8, %s15
          %127 = vsyncadd %s121, 0
          %s128 = scalar_lea.hbm %s1, %s125
          %s129 = sshll.u32 %s128, 4
          %s130 = int_to_ptr.hbm [resolvable:$true] %s129
          %s131 = sshll.u32 %s124, 4
          %s132 = int_to_ptr.vmem [resolvable:$true] %s131
          %137 = dma.hbm_to_vmem [thread:$0]  %s130, 128, %s132, %s121, 16, 16, 1
        $region24: #{tpu_custom_call.1} parent=19 // pred_fallthru
          _
      $region20: #{tpu_custom_call.1} parent=5 // pred_fallthru
        _
      %p138 = scmp.le.s32.totalorder 1, %s15
      %p139 = scmp.lt.s32.totalorder %s15, 3
      %p140 = pnand %p138, %p139
      %p141 = pneg %p140
      // Predicated region
      $region25: #{tpu_custom_call.1} parent=5 // pred_check
        _
      $region26: #{tpu_custom_call.1} parent=5 // pred_check_branch
        %143 = sbr.rel (%p140) target = $region28
      $region27: #{tpu_custom_call.1} parent=5 // pred_region
        %s144 = ssub.s32 %s15, 1
        // Predicated region
        $region29: #{tpu_custom_call.1} parent=27 // pred_check
          %p145 = pneg %p36
        $region30: #{tpu_custom_call.1} parent=27 // pred_check_branch
          %147 = sbr.rel (%p145) target = $region32
        $region31: #{tpu_custom_call.1} parent=27 // pred_region
          %149 = dma.done [#allocation5], 16
        $region32: #{tpu_custom_call.1} parent=27 // pred_fallthru
          _
        %s150 = sand.u32 %s49, 1
        %s151 = scalar_lea.sflag [#allocation3], %s150
        %s152 = sand.u32 %s49, 1
        %s153 = smul.addr %s152, 8
        %s154 = scalar_lea.vmem [#allocation6], %s153
        // Predicated region
        $region33: #{tpu_custom_call.1} parent=27 // pred_check
          %p155 = pneg %p62
        $region34: #{tpu_custom_call.1} parent=27 // pred_check_branch
          %157 = sbr.rel (%p155) target = $region36
        $region35: #{tpu_custom_call.1} parent=27 // pred_region
          %159 = dma.done %s151, 128
        $region36: #{tpu_custom_call.1} parent=27 // pred_fallthru
          _
        %160 = sfence
        %p161 = pneg %p36
        %p162 = pneg %p33
        %s163 = sand.u32 %s49, 1
        %s164 = scalar_lea.sflag [#allocation3], %s163
        %s165 = sand.u32 %s49, 1
        %s166 = smul.addr %s165, 8
        %s167 = scalar_lea.vmem [#allocation6], %s166
        %p168 = pneg %p62
        %p169 = pneg %p59
        %p170 = pneg %p88
        %p171 = pneg %p85
        %s172 = sand.u32 %s75, 1
        %s173 = scalar_lea.sflag [#allocation4], %s172
        %s174 = sand.u32 %s75, 1
        %s175 = smul.addr %s174, 8
        %s176 = scalar_lea.vmem [#allocation7], %s175
        %s177 = smul.u32 8, %s20
        %s178 = smul.u32 8, %s20
        %s179 = sld [smem:[#allocation2]]
        %s180 = sld [smem:[#allocation2 + $0x1]]
        %s181 = sld [smem:[#allocation2 + $0x2]]
        %s182 = sld [smem:[#allocation2 + $0x3]]
        %v183 = vld [vmem:[%s154] sm:$0x1]
        %184 = vxpose.xlu0.b32.start [1/16] %v183, 128
        %185 = vxpose.xlu0.b32.cont [2/16] 0.0, 128
        %186 = vxpose.xlu0.b32.cont [3/16] 0.0, 128
        %187 = vxpose.xlu0.b32.cont [4/16] 0.0, 128
        %188 = vxpose.xlu0.b32.cont [5/16] 0.0, 128
        %189 = vxpose.xlu0.b32.cont [6/16] 0.0, 128
        %190 = vxpose.xlu0.b32.cont [7/16] 0.0, 128
        %191 = vxpose.xlu0.b32.cont [8/16] 0.0, 128
        %192 = vxpose.xlu0.b32.cont [9/16] 0.0, 128
        %193 = vxpose.xlu0.b32.cont [10/16] 0.0, 128
        %194 = vxpose.xlu0.b32.cont [11/16] 0.0, 128
        %195 = vxpose.xlu0.b32.cont [12/16] 0.0, 128
        %196 = vxpose.xlu0.b32.cont [13/16] 0.0, 128
        %197 = vxpose.xlu0.b32.cont [14/16] 0.0, 128
        %198 = vxpose.xlu0.b32.cont [15/16] 0.0, 128
        %199 = vxpose.xlu0.b32.end [16/16] 0.0, 128
        %v200 = vpop.trf.xlu0
        %v201 = vpop.trf.xlu0
        %v202 = vpop.trf.xlu0
        %v203 = vpop.trf.xlu0
        %v204 = vpop.trf.xlu0
        %v205 = vpop.trf.xlu0
        %v206 = vpop.trf.xlu0
        %v207 = vpop.trf.xlu0
        %v208 = vpop.trf.xlu0
        %v209 = vpop.trf.xlu0
        %v210 = vpop.trf.xlu0
        %v211 = vpop.trf.xlu0
        %v212 = vpop.trf.xlu0
        %v213 = vpop.trf.xlu0
        %v214 = vpop.trf.xlu0
        %v215 = vpop.trf.xlu0
        %v216 = vstv %s179
        %v217 = vmul.f32 %v216, %v183
        %v218 = vstv %s180
        %v219 = vadd.f32 %v217, %v218
        %v220 = vstv %s181
        %v221 = vmul.f32 %v220, %v200
        %v222 = vmul.f32 %v220, %v201
        %v223 = vmul.f32 %v220, %v202
        %v224 = vmul.f32 %v220, %v203
        %v225 = vmul.f32 %v220, %v204
        %v226 = vmul.f32 %v220, %v205
        %v227 = vmul.f32 %v220, %v206
        %v228 = vmul.f32 %v220, %v207
        %v229 = vmul.f32 %v220, %v208
        %v230 = vmul.f32 %v220, %v209
        %v231 = vmul.f32 %v220, %v210
        %v232 = vmul.f32 %v220, %v211
        %v233 = vmul.f32 %v220, %v212
        %v234 = vmul.f32 %v220, %v213
        %v235 = vmul.f32 %v220, %v214
        %v236 = vmul.f32 %v220, %v215
        %v237 = vstv %s182
        %v238 = vadd.f32 %v221, %v237
        %v239 = vadd.f32 %v222, %v237
        %v240 = vadd.f32 %v223, %v237
        %v241 = vadd.f32 %v224, %v237
        %v242 = vadd.f32 %v225, %v237
        %v243 = vadd.f32 %v226, %v237
        %v244 = vadd.f32 %v227, %v237
        %v245 = vadd.f32 %v228, %v237
        %v246 = vadd.f32 %v229, %v237
        %v247 = vadd.f32 %v230, %v237
        %v248 = vadd.f32 %v231, %v237
        %v249 = vadd.f32 %v232, %v237
        %v250 = vadd.f32 %v233, %v237
        %v251 = vadd.f32 %v234, %v237
        %v252 = vadd.f32 %v235, %v237
        %v253 = vadd.f32 %v236, %v237
        %vm254 = vcmask 7168
        %v255 = vsel %vm254, %v238, -inf
        %v256 = vsel %vm254, %v239, -inf
        %v257 = vsel %vm254, %v240, -inf
        %v258 = vsel %vm254, %v241, -inf
        %v259 = vsel %vm254, %v242, -inf
        %v260 = vmax.f32 %v255, %v259
        %v261 = vsel %vm254, %v243, -inf
        %v262 = vmax.f32 %v256, %v261
        %v263 = vsel %vm254, %v244, -inf
        %v264 = vmax.f32 %v257, %v263
        %v265 = vsel %vm254, %v245, -inf
        %v266 = vmax.f32 %v258, %v265
        %v267 = vsel %vm254, %v246, -inf
        %v268 = vmax.f32 %v260, %v267
        %v269 = vsel %vm254, %v247, -inf
        %v270 = vmax.f32 %v262, %v269
        %v271 = vsel %vm254, %v248, -inf
        %v272 = vmax.f32 %v264, %v271
        %v273 = vsel %vm254, %v249, -inf
        %v274 = vmax.f32 %v266, %v273
        %v275 = vsel %vm254, %v250, -inf
        %v276 = vmax.f32 %v268, %v275
        %v277 = vsel %vm254, %v251, -inf
        %v278 = vmax.f32 %v270, %v277
        %v279 = vsel %vm254, %v252, -inf
        %v280 = vmax.f32 %v272, %v279
        %v281 = vsel %vm254, %v253, -inf
        %v282 = vmax.f32 %v274, %v281
        %v283 = vmax.f32 %v276, %v278
        %v284 = vmax.f32 %v280, %v282
        %v285 = vmax.f32 %v283, %v284
        %286 = vmax.xlane.f32.xlu0 %v285
        %v287 = vpop.xlane.xlu0 %286
        %v288 = vrot.slane %v287, 4
        %v289 = vmax.f32 %v287, %v288
        %v290 = vrot.slane %v289, 2
        %v291 = vmax.f32 %v289, %v290
        %v292 = vrot.slane %v291, 1
        %v293 = vmax.f32 %v291, %v292
        %s294 = vtos %v293
        %v295 = vsel %vm254, %v238, inf
        %v296 = vsel %vm254, %v239, inf
        %v297 = vsel %vm254, %v240, inf
        %v298 = vsel %vm254, %v241, inf
        %v299 = vsel %vm254, %v242, inf
        %v300 = vmin.f32 %v295, %v299
        %v301 = vsel %vm254, %v243, inf
        %v302 = vmin.f32 %v296, %v301
        %v303 = vsel %vm254, %v244, inf
        %v304 = vmin.f32 %v297, %v303
        %v305 = vsel %vm254, %v245, inf
        %v306 = vmin.f32 %v298, %v305
        %v307 = vsel %vm254, %v246, inf
        %v308 = vmin.f32 %v300, %v307
        %v309 = vsel %vm254, %v247, inf
        %v310 = vmin.f32 %v302, %v309
        %v311 = vsel %vm254, %v248, inf
        %v312 = vmin.f32 %v304, %v311
        %v313 = vsel %vm254, %v249, inf
        %v314 = vmin.f32 %v306, %v313
        %v315 = vsel %vm254, %v250, inf
        %v316 = vmin.f32 %v308, %v315
        %v317 = vsel %vm254, %v251, inf
        %v318 = vmin.f32 %v310, %v317
        %v319 = vsel %vm254, %v252, inf
        %v320 = vmin.f32 %v312, %v319
        %v321 = vsel %vm254, %v253, inf
        %v322 = vmin.f32 %v314, %v321
        %v323 = vmin.f32 %v316, %v318
        %v324 = vmin.f32 %v320, %v322
        %v325 = vmin.f32 %v323, %v324
        %326 = vmin.xlane.f32.xlu0 %v325
        %v327 = vpop.xlane.xlu0 %326
        %v328 = vrot.slane %v327, 4
        %v329 = vmin.f32 %v327, %v328
        %v330 = vrot.slane %v329, 2
        %v331 = vmin.f32 %v329, %v330
        %v332 = vrot.slane %v331, 1
        %v333 = vmin.f32 %v331, %v332
        %s334 = vtos %v333
        %vm335 = vcmp.ge.f32.partialorder %v219, 0.0
        %v336 = vstv %s294
        %v337 = vstv %s334
        %v338 = vsel %vm335, %v336, %v337
        %340 = vset.pattern.permute.xlu0 0
        %341 = vperm.xlu0 %340, %v238
        %v342 = vpop.permute.xlu0 %341
        %345 = vset.pattern.permute.xlu0 0
        %346 = vperm.xlu0 %345, %v239
        %v347 = vpop.permute.xlu0 %346
        %350 = vset.pattern.permute.xlu0 0
        %351 = vperm.xlu0 %350, %v240
        %v352 = vpop.permute.xlu0 %351
        %355 = vset.pattern.permute.xlu0 0
        %356 = vperm.xlu0 %355, %v241
        %v357 = vpop.permute.xlu0 %356
        %360 = vset.pattern.permute.xlu0 0
        %361 = vperm.xlu0 %360, %v242
        %v362 = vpop.permute.xlu0 %361
        %365 = vset.pattern.permute.xlu0 0
        %366 = vperm.xlu0 %365, %v243
        %v367 = vpop.permute.xlu0 %366
        %370 = vset.pattern.permute.xlu0 0
        %371 = vperm.xlu0 %370, %v244
        %v372 = vpop.permute.xlu0 %371
        %375 = vset.pattern.permute.xlu0 0
        %376 = vperm.xlu0 %375, %v245
        %v377 = vpop.permute.xlu0 %376
        %v380 = vperm.slane %v338, 0
        %v382 = vsub.f32 %v342, %v380
        %v383 = vsub.f32 %v347, %v380
        %v384 = vsub.f32 %v352, %v380
        %v385 = vsub.f32 %v357, %v380
        %v386 = vsub.f32 %v362, %v380
        %v387 = vsub.f32 %v367, %v380
        %v388 = vsub.f32 %v372, %v380
        %v389 = vsub.f32 %v377, %v380
        %v391 = vperm.slane %v219, 0
        %v393 = vmul.f32 %v391, %v382
        %v394 = vmul.f32 %v391, %v383
        %v395 = vmul.f32 %v391, %v384
        %v396 = vmul.f32 %v391, %v385
        %v397 = vmul.f32 %v391, %v386
        %v398 = vmul.f32 %v391, %v387
        %v399 = vmul.f32 %v391, %v388
        %v400 = vmul.f32 %v391, %v389
        %v401 = vmul.f32 %v393, 1.442695
        %v402 = vpow.pop %v401
        %v403 = vmul.f32 %v394, 1.442695
        %v404 = vpow.pop %v403
        %v405 = vmul.f32 %v395, 1.442695
        %v406 = vpow.pop %v405
        %v407 = vmul.f32 %v396, 1.442695
        %v408 = vpow.pop %v407
        %v409 = vmul.f32 %v397, 1.442695
        %v410 = vpow.pop %v409
        %v411 = vmul.f32 %v398, 1.442695
        %v412 = vpow.pop %v411
        %v413 = vmul.f32 %v399, 1.442695
        %v414 = vpow.pop %v413
        %v415 = vmul.f32 %v400, 1.442695
        %v416 = vpow.pop %v415
        %v417 = vadd.f32 %v402, %v404
        %v418 = vadd.f32 %v417, %v406
        %v419 = vadd.f32 %v418, %v408
        %v420 = vadd.f32 %v419, %v410
        %v421 = vadd.f32 %v420, %v412
        %v422 = vadd.f32 %v421, %v414
        %v423 = vadd.f32 %v422, %v416
        %v424 = vrot.slane %v423, 4
        %v425 = vadd.f32 %v423, %v424
        %v426 = vrot.slane %v425, 2
        %v427 = vadd.f32 %v425, %v426
        %v428 = vrot.slane %v427, 1
        %v429 = vadd.f32 %v427, %v428
        %v430 = vadd.f32 %v429, 0.0
        %432 = vset.pattern.permute.xlu0 0
        %433 = vperm.xlu0 %432, %v200
        %v434 = vpop.permute.xlu0 %433
        %437 = vset.pattern.permute.xlu0 0
        %438 = vperm.xlu0 %437, %v201
        %v439 = vpop.permute.xlu0 %438
        %442 = vset.pattern.permute.xlu0 0
        %443 = vperm.xlu0 %442, %v202
        %v444 = vpop.permute.xlu0 %443
        %447 = vset.pattern.permute.xlu0 0
        %448 = vperm.xlu0 %447, %v203
        %v449 = vpop.permute.xlu0 %448
        %452 = vset.pattern.permute.xlu0 0
        %453 = vperm.xlu0 %452, %v204
        %v454 = vpop.permute.xlu0 %453
        %457 = vset.pattern.permute.xlu0 0
        %458 = vperm.xlu0 %457, %v205
        %v459 = vpop.permute.xlu0 %458
        %462 = vset.pattern.permute.xlu0 0
        %463 = vperm.xlu0 %462, %v206
        %v464 = vpop.permute.xlu0 %463
        %467 = vset.pattern.permute.xlu0 0
        %468 = vperm.xlu0 %467, %v207
        %v469 = vpop.permute.xlu0 %468
        %v471 = vmul.f32 %v402, %v434
        %v472 = vmul.f32 %v404, %v439
        %v473 = vmul.f32 %v406, %v444
        %v474 = vmul.f32 %v408, %v449
        %v475 = vmul.f32 %v410, %v454
        %v476 = vmul.f32 %v412, %v459
        %v477 = vmul.f32 %v414, %v464
        %v478 = vmul.f32 %v416, %v469
        %v479 = vadd.f32 %v471, %v472
        %v480 = vadd.f32 %v479, %v473
        %v481 = vadd.f32 %v480, %v474
        %v482 = vadd.f32 %v481, %v475
        %v483 = vadd.f32 %v482, %v476
        %v484 = vadd.f32 %v483, %v477
        %v485 = vadd.f32 %v484, %v478
        %v486 = vrot.slane %v485, 4
        %v487 = vadd.f32 %v485, %v486
        %v488 = vrot.slane %v487, 2
        %v489 = vadd.f32 %v487, %v488
        %v490 = vrot.slane %v489, 1
        %v491 = vadd.f32 %v489, %v490
        %v492 = vadd.f32 %v491, 0.0
        %494 = vset.pattern.permute.xlu0 0
        %495 = vperm.xlu0 %494, %v246
        %v496 = vpop.permute.xlu0 %495
        %499 = vset.pattern.permute.xlu0 0
        %500 = vperm.xlu0 %499, %v247
        %v501 = vpop.permute.xlu0 %500
        %504 = vset.pattern.permute.xlu0 0
        %505 = vperm.xlu0 %504, %v248
        %v506 = vpop.permute.xlu0 %505
        %509 = vset.pattern.permute.xlu0 0
        %510 = vperm.xlu0 %509, %v249
        %v511 = vpop.permute.xlu0 %510
        %514 = vset.pattern.permute.xlu0 0
        %515 = vperm.xlu0 %514, %v250
        %v516 = vpop.permute.xlu0 %515
        %519 = vset.pattern.permute.xlu0 0
        %520 = vperm.xlu0 %519, %v251
        %v521 = vpop.permute.xlu0 %520
        %524 = vset.pattern.permute.xlu0 0
        %525 = vperm.xlu0 %524, %v252
        %v526 = vpop.permute.xlu0 %525
        %529 = vset.pattern.permute.xlu0 0
        %530 = vperm.xlu0 %529, %v253
        %v531 = vpop.permute.xlu0 %530
        %v533 = vsub.f32 %v496, %v380
        %v534 = vsub.f32 %v501, %v380
        %v535 = vsub.f32 %v506, %v380
        %v536 = vsub.f32 %v511, %v380
        %v537 = vsub.f32 %v516, %v380
        %v538 = vsub.f32 %v521, %v380
        %v539 = vsub.f32 %v526, %v380
        %v540 = vsub.f32 %v531, %v380
        %v541 = vmul.f32 %v391, %v533
        %v542 = vmul.f32 %v391, %v534
        %v543 = vmul.f32 %v391, %v535
        %v544 = vmul.f32 %v391, %v536
        %v545 = vmul.f32 %v391, %v537
        %v546 = vmul.f32 %v391, %v538
        %v547 = vmul.f32 %v391, %v539
        %v548 = vmul.f32 %v391, %v540
        %v549 = vmul.f32 %v541, 1.442695
        %v550 = vpow.pop %v549
        %v551 = vmul.f32 %v542, 1.442695
        %v552 = vpow.pop %v551
        %v553 = vmul.f32 %v543, 1.442695
        %v554 = vpow.pop %v553
        %v555 = vmul.f32 %v544, 1.442695
        %v556 = vpow.pop %v555
        %v557 = vmul.f32 %v545, 1.442695
        %v558 = vpow.pop %v557
        %v559 = vmul.f32 %v546, 1.442695
        %v560 = vpow.pop %v559
        %v561 = vmul.f32 %v547, 1.442695
        %v562 = vpow.pop %v561
        %v563 = vmul.f32 %v548, 1.442695
        %v564 = vpow.pop %v563
        %v565 = vadd.f32 %v550, %v552
        %v566 = vadd.f32 %v565, %v554
        %v567 = vadd.f32 %v566, %v556
        %v568 = vadd.f32 %v567, %v558
        %v569 = vadd.f32 %v568, %v560
        %v570 = vadd.f32 %v569, %v562
        %v571 = vadd.f32 %v570, %v564
        %v572 = vrot.slane %v571, 4
        %v573 = vadd.f32 %v571, %v572
        %v574 = vrot.slane %v573, 2
        %v575 = vadd.f32 %v573, %v574
        %v576 = vrot.slane %v575, 1
        %v577 = vadd.f32 %v575, %v576
        %v578 = vadd.f32 %v430, %v577
        %580 = vset.pattern.permute.xlu0 0
        %581 = vperm.xlu0 %580, %v208
        %v582 = vpop.permute.xlu0 %581
        %585 = vset.pattern.permute.xlu0 0
        %586 = vperm.xlu0 %585, %v209
        %v587 = vpop.permute.xlu0 %586
        %590 = vset.pattern.permute.xlu0 0
        %591 = vperm.xlu0 %590, %v210
        %v592 = vpop.permute.xlu0 %591
        %595 = vset.pattern.permute.xlu0 0
        %596 = vperm.xlu0 %595, %v211
        %v597 = vpop.permute.xlu0 %596
        %600 = vset.pattern.permute.xlu0 0
        %601 = vperm.xlu0 %600, %v212
        %v602 = vpop.permute.xlu0 %601
        %605 = vset.pattern.permute.xlu0 0
        %606 = vperm.xlu0 %605, %v213
        %v607 = vpop.permute.xlu0 %606
        %610 = vset.pattern.permute.xlu0 0
        %611 = vperm.xlu0 %610, %v214
        %v612 = vpop.permute.xlu0 %611
        %615 = vset.pattern.permute.xlu0 0
        %616 = vperm.xlu0 %615, %v215
        %v617 = vpop.permute.xlu0 %616
        %v619 = vmul.f32 %v550, %v582
        %v620 = vmul.f32 %v552, %v587
        %v621 = vmul.f32 %v554, %v592
        %v622 = vmul.f32 %v556, %v597
        %v623 = vmul.f32 %v558, %v602
        %v624 = vmul.f32 %v560, %v607
        %v625 = vmul.f32 %v562, %v612
        %v626 = vmul.f32 %v564, %v617
        %v627 = vadd.f32 %v619, %v620
        %v628 = vadd.f32 %v627, %v621
        %v629 = vadd.f32 %v628, %v622
        %v630 = vadd.f32 %v629, %v623
        %v631 = vadd.f32 %v630, %v624
        %v632 = vadd.f32 %v631, %v625
        %v633 = vadd.f32 %v632, %v626
        %v634 = vrot.slane %v633, 4
        %v635 = vadd.f32 %v633, %v634
        %v636 = vrot.slane %v635, 2
        %v637 = vadd.f32 %v635, %v636
        %v638 = vrot.slane %v637, 1
        %v639 = vadd.f32 %v637, %v638
        %v640 = vadd.f32 %v492, %v639
        %v641 = vrcp.pop %v578
        %v642 = vmul.f32 %v578, %v641
        %v643 = vsub.f32 2.0, %v642
        %v644 = vmul.f32 %v641, %v643
        %v645 = vmul.f32 %v640, %v644
        %v646 = vadd.f32 %v645, %v183
        %647 = vst [vmem:[%s176] sm:$0x1] %v646
        %s648 = scalar_lea.vmem %s154, 1 [#allocation6]
        %v649 = vld [vmem:[%s648] sm:$0x1]
        %650 = vxpose.xlu0.b32.start [1/16] %v649, 128
        %651 = vxpose.xlu0.b32.cont [2/16] 0.0, 128
        %652 = vxpose.xlu0.b32.cont [3/16] 0.0, 128
        %653 = vxpose.xlu0.b32.cont [4/16] 0.0, 128
        %654 = vxpose.xlu0.b32.cont [5/16] 0.0, 128
        %655 = vxpose.xlu0.b32.cont [6/16] 0.0, 128
        %656 = vxpose.xlu0.b32.cont [7/16] 0.0, 128
        %657 = vxpose.xlu0.b32.cont [8/16] 0.0, 128
        %658 = vxpose.xlu0.b32.cont [9/16] 0.0, 128
        %659 = vxpose.xlu0.b32.cont [10/16] 0.0, 128
        %660 = vxpose.xlu0.b32.cont [11/16] 0.0, 128
        %661 = vxpose.xlu0.b32.cont [12/16] 0.0, 128
        %662 = vxpose.xlu0.b32.cont [13/16] 0.0, 128
        %663 = vxpose.xlu0.b32.cont [14/16] 0.0, 128
        %664 = vxpose.xlu0.b32.cont [15/16] 0.0, 128
        %665 = vxpose.xlu0.b32.end [16/16] 0.0, 128
        %v666 = vpop.trf.xlu0
        %v667 = vpop.trf.xlu0
        %v668 = vpop.trf.xlu0
        %v669 = vpop.trf.xlu0
        %v670 = vpop.trf.xlu0
        %v671 = vpop.trf.xlu0
        %v672 = vpop.trf.xlu0
        %v673 = vpop.trf.xlu0
        %v674 = vpop.trf.xlu0
        %v675 = vpop.trf.xlu0
        %v676 = vpop.trf.xlu0
        %v677 = vpop.trf.xlu0
        %v678 = vpop.trf.xlu0
        %v679 = vpop.trf.xlu0
        %v680 = vpop.trf.xlu0
        %v681 = vpop.trf.xlu0
        %v682 = vmul.f32 %v216, %v649
        %v683 = vadd.f32 %v682, %v218
        %v684 = vmul.f32 %v220, %v666
        %v685 = vmul.f32 %v220, %v667
        %v686 = vmul.f32 %v220, %v668
        %v687 = vmul.f32 %v220, %v669
        %v688 = vmul.f32 %v220, %v670
        %v689 = vmul.f32 %v220, %v671
        %v690 = vmul.f32 %v220, %v672
        %v691 = vmul.f32 %v220, %v673
        %v692 = vmul.f32 %v220, %v674
        %v693 = vmul.f32 %v220, %v675
        %v694 = vmul.f32 %v220, %v676
        %v695 = vmul.f32 %v220, %v677
        %v696 = vmul.f32 %v220, %v678
        %v697 = vmul.f32 %v220, %v679
        %v698 = vmul.f32 %v220, %v680
        %v699 = vmul.f32 %v220, %v681
        %v700 = vadd.f32 %v684, %v237
        %v701 = vadd.f32 %v685, %v237
        %v702 = vadd.f32 %v686, %v237
        %v703 = vadd.f32 %v687, %v237
        %v704 = vadd.f32 %v688, %v237
        %v705 = vadd.f32 %v689, %v237
        %v706 = vadd.f32 %v690, %v237
        %v707 = vadd.f32 %v691, %v237
        %v708 = vadd.f32 %v692, %v237
        %v709 = vadd.f32 %v693, %v237
        %v710 = vadd.f32 %v694, %v237
        %v711 = vadd.f32 %v695, %v237
        %v712 = vadd.f32 %v696, %v237
        %v713 = vadd.f32 %v697, %v237
        %v714 = vadd.f32 %v698, %v237
        %v715 = vadd.f32 %v699, %v237
        %v716 = vsel %vm254, %v700, -inf
        %v717 = vsel %vm254, %v701, -inf
        %v718 = vsel %vm254, %v702, -inf
        %v719 = vsel %vm254, %v703, -inf
        %v720 = vsel %vm254, %v704, -inf
        %v721 = vmax.f32 %v716, %v720
        %v722 = vsel %vm254, %v705, -inf
        %v723 = vmax.f32 %v717, %v722
        %v724 = vsel %vm254, %v706, -inf
        %v725 = vmax.f32 %v718, %v724
        %v726 = vsel %vm254, %v707, -inf
        %v727 = vmax.f32 %v719, %v726
        %v728 = vsel %vm254, %v708, -inf
        %v729 = vmax.f32 %v721, %v728
        %v730 = vsel %vm254, %v709, -inf
        %v731 = vmax.f32 %v723, %v730
        %v732 = vsel %vm254, %v710, -inf
        %v733 = vmax.f32 %v725, %v732
        %v734 = vsel %vm254, %v711, -inf
        %v735 = vmax.f32 %v727, %v734
        %v736 = vsel %vm254, %v712, -inf
        %v737 = vmax.f32 %v729, %v736
        %v738 = vsel %vm254, %v713, -inf
        %v739 = vmax.f32 %v731, %v738
        %v740 = vsel %vm254, %v714, -inf
        %v741 = vmax.f32 %v733, %v740
        %v742 = vsel %vm254, %v715, -inf
        %v743 = vmax.f32 %v735, %v742
        %v744 = vmax.f32 %v737, %v739
        %v745 = vmax.f32 %v741, %v743
        %v746 = vmax.f32 %v744, %v745
        %747 = vmax.xlane.f32.xlu0 %v746
        %v748 = vpop.xlane.xlu0 %747
        %v749 = vrot.slane %v748, 4
        %v750 = vmax.f32 %v748, %v749
        %v751 = vrot.slane %v750, 2
        %v752 = vmax.f32 %v750, %v751
        %v753 = vrot.slane %v752, 1
        %v754 = vmax.f32 %v752, %v753
        %s755 = vtos %v754
        %v756 = vsel %vm254, %v700, inf
        %v757 = vsel %vm254, %v701, inf
        %v758 = vsel %vm254, %v702, inf
        %v759 = vsel %vm254, %v703, inf
        %v760 = vsel %vm254, %v704, inf
        %v761 = vmin.f32 %v756, %v760
        %v762 = vsel %vm254, %v705, inf
        %v763 = vmin.f32 %v757, %v762
        %v764 = vsel %vm254, %v706, inf
        %v765 = vmin.f32 %v758, %v764
        %v766 = vsel %vm254, %v707, inf
        %v767 = vmin.f32 %v759, %v766
        %v768 = vsel %vm254, %v708, inf
        %v769 = vmin.f32 %v761, %v768
        %v770 = vsel %vm254, %v709, inf
        %v771 = vmin.f32 %v763, %v770
        %v772 = vsel %vm254, %v710, inf
        %v773 = vmin.f32 %v765, %v772
        %v774 = vsel %vm254, %v711, inf
        %v775 = vmin.f32 %v767, %v774
        %v776 = vsel %vm254, %v712, inf
        %v777 = vmin.f32 %v769, %v776
        %v778 = vsel %vm254, %v713, inf
        %v779 = vmin.f32 %v771, %v778
        %v780 = vsel %vm254, %v714, inf
        %v781 = vmin.f32 %v773, %v780
        %v782 = vsel %vm254, %v715, inf
        %v783 = vmin.f32 %v775, %v782
        %v784 = vmin.f32 %v777, %v779
        %v785 = vmin.f32 %v781, %v783
        %v786 = vmin.f32 %v784, %v785
        %787 = vmin.xlane.f32.xlu0 %v786
        %v788 = vpop.xlane.xlu0 %787
        %v789 = vrot.slane %v788, 4
        %v790 = vmin.f32 %v788, %v789
        %v791 = vrot.slane %v790, 2
        %v792 = vmin.f32 %v790, %v791
        %v793 = vrot.slane %v792, 1
        %v794 = vmin.f32 %v792, %v793
        %s795 = vtos %v794
        %vm796 = vcmp.ge.f32.partialorder %v683, 0.0
        %v797 = vstv %s755
        %v798 = vstv %s795
        %v799 = vsel %vm796, %v797, %v798
        %801 = vset.pattern.permute.xlu0 0
        %802 = vperm.xlu0 %801, %v700
        %v803 = vpop.permute.xlu0 %802
        %806 = vset.pattern.permute.xlu0 0
        %807 = vperm.xlu0 %806, %v701
        %v808 = vpop.permute.xlu0 %807
        %811 = vset.pattern.permute.xlu0 0
        %812 = vperm.xlu0 %811, %v702
        %v813 = vpop.permute.xlu0 %812
        %816 = vset.pattern.permute.xlu0 0
        %817 = vperm.xlu0 %816, %v703
        %v818 = vpop.permute.xlu0 %817
        %821 = vset.pattern.permute.xlu0 0
        %822 = vperm.xlu0 %821, %v704
        %v823 = vpop.permute.xlu0 %822
        %826 = vset.pattern.permute.xlu0 0
        %827 = vperm.xlu0 %826, %v705
        %v828 = vpop.permute.xlu0 %827
        %831 = vset.pattern.permute.xlu0 0
        %832 = vperm.xlu0 %831, %v706
        %v833 = vpop.permute.xlu0 %832
        %836 = vset.pattern.permute.xlu0 0
        %837 = vperm.xlu0 %836, %v707
        %v838 = vpop.permute.xlu0 %837
        %v841 = vperm.slane %v799, 0
        %v843 = vsub.f32 %v803, %v841
        %v844 = vsub.f32 %v808, %v841
        %v845 = vsub.f32 %v813, %v841
        %v846 = vsub.f32 %v818, %v841
        %v847 = vsub.f32 %v823, %v841
        %v848 = vsub.f32 %v828, %v841
        %v849 = vsub.f32 %v833, %v841
        %v850 = vsub.f32 %v838, %v841
        %v852 = vperm.slane %v683, 0
        %v854 = vmul.f32 %v852, %v843
        %v855 = vmul.f32 %v852, %v844
        %v856 = vmul.f32 %v852, %v845
        %v857 = vmul.f32 %v852, %v846
        %v858 = vmul.f32 %v852, %v847
        %v859 = vmul.f32 %v852, %v848
        %v860 = vmul.f32 %v852, %v849
        %v861 = vmul.f32 %v852, %v850
        %v862 = vmul.f32 %v854, 1.442695
        %v863 = vpow.pop %v862
        %v864 = vmul.f32 %v855, 1.442695
        %v865 = vpow.pop %v864
        %v866 = vmul.f32 %v856, 1.442695
        %v867 = vpow.pop %v866
        %v868 = vmul.f32 %v857, 1.442695
        %v869 = vpow.pop %v868
        %v870 = vmul.f32 %v858, 1.442695
        %v871 = vpow.pop %v870
        %v872 = vmul.f32 %v859, 1.442695
        %v873 = vpow.pop %v872
        %v874 = vmul.f32 %v860, 1.442695
        %v875 = vpow.pop %v874
        %v876 = vmul.f32 %v861, 1.442695
        %v877 = vpow.pop %v876
        %v878 = vadd.f32 %v863, %v865
        %v879 = vadd.f32 %v878, %v867
        %v880 = vadd.f32 %v879, %v869
        %v881 = vadd.f32 %v880, %v871
        %v882 = vadd.f32 %v881, %v873
        %v883 = vadd.f32 %v882, %v875
        %v884 = vadd.f32 %v883, %v877
        %v885 = vrot.slane %v884, 4
        %v886 = vadd.f32 %v884, %v885
        %v887 = vrot.slane %v886, 2
        %v888 = vadd.f32 %v886, %v887
        %v889 = vrot.slane %v888, 1
        %v890 = vadd.f32 %v888, %v889
        %v891 = vadd.f32 %v890, 0.0
        %893 = vset.pattern.permute.xlu0 0
        %894 = vperm.xlu0 %893, %v666
        %v895 = vpop.permute.xlu0 %894
        %898 = vset.pattern.permute.xlu0 0
        %899 = vperm.xlu0 %898, %v667
        %v900 = vpop.permute.xlu0 %899
        %903 = vset.pattern.permute.xlu0 0
        %904 = vperm.xlu0 %903, %v668
        %v905 = vpop.permute.xlu0 %904
        %908 = vset.pattern.permute.xlu0 0
        %909 = vperm.xlu0 %908, %v669
        %v910 = vpop.permute.xlu0 %909
        %913 = vset.pattern.permute.xlu0 0
        %914 = vperm.xlu0 %913, %v670
        %v915 = vpop.permute.xlu0 %914
        %918 = vset.pattern.permute.xlu0 0
        %919 = vperm.xlu0 %918, %v671
        %v920 = vpop.permute.xlu0 %919
        %923 = vset.pattern.permute.xlu0 0
        %924 = vperm.xlu0 %923, %v672
        %v925 = vpop.permute.xlu0 %924
        %928 = vset.pattern.permute.xlu0 0
        %929 = vperm.xlu0 %928, %v673
        %v930 = vpop.permute.xlu0 %929
        %v932 = vmul.f32 %v863, %v895
        %v933 = vmul.f32 %v865, %v900
        %v934 = vmul.f32 %v867, %v905
        %v935 = vmul.f32 %v869, %v910
        %v936 = vmul.f32 %v871, %v915
        %v937 = vmul.f32 %v873, %v920
        %v938 = vmul.f32 %v875, %v925
        %v939 = vmul.f32 %v877, %v930
        %v940 = vadd.f32 %v932, %v933
        %v941 = vadd.f32 %v940, %v934
        %v942 = vadd.f32 %v941, %v935
        %v943 = vadd.f32 %v942, %v936
        %v944 = vadd.f32 %v943, %v937
        %v945 = vadd.f32 %v944, %v938
        %v946 = vadd.f32 %v945, %v939
        %v947 = vrot.slane %v946, 4
        %v948 = vadd.f32 %v946, %v947
        %v949 = vrot.slane %v948, 2
        %v950 = vadd.f32 %v948, %v949
        %v951 = vrot.slane %v950, 1
        %v952 = vadd.f32 %v950, %v951
        %v953 = vadd.f32 %v952, 0.0
        %955 = vset.pattern.permute.xlu0 0
        %956 = vperm.xlu0 %955, %v708
        %v957 = vpop.permute.xlu0 %956
        %960 = vset.pattern.permute.xlu0 0
        %961 = vperm.xlu0 %960, %v709
        %v962 = vpop.permute.xlu0 %961
        %965 = vset.pattern.permute.xlu0 0
        %966 = vperm.xlu0 %965, %v710
        %v967 = vpop.permute.xlu0 %966
        %970 = vset.pattern.permute.xlu0 0
        %971 = vperm.xlu0 %970, %v711
        %v972 = vpop.permute.xlu0 %971
        %975 = vset.pattern.permute.xlu0 0
        %976 = vperm.xlu0 %975, %v712
        %v977 = vpop.permute.xlu0 %976
        %980 = vset.pattern.permute.xlu0 0
        %981 = vperm.xlu0 %980, %v713
        %v982 = vpop.permute.xlu0 %981
        %985 = vset.pattern.permute.xlu0 0
        %986 = vperm.xlu0 %985, %v714
        %v987 = vpop.permute.xlu0 %986
        %990 = vset.pattern.permute.xlu0 0
        %991 = vperm.xlu0 %990, %v715
        %v992 = vpop.permute.xlu0 %991
        %v994 = vsub.f32 %v957, %v841
        %v995 = vsub.f32 %v962, %v841
        %v996 = vsub.f32 %v967, %v841
        %v997 = vsub.f32 %v972, %v841
        %v998 = vsub.f32 %v977, %v841
        %v999 = vsub.f32 %v982, %v841
        %v1000 = vsub.f32 %v987, %v841
        %v1001 = vsub.f32 %v992, %v841
        %v1002 = vmul.f32 %v852, %v994
        %v1003 = vmul.f32 %v852, %v995
        %v1004 = vmul.f32 %v852, %v996
        %v1005 = vmul.f32 %v852, %v997
        %v1006 = vmul.f32 %v852, %v998
        %v1007 = vmul.f32 %v852, %v999
        %v1008 = vmul.f32 %v852, %v1000
        %v1009 = vmul.f32 %v852, %v1001
        %v1010 = vmul.f32 %v1002, 1.442695
        %v1011 = vpow.pop %v1010
        %v1012 = vmul.f32 %v1003, 1.442695
        %v1013 = vpow.pop %v1012
        %v1014 = vmul.f32 %v1004, 1.442695
        %v1015 = vpow.pop %v1014
        %v1016 = vmul.f32 %v1005, 1.442695
        %v1017 = vpow.pop %v1016
        %v1018 = vmul.f32 %v1006, 1.442695
        %v1019 = vpow.pop %v1018
        %v1020 = vmul.f32 %v1007, 1.442695
        %v1021 = vpow.pop %v1020
        %v1022 = vmul.f32 %v1008, 1.442695
        %v1023 = vpow.pop %v1022
        %v1024 = vmul.f32 %v1009, 1.442695
        %v1025 = vpow.pop %v1024
        %v1026 = vadd.f32 %v1011, %v1013
        %v1027 = vadd.f32 %v1026, %v1015
        %v1028 = vadd.f32 %v1027, %v1017
        %v1029 = vadd.f32 %v1028, %v1019
        %v1030 = vadd.f32 %v1029, %v1021
        %v1031 = vadd.f32 %v1030, %v1023
        %v1032 = vadd.f32 %v1031, %v1025
        %v1033 = vrot.slane %v1032, 4
        %v1034 = vadd.f32 %v1032, %v1033
        %v1035 = vrot.slane %v1034, 2
        %v1036 = vadd.f32 %v1034, %v1035
        %v1037 = vrot.slane %v1036, 1
        %v1038 = vadd.f32 %v1036, %v1037
        %v1039 = vadd.f32 %v891, %v1038
        %1041 = vset.pattern.permute.xlu0 0
        %1042 = vperm.xlu0 %1041, %v674
        %v1043 = vpop.permute.xlu0 %1042
        %1046 = vset.pattern.permute.xlu0 0
        %1047 = vperm.xlu0 %1046, %v675
        %v1048 = vpop.permute.xlu0 %1047
        %1051 = vset.pattern.permute.xlu0 0
        %1052 = vperm.xlu0 %1051, %v676
        %v1053 = vpop.permute.xlu0 %1052
        %1056 = vset.pattern.permute.xlu0 0
        %1057 = vperm.xlu0 %1056, %v677
        %v1058 = vpop.permute.xlu0 %1057
        %1061 = vset.pattern.permute.xlu0 0
        %1062 = vperm.xlu0 %1061, %v678
        %v1063 = vpop.permute.xlu0 %1062
        %1066 = vset.pattern.permute.xlu0 0
        %1067 = vperm.xlu0 %1066, %v679
        %v1068 = vpop.permute.xlu0 %1067
        %1071 = vset.pattern.permute.xlu0 0
        %1072 = vperm.xlu0 %1071, %v680
        %v1073 = vpop.permute.xlu0 %1072
        %1076 = vset.pattern.permute.xlu0 0
        %1077 = vperm.xlu0 %1076, %v681
        %v1078 = vpop.permute.xlu0 %1077
        %v1080 = vmul.f32 %v1011, %v1043
        %v1081 = vmul.f32 %v1013, %v1048
        %v1082 = vmul.f32 %v1015, %v1053
        %v1083 = vmul.f32 %v1017, %v1058
        %v1084 = vmul.f32 %v1019, %v1063
        %v1085 = vmul.f32 %v1021, %v1068
        %v1086 = vmul.f32 %v1023, %v1073
        %v1087 = vmul.f32 %v1025, %v1078
        %v1088 = vadd.f32 %v1080, %v1081
        %v1089 = vadd.f32 %v1088, %v1082
        %v1090 = vadd.f32 %v1089, %v1083
        %v1091 = vadd.f32 %v1090, %v1084
        %v1092 = vadd.f32 %v1091, %v1085
        %v1093 = vadd.f32 %v1092, %v1086
        %v1094 = vadd.f32 %v1093, %v1087
        %v1095 = vrot.slane %v1094, 4
        %v1096 = vadd.f32 %v1094, %v1095
        %v1097 = vrot.slane %v1096, 2
        %v1098 = vadd.f32 %v1096, %v1097
        %v1099 = vrot.slane %v1098, 1
        %v1100 = vadd.f32 %v1098, %v1099
        %v1101 = vadd.f32 %v953, %v1100
        %v1102 = vrcp.pop %v1039
        %v1103 = vmul.f32 %v1039, %v1102
        %v1104 = vsub.f32 2.0, %v1103
        %v1105 = vmul.f32 %v1102, %v1104
        %v1106 = vmul.f32 %v1101, %v1105
        %v1107 = vadd.f32 %v1106, %v649
        %s1108 = scalar_lea.vmem %s176, 1 [#allocation7]
        %1109 = vst [vmem:[%s1108] sm:$0x1] %v1107
        %s1110 = scalar_lea.vmem %s154, 2 [#allocation6]
        %v1111 = vld [vmem:[%s1110] sm:$0x1]
        %1112 = vxpose.xlu0.b32.start [1/16] %v1111, 128
        %1113 = vxpose.xlu0.b32.cont [2/16] 0.0, 128
        %1114 = vxpose.xlu0.b32.cont [3/16] 0.0, 128
        %1115 = vxpose.xlu0.b32.cont [4/16] 0.0, 128
        %1116 = vxpose.xlu0.b32.cont [5/16] 0.0, 128
        %1117 = vxpose.xlu0.b32.cont [6/16] 0.0, 128
        %1118 = vxpose.xlu0.b32.cont [7/16] 0.0, 128
        %1119 = vxpose.xlu0.b32.cont [8/16] 0.0, 128
        %1120 = vxpose.xlu0.b32.cont [9/16] 0.0, 128
        %1121 = vxpose.xlu0.b32.cont [10/16] 0.0, 128
        %1122 = vxpose.xlu0.b32.cont [11/16] 0.0, 128
        %1123 = vxpose.xlu0.b32.cont [12/16] 0.0, 128
        %1124 = vxpose.xlu0.b32.cont [13/16] 0.0, 128
        %1125 = vxpose.xlu0.b32.cont [14/16] 0.0, 128
        %1126 = vxpose.xlu0.b32.cont [15/16] 0.0, 128
        %1127 = vxpose.xlu0.b32.end [16/16] 0.0, 128
        %v1128 = vpop.trf.xlu0
        %v1129 = vpop.trf.xlu0
        %v1130 = vpop.trf.xlu0
        %v1131 = vpop.trf.xlu0
        %v1132 = vpop.trf.xlu0
        %v1133 = vpop.trf.xlu0
        %v1134 = vpop.trf.xlu0
        %v1135 = vpop.trf.xlu0
        %v1136 = vpop.trf.xlu0
        %v1137 = vpop.trf.xlu0
        %v1138 = vpop.trf.xlu0
        %v1139 = vpop.trf.xlu0
        %v1140 = vpop.trf.xlu0
        %v1141 = vpop.trf.xlu0
        %v1142 = vpop.trf.xlu0
        %v1143 = vpop.trf.xlu0
        %v1144 = vmul.f32 %v216, %v1111
        %v1145 = vadd.f32 %v1144, %v218
        %v1146 = vmul.f32 %v220, %v1128
        %v1147 = vmul.f32 %v220, %v1129
        %v1148 = vmul.f32 %v220, %v1130
        %v1149 = vmul.f32 %v220, %v1131
        %v1150 = vmul.f32 %v220, %v1132
        %v1151 = vmul.f32 %v220, %v1133
        %v1152 = vmul.f32 %v220, %v1134
        %v1153 = vmul.f32 %v220, %v1135
        %v1154 = vmul.f32 %v220, %v1136
        %v1155 = vmul.f32 %v220, %v1137
        %v1156 = vmul.f32 %v220, %v1138
        %v1157 = vmul.f32 %v220, %v1139
        %v1158 = vmul.f32 %v220, %v1140
        %v1159 = vmul.f32 %v220, %v1141
        %v1160 = vmul.f32 %v220, %v1142
        %v1161 = vmul.f32 %v220, %v1143
        %v1162 = vadd.f32 %v1146, %v237
        %v1163 = vadd.f32 %v1147, %v237
        %v1164 = vadd.f32 %v1148, %v237
        %v1165 = vadd.f32 %v1149, %v237
        %v1166 = vadd.f32 %v1150, %v237
        %v1167 = vadd.f32 %v1151, %v237
        %v1168 = vadd.f32 %v1152, %v237
        %v1169 = vadd.f32 %v1153, %v237
        %v1170 = vadd.f32 %v1154, %v237
        %v1171 = vadd.f32 %v1155, %v237
        %v1172 = vadd.f32 %v1156, %v237
        %v1173 = vadd.f32 %v1157, %v237
        %v1174 = vadd.f32 %v1158, %v237
        %v1175 = vadd.f32 %v1159, %v237
        %v1176 = vadd.f32 %v1160, %v237
        %v1177 = vadd.f32 %v1161, %v237
        %v1178 = vsel %vm254, %v1162, -inf
        %v1179 = vsel %vm254, %v1163, -inf
        %v1180 = vsel %vm254, %v1164, -inf
        %v1181 = vsel %vm254, %v1165, -inf
        %v1182 = vsel %vm254, %v1166, -inf
        %v1183 = vmax.f32 %v1178, %v1182
        %v1184 = vsel %vm254, %v1167, -inf
        %v1185 = vmax.f32 %v1179, %v1184
        %v1186 = vsel %vm254, %v1168, -inf
        %v1187 = vmax.f32 %v1180, %v1186
        %v1188 = vsel %vm254, %v1169, -inf
        %v1189 = vmax.f32 %v1181, %v1188
        %v1190 = vsel %vm254, %v1170, -inf
        %v1191 = vmax.f32 %v1183, %v1190
        %v1192 = vsel %vm254, %v1171, -inf
        %v1193 = vmax.f32 %v1185, %v1192
        %v1194 = vsel %vm254, %v1172, -inf
        %v1195 = vmax.f32 %v1187, %v1194
        %v1196 = vsel %vm254, %v1173, -inf
        %v1197 = vmax.f32 %v1189, %v1196
        %v1198 = vsel %vm254, %v1174, -inf
        %v1199 = vmax.f32 %v1191, %v1198
        %v1200 = vsel %vm254, %v1175, -inf
        %v1201 = vmax.f32 %v1193, %v1200
        %v1202 = vsel %vm254, %v1176, -inf
        %v1203 = vmax.f32 %v1195, %v1202
        %v1204 = vsel %vm254, %v1177, -inf
        %v1205 = vmax.f32 %v1197, %v1204
        %v1206 = vmax.f32 %v1199, %v1201
        %v1207 = vmax.f32 %v1203, %v1205
        %v1208 = vmax.f32 %v1206, %v1207
        %1209 = vmax.xlane.f32.xlu0 %v1208
        %v1210 = vpop.xlane.xlu0 %1209
        %v1211 = vrot.slane %v1210, 4
        %v1212 = vmax.f32 %v1210, %v1211
        %v1213 = vrot.slane %v1212, 2
        %v1214 = vmax.f32 %v1212, %v1213
        %v1215 = vrot.slane %v1214, 1
        %v1216 = vmax.f32 %v1214, %v1215
        %s1217 = vtos %v1216
        %v1218 = vsel %vm254, %v1162, inf
        %v1219 = vsel %vm254, %v1163, inf
        %v1220 = vsel %vm254, %v1164, inf
        %v1221 = vsel %vm254, %v1165, inf
        %v1222 = vsel %vm254, %v1166, inf
        %v1223 = vmin.f32 %v1218, %v1222
        %v1224 = vsel %vm254, %v1167, inf
        %v1225 = vmin.f32 %v1219, %v1224
        %v1226 = vsel %vm254, %v1168, inf
        %v1227 = vmin.f32 %v1220, %v1226
        %v1228 = vsel %vm254, %v1169, inf
        %v1229 = vmin.f32 %v1221, %v1228
        %v1230 = vsel %vm254, %v1170, inf
        %v1231 = vmin.f32 %v1223, %v1230
        %v1232 = vsel %vm254, %v1171, inf
        %v1233 = vmin.f32 %v1225, %v1232
        %v1234 = vsel %vm254, %v1172, inf
        %v1235 = vmin.f32 %v1227, %v1234
        %v1236 = vsel %vm254, %v1173, inf
        %v1237 = vmin.f32 %v1229, %v1236
        %v1238 = vsel %vm254, %v1174, inf
        %v1239 = vmin.f32 %v1231, %v1238
        %v1240 = vsel %vm254, %v1175, inf
        %v1241 = vmin.f32 %v1233, %v1240
        %v1242 = vsel %vm254, %v1176, inf
        %v1243 = vmin.f32 %v1235, %v1242
        %v1244 = vsel %vm254, %v1177, inf
        %v1245 = vmin.f32 %v1237, %v1244
        %v1246 = vmin.f32 %v1239, %v1241
        %v1247 = vmin.f32 %v1243, %v1245
        %v1248 = vmin.f32 %v1246, %v1247
        %1249 = vmin.xlane.f32.xlu0 %v1248
        %v1250 = vpop.xlane.xlu0 %1249
        %v1251 = vrot.slane %v1250, 4
        %v1252 = vmin.f32 %v1250, %v1251
        %v1253 = vrot.slane %v1252, 2
        %v1254 = vmin.f32 %v1252, %v1253
        %v1255 = vrot.slane %v1254, 1
        %v1256 = vmin.f32 %v1254, %v1255
        %s1257 = vtos %v1256
        %vm1258 = vcmp.ge.f32.partialorder %v1145, 0.0
        %v1259 = vstv %s1217
        %v1260 = vstv %s1257
        %v1261 = vsel %vm1258, %v1259, %v1260
        %1263 = vset.pattern.permute.xlu0 0
        %1264 = vperm.xlu0 %1263, %v1162
        %v1265 = vpop.permute.xlu0 %1264
        %1268 = vset.pattern.permute.xlu0 0
        %1269 = vperm.xlu0 %1268, %v1163
        %v1270 = vpop.permute.xlu0 %1269
        %1273 = vset.pattern.permute.xlu0 0
        %1274 = vperm.xlu0 %1273, %v1164
        %v1275 = vpop.permute.xlu0 %1274
        %1278 = vset.pattern.permute.xlu0 0
        %1279 = vperm.xlu0 %1278, %v1165
        %v1280 = vpop.permute.xlu0 %1279
        %1283 = vset.pattern.permute.xlu0 0
        %1284 = vperm.xlu0 %1283, %v1166
        %v1285 = vpop.permute.xlu0 %1284
        %1288 = vset.pattern.permute.xlu0 0
        %1289 = vperm.xlu0 %1288, %v1167
        %v1290 = vpop.permute.xlu0 %1289
        %1293 = vset.pattern.permute.xlu0 0
        %1294 = vperm.xlu0 %1293, %v1168
        %v1295 = vpop.permute.xlu0 %1294
        %1298 = vset.pattern.permute.xlu0 0
        %1299 = vperm.xlu0 %1298, %v1169
        %v1300 = vpop.permute.xlu0 %1299
        %v1303 = vperm.slane %v1261, 0
        %v1305 = vsub.f32 %v1265, %v1303
        %v1306 = vsub.f32 %v1270, %v1303
        %v1307 = vsub.f32 %v1275, %v1303
        %v1308 = vsub.f32 %v1280, %v1303
        %v1309 = vsub.f32 %v1285, %v1303
        %v1310 = vsub.f32 %v1290, %v1303
        %v1311 = vsub.f32 %v1295, %v1303
        %v1312 = vsub.f32 %v1300, %v1303
        %v1314 = vperm.slane %v1145, 0
        %v1316 = vmul.f32 %v1314, %v1305
        %v1317 = vmul.f32 %v1314, %v1306
        %v1318 = vmul.f32 %v1314, %v1307
        %v1319 = vmul.f32 %v1314, %v1308
        %v1320 = vmul.f32 %v1314, %v1309
        %v1321 = vmul.f32 %v1314, %v1310
        %v1322 = vmul.f32 %v1314, %v1311
        %v1323 = vmul.f32 %v1314, %v1312
        %v1324 = vmul.f32 %v1316, 1.442695
        %v1325 = vpow.pop %v1324
        %v1326 = vmul.f32 %v1317, 1.442695
        %v1327 = vpow.pop %v1326
        %v1328 = vmul.f32 %v1318, 1.442695
        %v1329 = vpow.pop %v1328
        %v1330 = vmul.f32 %v1319, 1.442695
        %v1331 = vpow.pop %v1330
        %v1332 = vmul.f32 %v1320, 1.442695
        %v1333 = vpow.pop %v1332
        %v1334 = vmul.f32 %v1321, 1.442695
        %v1335 = vpow.pop %v1334
        %v1336 = vmul.f32 %v1322, 1.442695
        %v1337 = vpow.pop %v1336
        %v1338 = vmul.f32 %v1323, 1.442695
        %v1339 = vpow.pop %v1338
        %v1340 = vadd.f32 %v1325, %v1327
        %v1341 = vadd.f32 %v1340, %v1329
        %v1342 = vadd.f32 %v1341, %v1331
        %v1343 = vadd.f32 %v1342, %v1333
        %v1344 = vadd.f32 %v1343, %v1335
        %v1345 = vadd.f32 %v1344, %v1337
        %v1346 = vadd.f32 %v1345, %v1339
        %v1347 = vrot.slane %v1346, 4
        %v1348 = vadd.f32 %v1346, %v1347
        %v1349 = vrot.slane %v1348, 2
        %v1350 = vadd.f32 %v1348, %v1349
        %v1351 = vrot.slane %v1350, 1
        %v1352 = vadd.f32 %v1350, %v1351
        %v1353 = vadd.f32 %v1352, 0.0
        %1355 = vset.pattern.permute.xlu0 0
        %1356 = vperm.xlu0 %1355, %v1128
        %v1357 = vpop.permute.xlu0 %1356
        %1360 = vset.pattern.permute.xlu0 0
        %1361 = vperm.xlu0 %1360, %v1129
        %v1362 = vpop.permute.xlu0 %1361
        %1365 = vset.pattern.permute.xlu0 0
        %1366 = vperm.xlu0 %1365, %v1130
        %v1367 = vpop.permute.xlu0 %1366
        %1370 = vset.pattern.permute.xlu0 0
        %1371 = vperm.xlu0 %1370, %v1131
        %v1372 = vpop.permute.xlu0 %1371
        %1375 = vset.pattern.permute.xlu0 0
        %1376 = vperm.xlu0 %1375, %v1132
        %v1377 = vpop.permute.xlu0 %1376
        %1380 = vset.pattern.permute.xlu0 0
        %1381 = vperm.xlu0 %1380, %v1133
        %v1382 = vpop.permute.xlu0 %1381
        %1385 = vset.pattern.permute.xlu0 0
        %1386 = vperm.xlu0 %1385, %v1134
        %v1387 = vpop.permute.xlu0 %1386
        %1390 = vset.pattern.permute.xlu0 0
        %1391 = vperm.xlu0 %1390, %v1135
        %v1392 = vpop.permute.xlu0 %1391
        %v1394 = vmul.f32 %v1325, %v1357
        %v1395 = vmul.f32 %v1327, %v1362
        %v1396 = vmul.f32 %v1329, %v1367
        %v1397 = vmul.f32 %v1331, %v1372
        %v1398 = vmul.f32 %v1333, %v1377
        %v1399 = vmul.f32 %v1335, %v1382
        %v1400 = vmul.f32 %v1337, %v1387
        %v1401 = vmul.f32 %v1339, %v1392
        %v1402 = vadd.f32 %v1394, %v1395
        %v1403 = vadd.f32 %v1402, %v1396
        %v1404 = vadd.f32 %v1403, %v1397
        %v1405 = vadd.f32 %v1404, %v1398
        %v1406 = vadd.f32 %v1405, %v1399
        %v1407 = vadd.f32 %v1406, %v1400
        %v1408 = vadd.f32 %v1407, %v1401
        %v1409 = vrot.slane %v1408, 4
        %v1410 = vadd.f32 %v1408, %v1409
        %v1411 = vrot.slane %v1410, 2
        %v1412 = vadd.f32 %v1410, %v1411
        %v1413 = vrot.slane %v1412, 1
        %v1414 = vadd.f32 %v1412, %v1413
        %v1415 = vadd.f32 %v1414, 0.0
        %1417 = vset.pattern.permute.xlu0 0
        %1418 = vperm.xlu0 %1417, %v1170
        %v1419 = vpop.permute.xlu0 %1418
        %1422 = vset.pattern.permute.xlu0 0
        %1423 = vperm.xlu0 %1422, %v1171
        %v1424 = vpop.permute.xlu0 %1423
        %1427 = vset.pattern.permute.xlu0 0
        %1428 = vperm.xlu0 %1427, %v1172
        %v1429 = vpop.permute.xlu0 %1428
        %1432 = vset.pattern.permute.xlu0 0
        %1433 = vperm.xlu0 %1432, %v1173
        %v1434 = vpop.permute.xlu0 %1433
        %1437 = vset.pattern.permute.xlu0 0
        %1438 = vperm.xlu0 %1437, %v1174
        %v1439 = vpop.permute.xlu0 %1438
        %1442 = vset.pattern.permute.xlu0 0
        %1443 = vperm.xlu0 %1442, %v1175
        %v1444 = vpop.permute.xlu0 %1443
        %1447 = vset.pattern.permute.xlu0 0
        %1448 = vperm.xlu0 %1447, %v1176
        %v1449 = vpop.permute.xlu0 %1448
        %1452 = vset.pattern.permute.xlu0 0
        %1453 = vperm.xlu0 %1452, %v1177
        %v1454 = vpop.permute.xlu0 %1453
        %v1456 = vsub.f32 %v1419, %v1303
        %v1457 = vsub.f32 %v1424, %v1303
        %v1458 = vsub.f32 %v1429, %v1303
        %v1459 = vsub.f32 %v1434, %v1303
        %v1460 = vsub.f32 %v1439, %v1303
        %v1461 = vsub.f32 %v1444, %v1303
        %v1462 = vsub.f32 %v1449, %v1303
        %v1463 = vsub.f32 %v1454, %v1303
        %v1464 = vmul.f32 %v1314, %v1456
        %v1465 = vmul.f32 %v1314, %v1457
        %v1466 = vmul.f32 %v1314, %v1458
        %v1467 = vmul.f32 %v1314, %v1459
        %v1468 = vmul.f32 %v1314, %v1460
        %v1469 = vmul.f32 %v1314, %v1461
        %v1470 = vmul.f32 %v1314, %v1462
        %v1471 = vmul.f32 %v1314, %v1463
        %v1472 = vmul.f32 %v1464, 1.442695
        %v1473 = vpow.pop %v1472
        %v1474 = vmul.f32 %v1465, 1.442695
        %v1475 = vpow.pop %v1474
        %v1476 = vmul.f32 %v1466, 1.442695
        %v1477 = vpow.pop %v1476
        %v1478 = vmul.f32 %v1467, 1.442695
        %v1479 = vpow.pop %v1478
        %v1480 = vmul.f32 %v1468, 1.442695
        %v1481 = vpow.pop %v1480
        %v1482 = vmul.f32 %v1469, 1.442695
        %v1483 = vpow.pop %v1482
        %v1484 = vmul.f32 %v1470, 1.442695
        %v1485 = vpow.pop %v1484
        %v1486 = vmul.f32 %v1471, 1.442695
        %v1487 = vpow.pop %v1486
        %v1488 = vadd.f32 %v1473, %v1475
        %v1489 = vadd.f32 %v1488, %v1477
        %v1490 = vadd.f32 %v1489, %v1479
        %v1491 = vadd.f32 %v1490, %v1481
        %v1492 = vadd.f32 %v1491, %v1483
        %v1493 = vadd.f32 %v1492, %v1485
        %v1494 = vadd.f32 %v1493, %v1487
        %v1495 = vrot.slane %v1494, 4
        %v1496 = vadd.f32 %v1494, %v1495
        %v1497 = vrot.slane %v1496, 2
        %v1498 = vadd.f32 %v1496, %v1497
        %v1499 = vrot.slane %v1498, 1
        %v1500 = vadd.f32 %v1498, %v1499
        %v1501 = vadd.f32 %v1353, %v1500
        %1503 = vset.pattern.permute.xlu0 0
        %1504 = vperm.xlu0 %1503, %v1136
        %v1505 = vpop.permute.xlu0 %1504
        %1508 = vset.pattern.permute.xlu0 0
        %1509 = vperm.xlu0 %1508, %v1137
        %v1510 = vpop.permute.xlu0 %1509
        %1513 = vset.pattern.permute.xlu0 0
        %1514 = vperm.xlu0 %1513, %v1138
        %v1515 = vpop.permute.xlu0 %1514
        %1518 = vset.pattern.permute.xlu0 0
        %1519 = vperm.xlu0 %1518, %v1139
        %v1520 = vpop.permute.xlu0 %1519
        %1523 = vset.pattern.permute.xlu0 0
        %1524 = vperm.xlu0 %1523, %v1140
        %v1525 = vpop.permute.xlu0 %1524
        %1528 = vset.pattern.permute.xlu0 0
        %1529 = vperm.xlu0 %1528, %v1141
        %v1530 = vpop.permute.xlu0 %1529
        %1533 = vset.pattern.permute.xlu0 0
        %1534 = vperm.xlu0 %1533, %v1142
        %v1535 = vpop.permute.xlu0 %1534
        %1538 = vset.pattern.permute.xlu0 0
        %1539 = vperm.xlu0 %1538, %v1143
        %v1540 = vpop.permute.xlu0 %1539
        %v1542 = vmul.f32 %v1473, %v1505
        %v1543 = vmul.f32 %v1475, %v1510
        %v1544 = vmul.f32 %v1477, %v1515
        %v1545 = vmul.f32 %v1479, %v1520
        %v1546 = vmul.f32 %v1481, %v1525
        %v1547 = vmul.f32 %v1483, %v1530
        %v1548 = vmul.f32 %v1485, %v1535
        %v1549 = vmul.f32 %v1487, %v1540
        %v1550 = vadd.f32 %v1542, %v1543
        %v1551 = vadd.f32 %v1550, %v1544
        %v1552 = vadd.f32 %v1551, %v1545
        %v1553 = vadd.f32 %v1552, %v1546
        %v1554 = vadd.f32 %v1553, %v1547
        %v1555 = vadd.f32 %v1554, %v1548
        %v1556 = vadd.f32 %v1555, %v1549
        %v1557 = vrot.slane %v1556, 4
        %v1558 = vadd.f32 %v1556, %v1557
        %v1559 = vrot.slane %v1558, 2
        %v1560 = vadd.f32 %v1558, %v1559
        %v1561 = vrot.slane %v1560, 1
        %v1562 = vadd.f32 %v1560, %v1561
        %v1563 = vadd.f32 %v1415, %v1562
        %v1564 = vrcp.pop %v1501
        %v1565 = vmul.f32 %v1501, %v1564
        %v1566 = vsub.f32 2.0, %v1565
        %v1567 = vmul.f32 %v1564, %v1566
        %v1568 = vmul.f32 %v1563, %v1567
        %v1569 = vadd.f32 %v1568, %v1111
        %s1570 = scalar_lea.vmem %s176, 2 [#allocation7]
        %1571 = vst [vmem:[%s1570] sm:$0x1] %v1569
        %s1572 = scalar_lea.vmem %s154, 3 [#allocation6]
        %v1573 = vld [vmem:[%s1572] sm:$0x1]
        %1574 = vxpose.xlu0.b32.start [1/16] %v1573, 128
        %1575 = vxpose.xlu0.b32.cont [2/16] 0.0, 128
        %1576 = vxpose.xlu0.b32.cont [3/16] 0.0, 128
        %1577 = vxpose.xlu0.b32.cont [4/16] 0.0, 128
        %1578 = vxpose.xlu0.b32.cont [5/16] 0.0, 128
        %1579 = vxpose.xlu0.b32.cont [6/16] 0.0, 128
        %1580 = vxpose.xlu0.b32.cont [7/16] 0.0, 128
        %1581 = vxpose.xlu0.b32.cont [8/16] 0.0, 128
        %1582 = vxpose.xlu0.b32.cont [9/16] 0.0, 128
        %1583 = vxpose.xlu0.b32.cont [10/16] 0.0, 128
        %1584 = vxpose.xlu0.b32.cont [11/16] 0.0, 128
        %1585 = vxpose.xlu0.b32.cont [12/16] 0.0, 128
        %1586 = vxpose.xlu0.b32.cont [13/16] 0.0, 128
        %1587 = vxpose.xlu0.b32.cont [14/16] 0.0, 128
        %1588 = vxpose.xlu0.b32.cont [15/16] 0.0, 128
        %1589 = vxpose.xlu0.b32.end [16/16] 0.0, 128
        %v1590 = vpop.trf.xlu0
        %v1591 = vpop.trf.xlu0
        %v1592 = vpop.trf.xlu0
        %v1593 = vpop.trf.xlu0
        %v1594 = vpop.trf.xlu0
        %v1595 = vpop.trf.xlu0
        %v1596 = vpop.trf.xlu0
        %v1597 = vpop.trf.xlu0
        %v1598 = vpop.trf.xlu0
        %v1599 = vpop.trf.xlu0
        %v1600 = vpop.trf.xlu0
        %v1601 = vpop.trf.xlu0
        %v1602 = vpop.trf.xlu0
        %v1603 = vpop.trf.xlu0
        %v1604 = vpop.trf.xlu0
        %v1605 = vpop.trf.xlu0
        %v1606 = vmul.f32 %v216, %v1573
        %v1607 = vadd.f32 %v1606, %v218
        %v1608 = vmul.f32 %v220, %v1590
        %v1609 = vmul.f32 %v220, %v1591
        %v1610 = vmul.f32 %v220, %v1592
        %v1611 = vmul.f32 %v220, %v1593
        %v1612 = vmul.f32 %v220, %v1594
        %v1613 = vmul.f32 %v220, %v1595
        %v1614 = vmul.f32 %v220, %v1596
        %v1615 = vmul.f32 %v220, %v1597
        %v1616 = vmul.f32 %v220, %v1598
        %v1617 = vmul.f32 %v220, %v1599
        %v1618 = vmul.f32 %v220, %v1600
        %v1619 = vmul.f32 %v220, %v1601
        %v1620 = vmul.f32 %v220, %v1602
        %v1621 = vmul.f32 %v220, %v1603
        %v1622 = vmul.f32 %v220, %v1604
        %v1623 = vmul.f32 %v220, %v1605
        %v1624 = vadd.f32 %v1608, %v237
        %v1625 = vadd.f32 %v1609, %v237
        %v1626 = vadd.f32 %v1610, %v237
        %v1627 = vadd.f32 %v1611, %v237
        %v1628 = vadd.f32 %v1612, %v237
        %v1629 = vadd.f32 %v1613, %v237
        %v1630 = vadd.f32 %v1614, %v237
        %v1631 = vadd.f32 %v1615, %v237
        %v1632 = vadd.f32 %v1616, %v237
        %v1633 = vadd.f32 %v1617, %v237
        %v1634 = vadd.f32 %v1618, %v237
        %v1635 = vadd.f32 %v1619, %v237
        %v1636 = vadd.f32 %v1620, %v237
        %v1637 = vadd.f32 %v1621, %v237
        %v1638 = vadd.f32 %v1622, %v237
        %v1639 = vadd.f32 %v1623, %v237
        %v1640 = vsel %vm254, %v1624, -inf
        %v1641 = vsel %vm254, %v1625, -inf
        %v1642 = vsel %vm254, %v1626, -inf
        %v1643 = vsel %vm254, %v1627, -inf
        %v1644 = vsel %vm254, %v1628, -inf
        %v1645 = vmax.f32 %v1640, %v1644
        %v1646 = vsel %vm254, %v1629, -inf
        %v1647 = vmax.f32 %v1641, %v1646
        %v1648 = vsel %vm254, %v1630, -inf
        %v1649 = vmax.f32 %v1642, %v1648
        %v1650 = vsel %vm254, %v1631, -inf
        %v1651 = vmax.f32 %v1643, %v1650
        %v1652 = vsel %vm254, %v1632, -inf
        %v1653 = vmax.f32 %v1645, %v1652
        %v1654 = vsel %vm254, %v1633, -inf
        %v1655 = vmax.f32 %v1647, %v1654
        %v1656 = vsel %vm254, %v1634, -inf
        %v1657 = vmax.f32 %v1649, %v1656
        %v1658 = vsel %vm254, %v1635, -inf
        %v1659 = vmax.f32 %v1651, %v1658
        %v1660 = vsel %vm254, %v1636, -inf
        %v1661 = vmax.f32 %v1653, %v1660
        %v1662 = vsel %vm254, %v1637, -inf
        %v1663 = vmax.f32 %v1655, %v1662
        %v1664 = vsel %vm254, %v1638, -inf
        %v1665 = vmax.f32 %v1657, %v1664
        %v1666 = vsel %vm254, %v1639, -inf
        %v1667 = vmax.f32 %v1659, %v1666
        %v1668 = vmax.f32 %v1661, %v1663
        %v1669 = vmax.f32 %v1665, %v1667
        %v1670 = vmax.f32 %v1668, %v1669
        %1671 = vmax.xlane.f32.xlu0 %v1670
        %v1672 = vpop.xlane.xlu0 %1671
        %v1673 = vrot.slane %v1672, 4
        %v1674 = vmax.f32 %v1672, %v1673
        %v1675 = vrot.slane %v1674, 2
        %v1676 = vmax.f32 %v1674, %v1675
        %v1677 = vrot.slane %v1676, 1
        %v1678 = vmax.f32 %v1676, %v1677
        %s1679 = vtos %v1678
        %v1680 = vsel %vm254, %v1624, inf
        %v1681 = vsel %vm254, %v1625, inf
        %v1682 = vsel %vm254, %v1626, inf
        %v1683 = vsel %vm254, %v1627, inf
        %v1684 = vsel %vm254, %v1628, inf
        %v1685 = vmin.f32 %v1680, %v1684
        %v1686 = vsel %vm254, %v1629, inf
        %v1687 = vmin.f32 %v1681, %v1686
        %v1688 = vsel %vm254, %v1630, inf
        %v1689 = vmin.f32 %v1682, %v1688
        %v1690 = vsel %vm254, %v1631, inf
        %v1691 = vmin.f32 %v1683, %v1690
        %v1692 = vsel %vm254, %v1632, inf
        %v1693 = vmin.f32 %v1685, %v1692
        %v1694 = vsel %vm254, %v1633, inf
        %v1695 = vmin.f32 %v1687, %v1694
        %v1696 = vsel %vm254, %v1634, inf
        %v1697 = vmin.f32 %v1689, %v1696
        %v1698 = vsel %vm254, %v1635, inf
        %v1699 = vmin.f32 %v1691, %v1698
        %v1700 = vsel %vm254, %v1636, inf
        %v1701 = vmin.f32 %v1693, %v1700
        %v1702 = vsel %vm254, %v1637, inf
        %v1703 = vmin.f32 %v1695, %v1702
        %v1704 = vsel %vm254, %v1638, inf
        %v1705 = vmin.f32 %v1697, %v1704
        %v1706 = vsel %vm254, %v1639, inf
        %v1707 = vmin.f32 %v1699, %v1706
        %v1708 = vmin.f32 %v1701, %v1703
        %v1709 = vmin.f32 %v1705, %v1707
        %v1710 = vmin.f32 %v1708, %v1709
        %1711 = vmin.xlane.f32.xlu0 %v1710
        %v1712 = vpop.xlane.xlu0 %1711
        %v1713 = vrot.slane %v1712, 4
        %v1714 = vmin.f32 %v1712, %v1713
        %v1715 = vrot.slane %v1714, 2
        %v1716 = vmin.f32 %v1714, %v1715
        %v1717 = vrot.slane %v1716, 1
        %v1718 = vmin.f32 %v1716, %v1717
        %s1719 = vtos %v1718
        %vm1720 = vcmp.ge.f32.partialorder %v1607, 0.0
        %v1721 = vstv %s1679
        %v1722 = vstv %s1719
        %v1723 = vsel %vm1720, %v1721, %v1722
        %1725 = vset.pattern.permute.xlu0 0
        %1726 = vperm.xlu0 %1725, %v1624
        %v1727 = vpop.permute.xlu0 %1726
        %1730 = vset.pattern.permute.xlu0 0
        %1731 = vperm.xlu0 %1730, %v1625
        %v1732 = vpop.permute.xlu0 %1731
        %1735 = vset.pattern.permute.xlu0 0
        %1736 = vperm.xlu0 %1735, %v1626
        %v1737 = vpop.permute.xlu0 %1736
        %1740 = vset.pattern.permute.xlu0 0
        %1741 = vperm.xlu0 %1740, %v1627
        %v1742 = vpop.permute.xlu0 %1741
        %1745 = vset.pattern.permute.xlu0 0
        %1746 = vperm.xlu0 %1745, %v1628
        %v1747 = vpop.permute.xlu0 %1746
        %1750 = vset.pattern.permute.xlu0 0
        %1751 = vperm.xlu0 %1750, %v1629
        %v1752 = vpop.permute.xlu0 %1751
        %1755 = vset.pattern.permute.xlu0 0
        %1756 = vperm.xlu0 %1755, %v1630
        %v1757 = vpop.permute.xlu0 %1756
        %1760 = vset.pattern.permute.xlu0 0
        %1761 = vperm.xlu0 %1760, %v1631
        %v1762 = vpop.permute.xlu0 %1761
        %v1765 = vperm.slane %v1723, 0
        %v1767 = vsub.f32 %v1727, %v1765
        %v1768 = vsub.f32 %v1732, %v1765
        %v1769 = vsub.f32 %v1737, %v1765
        %v1770 = vsub.f32 %v1742, %v1765
        %v1771 = vsub.f32 %v1747, %v1765
        %v1772 = vsub.f32 %v1752, %v1765
        %v1773 = vsub.f32 %v1757, %v1765
        %v1774 = vsub.f32 %v1762, %v1765
        %v1776 = vperm.slane %v1607, 0
        %v1778 = vmul.f32 %v1776, %v1767
        %v1779 = vmul.f32 %v1776, %v1768
        %v1780 = vmul.f32 %v1776, %v1769
        %v1781 = vmul.f32 %v1776, %v1770
        %v1782 = vmul.f32 %v1776, %v1771
        %v1783 = vmul.f32 %v1776, %v1772
        %v1784 = vmul.f32 %v1776, %v1773
        %v1785 = vmul.f32 %v1776, %v1774
        %v1786 = vmul.f32 %v1778, 1.442695
        %v1787 = vpow.pop %v1786
        %v1788 = vmul.f32 %v1779, 1.442695
        %v1789 = vpow.pop %v1788
        %v1790 = vmul.f32 %v1780, 1.442695
        %v1791 = vpow.pop %v1790
        %v1792 = vmul.f32 %v1781, 1.442695
        %v1793 = vpow.pop %v1792
        %v1794 = vmul.f32 %v1782, 1.442695
        %v1795 = vpow.pop %v1794
        %v1796 = vmul.f32 %v1783, 1.442695
        %v1797 = vpow.pop %v1796
        %v1798 = vmul.f32 %v1784, 1.442695
        %v1799 = vpow.pop %v1798
        %v1800 = vmul.f32 %v1785, 1.442695
        %v1801 = vpow.pop %v1800
        %v1802 = vadd.f32 %v1787, %v1789
        %v1803 = vadd.f32 %v1802, %v1791
        %v1804 = vadd.f32 %v1803, %v1793
        %v1805 = vadd.f32 %v1804, %v1795
        %v1806 = vadd.f32 %v1805, %v1797
        %v1807 = vadd.f32 %v1806, %v1799
        %v1808 = vadd.f32 %v1807, %v1801
        %v1809 = vrot.slane %v1808, 4
        %v1810 = vadd.f32 %v1808, %v1809
        %v1811 = vrot.slane %v1810, 2
        %v1812 = vadd.f32 %v1810, %v1811
        %v1813 = vrot.slane %v1812, 1
        %v1814 = vadd.f32 %v1812, %v1813
        %v1815 = vadd.f32 %v1814, 0.0
        %1817 = vset.pattern.permute.xlu0 0
        %1818 = vperm.xlu0 %1817, %v1590
        %v1819 = vpop.permute.xlu0 %1818
        %1822 = vset.pattern.permute.xlu0 0
        %1823 = vperm.xlu0 %1822, %v1591
        %v1824 = vpop.permute.xlu0 %1823
        %1827 = vset.pattern.permute.xlu0 0
        %1828 = vperm.xlu0 %1827, %v1592
        %v1829 = vpop.permute.xlu0 %1828
        %1832 = vset.pattern.permute.xlu0 0
        %1833 = vperm.xlu0 %1832, %v1593
        %v1834 = vpop.permute.xlu0 %1833
        %1837 = vset.pattern.permute.xlu0 0
        %1838 = vperm.xlu0 %1837, %v1594
        %v1839 = vpop.permute.xlu0 %1838
        %1842 = vset.pattern.permute.xlu0 0
        %1843 = vperm.xlu0 %1842, %v1595
        %v1844 = vpop.permute.xlu0 %1843
        %1847 = vset.pattern.permute.xlu0 0
        %1848 = vperm.xlu0 %1847, %v1596
        %v1849 = vpop.permute.xlu0 %1848
        %1852 = vset.pattern.permute.xlu0 0
        %1853 = vperm.xlu0 %1852, %v1597
        %v1854 = vpop.permute.xlu0 %1853
        %v1856 = vmul.f32 %v1787, %v1819
        %v1857 = vmul.f32 %v1789, %v1824
        %v1858 = vmul.f32 %v1791, %v1829
        %v1859 = vmul.f32 %v1793, %v1834
        %v1860 = vmul.f32 %v1795, %v1839
        %v1861 = vmul.f32 %v1797, %v1844
        %v1862 = vmul.f32 %v1799, %v1849
        %v1863 = vmul.f32 %v1801, %v1854
        %v1864 = vadd.f32 %v1856, %v1857
        %v1865 = vadd.f32 %v1864, %v1858
        %v1866 = vadd.f32 %v1865, %v1859
        %v1867 = vadd.f32 %v1866, %v1860
        %v1868 = vadd.f32 %v1867, %v1861
        %v1869 = vadd.f32 %v1868, %v1862
        %v1870 = vadd.f32 %v1869, %v1863
        %v1871 = vrot.slane %v1870, 4
        %v1872 = vadd.f32 %v1870, %v1871
        %v1873 = vrot.slane %v1872, 2
        %v1874 = vadd.f32 %v1872, %v1873
        %v1875 = vrot.slane %v1874, 1
        %v1876 = vadd.f32 %v1874, %v1875
        %v1877 = vadd.f32 %v1876, 0.0
        %1879 = vset.pattern.permute.xlu0 0
        %1880 = vperm.xlu0 %1879, %v1632
        %v1881 = vpop.permute.xlu0 %1880
        %1884 = vset.pattern.permute.xlu0 0
        %1885 = vperm.xlu0 %1884, %v1633
        %v1886 = vpop.permute.xlu0 %1885
        %1889 = vset.pattern.permute.xlu0 0
        %1890 = vperm.xlu0 %1889, %v1634
        %v1891 = vpop.permute.xlu0 %1890
        %1894 = vset.pattern.permute.xlu0 0
        %1895 = vperm.xlu0 %1894, %v1635
        %v1896 = vpop.permute.xlu0 %1895
        %1899 = vset.pattern.permute.xlu0 0
        %1900 = vperm.xlu0 %1899, %v1636
        %v1901 = vpop.permute.xlu0 %1900
        %1904 = vset.pattern.permute.xlu0 0
        %1905 = vperm.xlu0 %1904, %v1637
        %v1906 = vpop.permute.xlu0 %1905
        %1909 = vset.pattern.permute.xlu0 0
        %1910 = vperm.xlu0 %1909, %v1638
        %v1911 = vpop.permute.xlu0 %1910
        %1914 = vset.pattern.permute.xlu0 0
        %1915 = vperm.xlu0 %1914, %v1639
        %v1916 = vpop.permute.xlu0 %1915
        %v1918 = vsub.f32 %v1881, %v1765
        %v1919 = vsub.f32 %v1886, %v1765
        %v1920 = vsub.f32 %v1891, %v1765
        %v1921 = vsub.f32 %v1896, %v1765
        %v1922 = vsub.f32 %v1901, %v1765
        %v1923 = vsub.f32 %v1906, %v1765
        %v1924 = vsub.f32 %v1911, %v1765
        %v1925 = vsub.f32 %v1916, %v1765
        %v1926 = vmul.f32 %v1776, %v1918
        %v1927 = vmul.f32 %v1776, %v1919
        %v1928 = vmul.f32 %v1776, %v1920
        %v1929 = vmul.f32 %v1776, %v1921
        %v1930 = vmul.f32 %v1776, %v1922
        %v1931 = vmul.f32 %v1776, %v1923
        %v1932 = vmul.f32 %v1776, %v1924
        %v1933 = vmul.f32 %v1776, %v1925
        %v1934 = vmul.f32 %v1926, 1.442695
        %v1935 = vpow.pop %v1934
        %v1936 = vmul.f32 %v1927, 1.442695
        %v1937 = vpow.pop %v1936
        %v1938 = vmul.f32 %v1928, 1.442695
        %v1939 = vpow.pop %v1938
        %v1940 = vmul.f32 %v1929, 1.442695
        %v1941 = vpow.pop %v1940
        %v1942 = vmul.f32 %v1930, 1.442695
        %v1943 = vpow.pop %v1942
        %v1944 = vmul.f32 %v1931, 1.442695
        %v1945 = vpow.pop %v1944
        %v1946 = vmul.f32 %v1932, 1.442695
        %v1947 = vpow.pop %v1946
        %v1948 = vmul.f32 %v1933, 1.442695
        %v1949 = vpow.pop %v1948
        %v1950 = vadd.f32 %v1935, %v1937
        %v1951 = vadd.f32 %v1950, %v1939
        %v1952 = vadd.f32 %v1951, %v1941
        %v1953 = vadd.f32 %v1952, %v1943
        %v1954 = vadd.f32 %v1953, %v1945
        %v1955 = vadd.f32 %v1954, %v1947
        %v1956 = vadd.f32 %v1955, %v1949
        %v1957 = vrot.slane %v1956, 4
        %v1958 = vadd.f32 %v1956, %v1957
        %v1959 = vrot.slane %v1958, 2
        %v1960 = vadd.f32 %v1958, %v1959
        %v1961 = vrot.slane %v1960, 1
        %v1962 = vadd.f32 %v1960, %v1961
        %v1963 = vadd.f32 %v1815, %v1962
        %1965 = vset.pattern.permute.xlu0 0
        %1966 = vperm.xlu0 %1965, %v1598
        %v1967 = vpop.permute.xlu0 %1966
        %1970 = vset.pattern.permute.xlu0 0
        %1971 = vperm.xlu0 %1970, %v1599
        %v1972 = vpop.permute.xlu0 %1971
        %1975 = vset.pattern.permute.xlu0 0
        %1976 = vperm.xlu0 %1975, %v1600
        %v1977 = vpop.permute.xlu0 %1976
        %1980 = vset.pattern.permute.xlu0 0
        %1981 = vperm.xlu0 %1980, %v1601
        %v1982 = vpop.permute.xlu0 %1981
        %1985 = vset.pattern.permute.xlu0 0
        %1986 = vperm.xlu0 %1985, %v1602
        %v1987 = vpop.permute.xlu0 %1986
        %1990 = vset.pattern.permute.xlu0 0
        %1991 = vperm.xlu0 %1990, %v1603
        %v1992 = vpop.permute.xlu0 %1991
        %1995 = vset.pattern.permute.xlu0 0
        %1996 = vperm.xlu0 %1995, %v1604
        %v1997 = vpop.permute.xlu0 %1996
        %2000 = vset.pattern.permute.xlu0 0
        %2001 = vperm.xlu0 %2000, %v1605
        %v2002 = vpop.permute.xlu0 %2001
        %v2004 = vmul.f32 %v1935, %v1967
        %v2005 = vmul.f32 %v1937, %v1972
        %v2006 = vmul.f32 %v1939, %v1977
        %v2007 = vmul.f32 %v1941, %v1982
        %v2008 = vmul.f32 %v1943, %v1987
        %v2009 = vmul.f32 %v1945, %v1992
        %v2010 = vmul.f32 %v1947, %v1997
        %v2011 = vmul.f32 %v1949, %v2002
        %v2012 = vadd.f32 %v2004, %v2005
        %v2013 = vadd.f32 %v2012, %v2006
        %v2014 = vadd.f32 %v2013, %v2007
        %v2015 = vadd.f32 %v2014, %v2008
        %v2016 = vadd.f32 %v2015, %v2009
        %v2017 = vadd.f32 %v2016, %v2010
        %v2018 = vadd.f32 %v2017, %v2011
        %v2019 = vrot.slane %v2018, 4
        %v2020 = vadd.f32 %v2018, %v2019
        %v2021 = vrot.slane %v2020, 2
        %v2022 = vadd.f32 %v2020, %v2021
        %v2023 = vrot.slane %v2022, 1
        %v2024 = vadd.f32 %v2022, %v2023
        %v2025 = vadd.f32 %v1877, %v2024
        %v2026 = vrcp.pop %v1963
        %v2027 = vmul.f32 %v1963, %v2026
        %v2028 = vsub.f32 2.0, %v2027
        %v2029 = vmul.f32 %v2026, %v2028
        %v2030 = vmul.f32 %v2025, %v2029
        %v2031 = vadd.f32 %v2030, %v1573
        %s2032 = scalar_lea.vmem %s176, 3 [#allocation7]
        %2033 = vst [vmem:[%s2032] sm:$0x1] %v2031
        %s2034 = scalar_lea.vmem %s154, 4 [#allocation6]
        %v2035 = vld [vmem:[%s2034] sm:$0x1]
        %2036 = vxpose.xlu0.b32.start [1/16] %v2035, 128
        %2037 = vxpose.xlu0.b32.cont [2/16] 0.0, 128
        %2038 = vxpose.xlu0.b32.cont [3/16] 0.0, 128
        %2039 = vxpose.xlu0.b32.cont [4/16] 0.0, 128
        %2040 = vxpose.xlu0.b32.cont [5/16] 0.0, 128
        %2041 = vxpose.xlu0.b32.cont [6/16] 0.0, 128
        %2042 = vxpose.xlu0.b32.cont [7/16] 0.0, 128
        %2043 = vxpose.xlu0.b32.cont [8/16] 0.0, 128
        %2044 = vxpose.xlu0.b32.cont [9/16] 0.0, 128
        %2045 = vxpose.xlu0.b32.cont [10/16] 0.0, 128
        %2046 = vxpose.xlu0.b32.cont [11/16] 0.0, 128
        %2047 = vxpose.xlu0.b32.cont [12/16] 0.0, 128
        %2048 = vxpose.xlu0.b32.cont [13/16] 0.0, 128
        %2049 = vxpose.xlu0.b32.cont [14/16] 0.0, 128
        %2050 = vxpose.xlu0.b32.cont [15/16] 0.0, 128
        %2051 = vxpose.xlu0.b32.end [16/16] 0.0, 128
        %v2052 = vpop.trf.xlu0
        %v2053 = vpop.trf.xlu0
        %v2054 = vpop.trf.xlu0
        %v2055 = vpop.trf.xlu0
        %v2056 = vpop.trf.xlu0
        %v2057 = vpop.trf.xlu0
        %v2058 = vpop.trf.xlu0
        %v2059 = vpop.trf.xlu0
        %v2060 = vpop.trf.xlu0
        %v2061 = vpop.trf.xlu0
        %v2062 = vpop.trf.xlu0
        %v2063 = vpop.trf.xlu0
        %v2064 = vpop.trf.xlu0
        %v2065 = vpop.trf.xlu0
        %v2066 = vpop.trf.xlu0
        %v2067 = vpop.trf.xlu0
        %v2068 = vmul.f32 %v216, %v2035
        %v2069 = vadd.f32 %v2068, %v218
        %v2070 = vmul.f32 %v220, %v2052
        %v2071 = vmul.f32 %v220, %v2053
        %v2072 = vmul.f32 %v220, %v2054
        %v2073 = vmul.f32 %v220, %v2055
        %v2074 = vmul.f32 %v220, %v2056
        %v2075 = vmul.f32 %v220, %v2057
        %v2076 = vmul.f32 %v220, %v2058
        %v2077 = vmul.f32 %v220, %v2059
        %v2078 = vmul.f32 %v220, %v2060
        %v2079 = vmul.f32 %v220, %v2061
        %v2080 = vmul.f32 %v220, %v2062
        %v2081 = vmul.f32 %v220, %v2063
        %v2082 = vmul.f32 %v220, %v2064
        %v2083 = vmul.f32 %v220, %v2065
        %v2084 = vmul.f32 %v220, %v2066
        %v2085 = vmul.f32 %v220, %v2067
        %v2086 = vadd.f32 %v2070, %v237
        %v2087 = vadd.f32 %v2071, %v237
        %v2088 = vadd.f32 %v2072, %v237
        %v2089 = vadd.f32 %v2073, %v237
        %v2090 = vadd.f32 %v2074, %v237
        %v2091 = vadd.f32 %v2075, %v237
        %v2092 = vadd.f32 %v2076, %v237
        %v2093 = vadd.f32 %v2077, %v237
        %v2094 = vadd.f32 %v2078, %v237
        %v2095 = vadd.f32 %v2079, %v237
        %v2096 = vadd.f32 %v2080, %v237
        %v2097 = vadd.f32 %v2081, %v237
        %v2098 = vadd.f32 %v2082, %v237
        %v2099 = vadd.f32 %v2083, %v237
        %v2100 = vadd.f32 %v2084, %v237
        %v2101 = vadd.f32 %v2085, %v237
        %v2102 = vsel %vm254, %v2086, -inf
        %v2103 = vsel %vm254, %v2087, -inf
        %v2104 = vsel %vm254, %v2088, -inf
        %v2105 = vsel %vm254, %v2089, -inf
        %v2106 = vsel %vm254, %v2090, -inf
        %v2107 = vmax.f32 %v2102, %v2106
        %v2108 = vsel %vm254, %v2091, -inf
        %v2109 = vmax.f32 %v2103, %v2108
        %v2110 = vsel %vm254, %v2092, -inf
        %v2111 = vmax.f32 %v2104, %v2110
        %v2112 = vsel %vm254, %v2093, -inf
        %v2113 = vmax.f32 %v2105, %v2112
        %v2114 = vsel %vm254, %v2094, -inf
        %v2115 = vmax.f32 %v2107, %v2114
        %v2116 = vsel %vm254, %v2095, -inf
        %v2117 = vmax.f32 %v2109, %v2116
        %v2118 = vsel %vm254, %v2096, -inf
        %v2119 = vmax.f32 %v2111, %v2118
        %v2120 = vsel %vm254, %v2097, -inf
        %v2121 = vmax.f32 %v2113, %v2120
        %v2122 = vsel %vm254, %v2098, -inf
        %v2123 = vmax.f32 %v2115, %v2122
        %v2124 = vsel %vm254, %v2099, -inf
        %v2125 = vmax.f32 %v2117, %v2124
        %v2126 = vsel %vm254, %v2100, -inf
        %v2127 = vmax.f32 %v2119, %v2126
        %v2128 = vsel %vm254, %v2101, -inf
        %v2129 = vmax.f32 %v2121, %v2128
        %v2130 = vmax.f32 %v2123, %v2125
        %v2131 = vmax.f32 %v2127, %v2129
        %v2132 = vmax.f32 %v2130, %v2131
        %2133 = vmax.xlane.f32.xlu0 %v2132
        %v2134 = vpop.xlane.xlu0 %2133
        %v2135 = vrot.slane %v2134, 4
        %v2136 = vmax.f32 %v2134, %v2135
        %v2137 = vrot.slane %v2136, 2
        %v2138 = vmax.f32 %v2136, %v2137
        %v2139 = vrot.slane %v2138, 1
        %v2140 = vmax.f32 %v2138, %v2139
        %s2141 = vtos %v2140
        %v2142 = vsel %vm254, %v2086, inf
        %v2143 = vsel %vm254, %v2087, inf
        %v2144 = vsel %vm254, %v2088, inf
        %v2145 = vsel %vm254, %v2089, inf
        %v2146 = vsel %vm254, %v2090, inf
        %v2147 = vmin.f32 %v2142, %v2146
        %v2148 = vsel %vm254, %v2091, inf
        %v2149 = vmin.f32 %v2143, %v2148
        %v2150 = vsel %vm254, %v2092, inf
        %v2151 = vmin.f32 %v2144, %v2150
        %v2152 = vsel %vm254, %v2093, inf
        %v2153 = vmin.f32 %v2145, %v2152
        %v2154 = vsel %vm254, %v2094, inf
        %v2155 = vmin.f32 %v2147, %v2154
        %v2156 = vsel %vm254, %v2095, inf
        %v2157 = vmin.f32 %v2149, %v2156
        %v2158 = vsel %vm254, %v2096, inf
        %v2159 = vmin.f32 %v2151, %v2158
        %v2160 = vsel %vm254, %v2097, inf
        %v2161 = vmin.f32 %v2153, %v2160
        %v2162 = vsel %vm254, %v2098, inf
        %v2163 = vmin.f32 %v2155, %v2162
        %v2164 = vsel %vm254, %v2099, inf
        %v2165 = vmin.f32 %v2157, %v2164
        %v2166 = vsel %vm254, %v2100, inf
        %v2167 = vmin.f32 %v2159, %v2166
        %v2168 = vsel %vm254, %v2101, inf
        %v2169 = vmin.f32 %v2161, %v2168
        %v2170 = vmin.f32 %v2163, %v2165
        %v2171 = vmin.f32 %v2167, %v2169
        %v2172 = vmin.f32 %v2170, %v2171
        %2173 = vmin.xlane.f32.xlu0 %v2172
        %v2174 = vpop.xlane.xlu0 %2173
        %v2175 = vrot.slane %v2174, 4
        %v2176 = vmin.f32 %v2174, %v2175
        %v2177 = vrot.slane %v2176, 2
        %v2178 = vmin.f32 %v2176, %v2177
        %v2179 = vrot.slane %v2178, 1
        %v2180 = vmin.f32 %v2178, %v2179
        %s2181 = vtos %v2180
        %vm2182 = vcmp.ge.f32.partialorder %v2069, 0.0
        %v2183 = vstv %s2141
        %v2184 = vstv %s2181
        %v2185 = vsel %vm2182, %v2183, %v2184
        %2187 = vset.pattern.permute.xlu0 0
        %2188 = vperm.xlu0 %2187, %v2086
        %v2189 = vpop.permute.xlu0 %2188
        %2192 = vset.pattern.permute.xlu0 0
        %2193 = vperm.xlu0 %2192, %v2087
        %v2194 = vpop.permute.xlu0 %2193
        %2197 = vset.pattern.permute.xlu0 0
        %2198 = vperm.xlu0 %2197, %v2088
        %v2199 = vpop.permute.xlu0 %2198
        %2202 = vset.pattern.permute.xlu0 0
        %2203 = vperm.xlu0 %2202, %v2089
        %v2204 = vpop.permute.xlu0 %2203
        %2207 = vset.pattern.permute.xlu0 0
        %2208 = vperm.xlu0 %2207, %v2090
        %v2209 = vpop.permute.xlu0 %2208
        %2212 = vset.pattern.permute.xlu0 0
        %2213 = vperm.xlu0 %2212, %v2091
        %v2214 = vpop.permute.xlu0 %2213
        %2217 = vset.pattern.permute.xlu0 0
        %2218 = vperm.xlu0 %2217, %v2092
        %v2219 = vpop.permute.xlu0 %2218
        %2222 = vset.pattern.permute.xlu0 0
        %2223 = vperm.xlu0 %2222, %v2093
        %v2224 = vpop.permute.xlu0 %2223
        %v2227 = vperm.slane %v2185, 0
        %v2229 = vsub.f32 %v2189, %v2227
        %v2230 = vsub.f32 %v2194, %v2227
        %v2231 = vsub.f32 %v2199, %v2227
        %v2232 = vsub.f32 %v2204, %v2227
        %v2233 = vsub.f32 %v2209, %v2227
        %v2234 = vsub.f32 %v2214, %v2227
        %v2235 = vsub.f32 %v2219, %v2227
        %v2236 = vsub.f32 %v2224, %v2227
        %v2238 = vperm.slane %v2069, 0
        %v2240 = vmul.f32 %v2238, %v2229
        %v2241 = vmul.f32 %v2238, %v2230
        %v2242 = vmul.f32 %v2238, %v2231
        %v2243 = vmul.f32 %v2238, %v2232
        %v2244 = vmul.f32 %v2238, %v2233
        %v2245 = vmul.f32 %v2238, %v2234
        %v2246 = vmul.f32 %v2238, %v2235
        %v2247 = vmul.f32 %v2238, %v2236
        %v2248 = vmul.f32 %v2240, 1.442695
        %v2249 = vpow.pop %v2248
        %v2250 = vmul.f32 %v2241, 1.442695
        %v2251 = vpow.pop %v2250
        %v2252 = vmul.f32 %v2242, 1.442695
        %v2253 = vpow.pop %v2252
        %v2254 = vmul.f32 %v2243, 1.442695
        %v2255 = vpow.pop %v2254
        %v2256 = vmul.f32 %v2244, 1.442695
        %v2257 = vpow.pop %v2256
        %v2258 = vmul.f32 %v2245, 1.442695
        %v2259 = vpow.pop %v2258
        %v2260 = vmul.f32 %v2246, 1.442695
        %v2261 = vpow.pop %v2260
        %v2262 = vmul.f32 %v2247, 1.442695
        %v2263 = vpow.pop %v2262
        %v2264 = vadd.f32 %v2249, %v2251
        %v2265 = vadd.f32 %v2264, %v2253
        %v2266 = vadd.f32 %v2265, %v2255
        %v2267 = vadd.f32 %v2266, %v2257
        %v2268 = vadd.f32 %v2267, %v2259
        %v2269 = vadd.f32 %v2268, %v2261
        %v2270 = vadd.f32 %v2269, %v2263
        %v2271 = vrot.slane %v2270, 4
        %v2272 = vadd.f32 %v2270, %v2271
        %v2273 = vrot.slane %v2272, 2
        %v2274 = vadd.f32 %v2272, %v2273
        %v2275 = vrot.slane %v2274, 1
        %v2276 = vadd.f32 %v2274, %v2275
        %v2277 = vadd.f32 %v2276, 0.0
        %2279 = vset.pattern.permute.xlu0 0
        %2280 = vperm.xlu0 %2279, %v2052
        %v2281 = vpop.permute.xlu0 %2280
        %2284 = vset.pattern.permute.xlu0 0
        %2285 = vperm.xlu0 %2284, %v2053
        %v2286 = vpop.permute.xlu0 %2285
        %2289 = vset.pattern.permute.xlu0 0
        %2290 = vperm.xlu0 %2289, %v2054
        %v2291 = vpop.permute.xlu0 %2290
        %2294 = vset.pattern.permute.xlu0 0
        %2295 = vperm.xlu0 %2294, %v2055
        %v2296 = vpop.permute.xlu0 %2295
        %2299 = vset.pattern.permute.xlu0 0
        %2300 = vperm.xlu0 %2299, %v2056
        %v2301 = vpop.permute.xlu0 %2300
        %2304 = vset.pattern.permute.xlu0 0
        %2305 = vperm.xlu0 %2304, %v2057
        %v2306 = vpop.permute.xlu0 %2305
        %2309 = vset.pattern.permute.xlu0 0
        %2310 = vperm.xlu0 %2309, %v2058
        %v2311 = vpop.permute.xlu0 %2310
        %2314 = vset.pattern.permute.xlu0 0
        %2315 = vperm.xlu0 %2314, %v2059
        %v2316 = vpop.permute.xlu0 %2315
        %v2318 = vmul.f32 %v2249, %v2281
        %v2319 = vmul.f32 %v2251, %v2286
        %v2320 = vmul.f32 %v2253, %v2291
        %v2321 = vmul.f32 %v2255, %v2296
        %v2322 = vmul.f32 %v2257, %v2301
        %v2323 = vmul.f32 %v2259, %v2306
        %v2324 = vmul.f32 %v2261, %v2311
        %v2325 = vmul.f32 %v2263, %v2316
        %v2326 = vadd.f32 %v2318, %v2319
        %v2327 = vadd.f32 %v2326, %v2320
        %v2328 = vadd.f32 %v2327, %v2321
        %v2329 = vadd.f32 %v2328, %v2322
        %v2330 = vadd.f32 %v2329, %v2323
        %v2331 = vadd.f32 %v2330, %v2324
        %v2332 = vadd.f32 %v2331, %v2325
        %v2333 = vrot.slane %v2332, 4
        %v2334 = vadd.f32 %v2332, %v2333
        %v2335 = vrot.slane %v2334, 2
        %v2336 = vadd.f32 %v2334, %v2335
        %v2337 = vrot.slane %v2336, 1
        %v2338 = vadd.f32 %v2336, %v2337
        %v2339 = vadd.f32 %v2338, 0.0
        %2341 = vset.pattern.permute.xlu0 0
        %2342 = vperm.xlu0 %2341, %v2094
        %v2343 = vpop.permute.xlu0 %2342
        %2346 = vset.pattern.permute.xlu0 0
        %2347 = vperm.xlu0 %2346, %v2095
        %v2348 = vpop.permute.xlu0 %2347
        %2351 = vset.pattern.permute.xlu0 0
        %2352 = vperm.xlu0 %2351, %v2096
        %v2353 = vpop.permute.xlu0 %2352
        %2356 = vset.pattern.permute.xlu0 0
        %2357 = vperm.xlu0 %2356, %v2097
        %v2358 = vpop.permute.xlu0 %2357
        %2361 = vset.pattern.permute.xlu0 0
        %2362 = vperm.xlu0 %2361, %v2098
        %v2363 = vpop.permute.xlu0 %2362
        %2366 = vset.pattern.permute.xlu0 0
        %2367 = vperm.xlu0 %2366, %v2099
        %v2368 = vpop.permute.xlu0 %2367
        %2371 = vset.pattern.permute.xlu0 0
        %2372 = vperm.xlu0 %2371, %v2100
        %v2373 = vpop.permute.xlu0 %2372
        %2376 = vset.pattern.permute.xlu0 0
        %2377 = vperm.xlu0 %2376, %v2101
        %v2378 = vpop.permute.xlu0 %2377
        %v2380 = vsub.f32 %v2343, %v2227
        %v2381 = vsub.f32 %v2348, %v2227
        %v2382 = vsub.f32 %v2353, %v2227
        %v2383 = vsub.f32 %v2358, %v2227
        %v2384 = vsub.f32 %v2363, %v2227
        %v2385 = vsub.f32 %v2368, %v2227
        %v2386 = vsub.f32 %v2373, %v2227
        %v2387 = vsub.f32 %v2378, %v2227
        %v2388 = vmul.f32 %v2238, %v2380
        %v2389 = vmul.f32 %v2238, %v2381
        %v2390 = vmul.f32 %v2238, %v2382
        %v2391 = vmul.f32 %v2238, %v2383
        %v2392 = vmul.f32 %v2238, %v2384
        %v2393 = vmul.f32 %v2238, %v2385
        %v2394 = vmul.f32 %v2238, %v2386
        %v2395 = vmul.f32 %v2238, %v2387
        %v2396 = vmul.f32 %v2388, 1.442695
        %v2397 = vpow.pop %v2396
        %v2398 = vmul.f32 %v2389, 1.442695
        %v2399 = vpow.pop %v2398
        %v2400 = vmul.f32 %v2390, 1.442695
        %v2401 = vpow.pop %v2400
        %v2402 = vmul.f32 %v2391, 1.442695
        %v2403 = vpow.pop %v2402
        %v2404 = vmul.f32 %v2392, 1.442695
        %v2405 = vpow.pop %v2404
        %v2406 = vmul.f32 %v2393, 1.442695
        %v2407 = vpow.pop %v2406
        %v2408 = vmul.f32 %v2394, 1.442695
        %v2409 = vpow.pop %v2408
        %v2410 = vmul.f32 %v2395, 1.442695
        %v2411 = vpow.pop %v2410
        %v2412 = vadd.f32 %v2397, %v2399
        %v2413 = vadd.f32 %v2412, %v2401
        %v2414 = vadd.f32 %v2413, %v2403
        %v2415 = vadd.f32 %v2414, %v2405
        %v2416 = vadd.f32 %v2415, %v2407
        %v2417 = vadd.f32 %v2416, %v2409
        %v2418 = vadd.f32 %v2417, %v2411
        %v2419 = vrot.slane %v2418, 4
        %v2420 = vadd.f32 %v2418, %v2419
        %v2421 = vrot.slane %v2420, 2
        %v2422 = vadd.f32 %v2420, %v2421
        %v2423 = vrot.slane %v2422, 1
        %v2424 = vadd.f32 %v2422, %v2423
        %v2425 = vadd.f32 %v2277, %v2424
        %2427 = vset.pattern.permute.xlu0 0
        %2428 = vperm.xlu0 %2427, %v2060
        %v2429 = vpop.permute.xlu0 %2428
        %2432 = vset.pattern.permute.xlu0 0
        %2433 = vperm.xlu0 %2432, %v2061
        %v2434 = vpop.permute.xlu0 %2433
        %2437 = vset.pattern.permute.xlu0 0
        %2438 = vperm.xlu0 %2437, %v2062
        %v2439 = vpop.permute.xlu0 %2438
        %2442 = vset.pattern.permute.xlu0 0
        %2443 = vperm.xlu0 %2442, %v2063
        %v2444 = vpop.permute.xlu0 %2443
        %2447 = vset.pattern.permute.xlu0 0
        %2448 = vperm.xlu0 %2447, %v2064
        %v2449 = vpop.permute.xlu0 %2448
        %2452 = vset.pattern.permute.xlu0 0
        %2453 = vperm.xlu0 %2452, %v2065
        %v2454 = vpop.permute.xlu0 %2453
        %2457 = vset.pattern.permute.xlu0 0
        %2458 = vperm.xlu0 %2457, %v2066
        %v2459 = vpop.permute.xlu0 %2458
        %2462 = vset.pattern.permute.xlu0 0
        %2463 = vperm.xlu0 %2462, %v2067
        %v2464 = vpop.permute.xlu0 %2463
        %v2466 = vmul.f32 %v2397, %v2429
        %v2467 = vmul.f32 %v2399, %v2434
        %v2468 = vmul.f32 %v2401, %v2439
        %v2469 = vmul.f32 %v2403, %v2444
        %v2470 = vmul.f32 %v2405, %v2449
        %v2471 = vmul.f32 %v2407, %v2454
        %v2472 = vmul.f32 %v2409, %v2459
        %v2473 = vmul.f32 %v2411, %v2464
        %v2474 = vadd.f32 %v2466, %v2467
        %v2475 = vadd.f32 %v2474, %v2468
        %v2476 = vadd.f32 %v2475, %v2469
        %v2477 = vadd.f32 %v2476, %v2470
        %v2478 = vadd.f32 %v2477, %v2471
        %v2479 = vadd.f32 %v2478, %v2472
        %v2480 = vadd.f32 %v2479, %v2473
        %v2481 = vrot.slane %v2480, 4
        %v2482 = vadd.f32 %v2480, %v2481
        %v2483 = vrot.slane %v2482, 2
        %v2484 = vadd.f32 %v2482, %v2483
        %v2485 = vrot.slane %v2484, 1
        %v2486 = vadd.f32 %v2484, %v2485
        %v2487 = vadd.f32 %v2339, %v2486
        %v2488 = vrcp.pop %v2425
        %v2489 = vmul.f32 %v2425, %v2488
        %v2490 = vsub.f32 2.0, %v2489
        %v2491 = vmul.f32 %v2488, %v2490
        %v2492 = vmul.f32 %v2487, %v2491
        %v2493 = vadd.f32 %v2492, %v2035
        %s2494 = scalar_lea.vmem %s176, 4 [#allocation7]
        %2495 = vst [vmem:[%s2494] sm:$0x1] %v2493
        %s2496 = scalar_lea.vmem %s154, 5 [#allocation6]
        %v2497 = vld [vmem:[%s2496] sm:$0x1]
        %2498 = vxpose.xlu0.b32.start [1/16] %v2497, 128
        %2499 = vxpose.xlu0.b32.cont [2/16] 0.0, 128
        %2500 = vxpose.xlu0.b32.cont [3/16] 0.0, 128
        %2501 = vxpose.xlu0.b32.cont [4/16] 0.0, 128
        %2502 = vxpose.xlu0.b32.cont [5/16] 0.0, 128
        %2503 = vxpose.xlu0.b32.cont [6/16] 0.0, 128
        %2504 = vxpose.xlu0.b32.cont [7/16] 0.0, 128
        %2505 = vxpose.xlu0.b32.cont [8/16] 0.0, 128
        %2506 = vxpose.xlu0.b32.cont [9/16] 0.0, 128
        %2507 = vxpose.xlu0.b32.cont [10/16] 0.0, 128
        %2508 = vxpose.xlu0.b32.cont [11/16] 0.0, 128
        %2509 = vxpose.xlu0.b32.cont [12/16] 0.0, 128
        %2510 = vxpose.xlu0.b32.cont [13/16] 0.0, 128
        %2511 = vxpose.xlu0.b32.cont [14/16] 0.0, 128
        %2512 = vxpose.xlu0.b32.cont [15/16] 0.0, 128
        %2513 = vxpose.xlu0.b32.end [16/16] 0.0, 128
        %v2514 = vpop.trf.xlu0
        %v2515 = vpop.trf.xlu0
        %v2516 = vpop.trf.xlu0
        %v2517 = vpop.trf.xlu0
        %v2518 = vpop.trf.xlu0
        %v2519 = vpop.trf.xlu0
        %v2520 = vpop.trf.xlu0
        %v2521 = vpop.trf.xlu0
        %v2522 = vpop.trf.xlu0
        %v2523 = vpop.trf.xlu0
        %v2524 = vpop.trf.xlu0
        %v2525 = vpop.trf.xlu0
        %v2526 = vpop.trf.xlu0
        %v2527 = vpop.trf.xlu0
        %v2528 = vpop.trf.xlu0
        %v2529 = vpop.trf.xlu0
        %v2530 = vmul.f32 %v216, %v2497
        %v2531 = vadd.f32 %v2530, %v218
        %v2532 = vmul.f32 %v220, %v2514
        %v2533 = vmul.f32 %v220, %v2515
        %v2534 = vmul.f32 %v220, %v2516
        %v2535 = vmul.f32 %v220, %v2517
        %v2536 = vmul.f32 %v220, %v2518
        %v2537 = vmul.f32 %v220, %v2519
        %v2538 = vmul.f32 %v220, %v2520
        %v2539 = vmul.f32 %v220, %v2521
        %v2540 = vmul.f32 %v220, %v2522
        %v2541 = vmul.f32 %v220, %v2523
        %v2542 = vmul.f32 %v220, %v2524
        %v2543 = vmul.f32 %v220, %v2525
        %v2544 = vmul.f32 %v220, %v2526
        %v2545 = vmul.f32 %v220, %v2527
        %v2546 = vmul.f32 %v220, %v2528
        %v2547 = vmul.f32 %v220, %v2529
        %v2548 = vadd.f32 %v2532, %v237
        %v2549 = vadd.f32 %v2533, %v237
        %v2550 = vadd.f32 %v2534, %v237
        %v2551 = vadd.f32 %v2535, %v237
        %v2552 = vadd.f32 %v2536, %v237
        %v2553 = vadd.f32 %v2537, %v237
        %v2554 = vadd.f32 %v2538, %v237
        %v2555 = vadd.f32 %v2539, %v237
        %v2556 = vadd.f32 %v2540, %v237
        %v2557 = vadd.f32 %v2541, %v237
        %v2558 = vadd.f32 %v2542, %v237
        %v2559 = vadd.f32 %v2543, %v237
        %v2560 = vadd.f32 %v2544, %v237
        %v2561 = vadd.f32 %v2545, %v237
        %v2562 = vadd.f32 %v2546, %v237
        %v2563 = vadd.f32 %v2547, %v237
        %v2564 = vsel %vm254, %v2548, -inf
        %v2565 = vsel %vm254, %v2549, -inf
        %v2566 = vsel %vm254, %v2550, -inf
        %v2567 = vsel %vm254, %v2551, -inf
        %v2568 = vsel %vm254, %v2552, -inf
        %v2569 = vmax.f32 %v2564, %v2568
        %v2570 = vsel %vm254, %v2553, -inf
        %v2571 = vmax.f32 %v2565, %v2570
        %v2572 = vsel %vm254, %v2554, -inf
        %v2573 = vmax.f32 %v2566, %v2572
        %v2574 = vsel %vm254, %v2555, -inf
        %v2575 = vmax.f32 %v2567, %v2574
        %v2576 = vsel %vm254, %v2556, -inf
        %v2577 = vmax.f32 %v2569, %v2576
        %v2578 = vsel %vm254, %v2557, -inf
        %v2579 = vmax.f32 %v2571, %v2578
        %v2580 = vsel %vm254, %v2558, -inf
        %v2581 = vmax.f32 %v2573, %v2580
        %v2582 = vsel %vm254, %v2559, -inf
        %v2583 = vmax.f32 %v2575, %v2582
        %v2584 = vsel %vm254, %v2560, -inf
        %v2585 = vmax.f32 %v2577, %v2584
        %v2586 = vsel %vm254, %v2561, -inf
        %v2587 = vmax.f32 %v2579, %v2586
        %v2588 = vsel %vm254, %v2562, -inf
        %v2589 = vmax.f32 %v2581, %v2588
        %v2590 = vsel %vm254, %v2563, -inf
        %v2591 = vmax.f32 %v2583, %v2590
        %v2592 = vmax.f32 %v2585, %v2587
        %v2593 = vmax.f32 %v2589, %v2591
        %v2594 = vmax.f32 %v2592, %v2593
        %2595 = vmax.xlane.f32.xlu0 %v2594
        %v2596 = vpop.xlane.xlu0 %2595
        %v2597 = vrot.slane %v2596, 4
        %v2598 = vmax.f32 %v2596, %v2597
        %v2599 = vrot.slane %v2598, 2
        %v2600 = vmax.f32 %v2598, %v2599
        %v2601 = vrot.slane %v2600, 1
        %v2602 = vmax.f32 %v2600, %v2601
        %s2603 = vtos %v2602
        %v2604 = vsel %vm254, %v2548, inf
        %v2605 = vsel %vm254, %v2549, inf
        %v2606 = vsel %vm254, %v2550, inf
        %v2607 = vsel %vm254, %v2551, inf
        %v2608 = vsel %vm254, %v2552, inf
        %v2609 = vmin.f32 %v2604, %v2608
        %v2610 = vsel %vm254, %v2553, inf
        %v2611 = vmin.f32 %v2605, %v2610
        %v2612 = vsel %vm254, %v2554, inf
        %v2613 = vmin.f32 %v2606, %v2612
        %v2614 = vsel %vm254, %v2555, inf
        %v2615 = vmin.f32 %v2607, %v2614
        %v2616 = vsel %vm254, %v2556, inf
        %v2617 = vmin.f32 %v2609, %v2616
        %v2618 = vsel %vm254, %v2557, inf
        %v2619 = vmin.f32 %v2611, %v2618
        %v2620 = vsel %vm254, %v2558, inf
        %v2621 = vmin.f32 %v2613, %v2620
        %v2622 = vsel %vm254, %v2559, inf
        %v2623 = vmin.f32 %v2615, %v2622
        %v2624 = vsel %vm254, %v2560, inf
        %v2625 = vmin.f32 %v2617, %v2624
        %v2626 = vsel %vm254, %v2561, inf
        %v2627 = vmin.f32 %v2619, %v2626
        %v2628 = vsel %vm254, %v2562, inf
        %v2629 = vmin.f32 %v2621, %v2628
        %v2630 = vsel %vm254, %v2563, inf
        %v2631 = vmin.f32 %v2623, %v2630
        %v2632 = vmin.f32 %v2625, %v2627
        %v2633 = vmin.f32 %v2629, %v2631
        %v2634 = vmin.f32 %v2632, %v2633
        %2635 = vmin.xlane.f32.xlu0 %v2634
        %v2636 = vpop.xlane.xlu0 %2635
        %v2637 = vrot.slane %v2636, 4
        %v2638 = vmin.f32 %v2636, %v2637
        %v2639 = vrot.slane %v2638, 2
        %v2640 = vmin.f32 %v2638, %v2639
        %v2641 = vrot.slane %v2640, 1
        %v2642 = vmin.f32 %v2640, %v2641
        %s2643 = vtos %v2642
        %vm2644 = vcmp.ge.f32.partialorder %v2531, 0.0
        %v2645 = vstv %s2603
        %v2646 = vstv %s2643
        %v2647 = vsel %vm2644, %v2645, %v2646
        %2649 = vset.pattern.permute.xlu0 0
        %2650 = vperm.xlu0 %2649, %v2548
        %v2651 = vpop.permute.xlu0 %2650
        %2654 = vset.pattern.permute.xlu0 0
        %2655 = vperm.xlu0 %2654, %v2549
        %v2656 = vpop.permute.xlu0 %2655
        %2659 = vset.pattern.permute.xlu0 0
        %2660 = vperm.xlu0 %2659, %v2550
        %v2661 = vpop.permute.xlu0 %2660
        %2664 = vset.pattern.permute.xlu0 0
        %2665 = vperm.xlu0 %2664, %v2551
        %v2666 = vpop.permute.xlu0 %2665
        %2669 = vset.pattern.permute.xlu0 0
        %2670 = vperm.xlu0 %2669, %v2552
        %v2671 = vpop.permute.xlu0 %2670
        %2674 = vset.pattern.permute.xlu0 0
        %2675 = vperm.xlu0 %2674, %v2553
        %v2676 = vpop.permute.xlu0 %2675
        %2679 = vset.pattern.permute.xlu0 0
        %2680 = vperm.xlu0 %2679, %v2554
        %v2681 = vpop.permute.xlu0 %2680
        %2684 = vset.pattern.permute.xlu0 0
        %2685 = vperm.xlu0 %2684, %v2555
        %v2686 = vpop.permute.xlu0 %2685
        %v2689 = vperm.slane %v2647, 0
        %v2691 = vsub.f32 %v2651, %v2689
        %v2692 = vsub.f32 %v2656, %v2689
        %v2693 = vsub.f32 %v2661, %v2689
        %v2694 = vsub.f32 %v2666, %v2689
        %v2695 = vsub.f32 %v2671, %v2689
        %v2696 = vsub.f32 %v2676, %v2689
        %v2697 = vsub.f32 %v2681, %v2689
        %v2698 = vsub.f32 %v2686, %v2689
        %v2700 = vperm.slane %v2531, 0
        %v2702 = vmul.f32 %v2700, %v2691
        %v2703 = vmul.f32 %v2700, %v2692
        %v2704 = vmul.f32 %v2700, %v2693
        %v2705 = vmul.f32 %v2700, %v2694
        %v2706 = vmul.f32 %v2700, %v2695
        %v2707 = vmul.f32 %v2700, %v2696
        %v2708 = vmul.f32 %v2700, %v2697
        %v2709 = vmul.f32 %v2700, %v2698
        %v2710 = vmul.f32 %v2702, 1.442695
        %v2711 = vpow.pop %v2710
        %v2712 = vmul.f32 %v2703, 1.442695
        %v2713 = vpow.pop %v2712
        %v2714 = vmul.f32 %v2704, 1.442695
        %v2715 = vpow.pop %v2714
        %v2716 = vmul.f32 %v2705, 1.442695
        %v2717 = vpow.pop %v2716
        %v2718 = vmul.f32 %v2706, 1.442695
        %v2719 = vpow.pop %v2718
        %v2720 = vmul.f32 %v2707, 1.442695
        %v2721 = vpow.pop %v2720
        %v2722 = vmul.f32 %v2708, 1.442695
        %v2723 = vpow.pop %v2722
        %v2724 = vmul.f32 %v2709, 1.442695
        %v2725 = vpow.pop %v2724
        %v2726 = vadd.f32 %v2711, %v2713
        %v2727 = vadd.f32 %v2726, %v2715
        %v2728 = vadd.f32 %v2727, %v2717
        %v2729 = vadd.f32 %v2728, %v2719
        %v2730 = vadd.f32 %v2729, %v2721
        %v2731 = vadd.f32 %v2730, %v2723
        %v2732 = vadd.f32 %v2731, %v2725
        %v2733 = vrot.slane %v2732, 4
        %v2734 = vadd.f32 %v2732, %v2733
        %v2735 = vrot.slane %v2734, 2
        %v2736 = vadd.f32 %v2734, %v2735
        %v2737 = vrot.slane %v2736, 1
        %v2738 = vadd.f32 %v2736, %v2737
        %v2739 = vadd.f32 %v2738, 0.0
        %2741 = vset.pattern.permute.xlu0 0
        %2742 = vperm.xlu0 %2741, %v2514
        %v2743 = vpop.permute.xlu0 %2742
        %2746 = vset.pattern.permute.xlu0 0
        %2747 = vperm.xlu0 %2746, %v2515
        %v2748 = vpop.permute.xlu0 %2747
        %2751 = vset.pattern.permute.xlu0 0
        %2752 = vperm.xlu0 %2751, %v2516
        %v2753 = vpop.permute.xlu0 %2752
        %2756 = vset.pattern.permute.xlu0 0
        %2757 = vperm.xlu0 %2756, %v2517
        %v2758 = vpop.permute.xlu0 %2757
        %2761 = vset.pattern.permute.xlu0 0
        %2762 = vperm.xlu0 %2761, %v2518
        %v2763 = vpop.permute.xlu0 %2762
        %2766 = vset.pattern.permute.xlu0 0
        %2767 = vperm.xlu0 %2766, %v2519
        %v2768 = vpop.permute.xlu0 %2767
        %2771 = vset.pattern.permute.xlu0 0
        %2772 = vperm.xlu0 %2771, %v2520
        %v2773 = vpop.permute.xlu0 %2772
        %2776 = vset.pattern.permute.xlu0 0
        %2777 = vperm.xlu0 %2776, %v2521
        %v2778 = vpop.permute.xlu0 %2777
        %v2780 = vmul.f32 %v2711, %v2743
        %v2781 = vmul.f32 %v2713, %v2748
        %v2782 = vmul.f32 %v2715, %v2753
        %v2783 = vmul.f32 %v2717, %v2758
        %v2784 = vmul.f32 %v2719, %v2763
        %v2785 = vmul.f32 %v2721, %v2768
        %v2786 = vmul.f32 %v2723, %v2773
        %v2787 = vmul.f32 %v2725, %v2778
        %v2788 = vadd.f32 %v2780, %v2781
        %v2789 = vadd.f32 %v2788, %v2782
        %v2790 = vadd.f32 %v2789, %v2783
        %v2791 = vadd.f32 %v2790, %v2784
        %v2792 = vadd.f32 %v2791, %v2785
        %v2793 = vadd.f32 %v2792, %v2786
        %v2794 = vadd.f32 %v2793, %v2787
        %v2795 = vrot.slane %v2794, 4
        %v2796 = vadd.f32 %v2794, %v2795
        %v2797 = vrot.slane %v2796, 2
        %v2798 = vadd.f32 %v2796, %v2797
        %v2799 = vrot.slane %v2798, 1
        %v2800 = vadd.f32 %v2798, %v2799
        %v2801 = vadd.f32 %v2800, 0.0
        %2803 = vset.pattern.permute.xlu0 0
        %2804 = vperm.xlu0 %2803, %v2556
        %v2805 = vpop.permute.xlu0 %2804
        %2808 = vset.pattern.permute.xlu0 0
        %2809 = vperm.xlu0 %2808, %v2557
        %v2810 = vpop.permute.xlu0 %2809
        %2813 = vset.pattern.permute.xlu0 0
        %2814 = vperm.xlu0 %2813, %v2558
        %v2815 = vpop.permute.xlu0 %2814
        %2818 = vset.pattern.permute.xlu0 0
        %2819 = vperm.xlu0 %2818, %v2559
        %v2820 = vpop.permute.xlu0 %2819
        %2823 = vset.pattern.permute.xlu0 0
        %2824 = vperm.xlu0 %2823, %v2560
        %v2825 = vpop.permute.xlu0 %2824
        %2828 = vset.pattern.permute.xlu0 0
        %2829 = vperm.xlu0 %2828, %v2561
        %v2830 = vpop.permute.xlu0 %2829
        %2833 = vset.pattern.permute.xlu0 0
        %2834 = vperm.xlu0 %2833, %v2562
        %v2835 = vpop.permute.xlu0 %2834
        %2838 = vset.pattern.permute.xlu0 0
        %2839 = vperm.xlu0 %2838, %v2563
        %v2840 = vpop.permute.xlu0 %2839
        %v2842 = vsub.f32 %v2805, %v2689
        %v2843 = vsub.f32 %v2810, %v2689
        %v2844 = vsub.f32 %v2815, %v2689
        %v2845 = vsub.f32 %v2820, %v2689
        %v2846 = vsub.f32 %v2825, %v2689
        %v2847 = vsub.f32 %v2830, %v2689
        %v2848 = vsub.f32 %v2835, %v2689
        %v2849 = vsub.f32 %v2840, %v2689
        %v2850 = vmul.f32 %v2700, %v2842
        %v2851 = vmul.f32 %v2700, %v2843
        %v2852 = vmul.f32 %v2700, %v2844
        %v2853 = vmul.f32 %v2700, %v2845
        %v2854 = vmul.f32 %v2700, %v2846
        %v2855 = vmul.f32 %v2700, %v2847
        %v2856 = vmul.f32 %v2700, %v2848
        %v2857 = vmul.f32 %v2700, %v2849
        %v2858 = vmul.f32 %v2850, 1.442695
        %v2859 = vpow.pop %v2858
        %v2860 = vmul.f32 %v2851, 1.442695
        %v2861 = vpow.pop %v2860
        %v2862 = vmul.f32 %v2852, 1.442695
        %v2863 = vpow.pop %v2862
        %v2864 = vmul.f32 %v2853, 1.442695
        %v2865 = vpow.pop %v2864
        %v2866 = vmul.f32 %v2854, 1.442695
        %v2867 = vpow.pop %v2866
        %v2868 = vmul.f32 %v2855, 1.442695
        %v2869 = vpow.pop %v2868
        %v2870 = vmul.f32 %v2856, 1.442695
        %v2871 = vpow.pop %v2870
        %v2872 = vmul.f32 %v2857, 1.442695
        %v2873 = vpow.pop %v2872
        %v2874 = vadd.f32 %v2859, %v2861
        %v2875 = vadd.f32 %v2874, %v2863
        %v2876 = vadd.f32 %v2875, %v2865
        %v2877 = vadd.f32 %v2876, %v2867
        %v2878 = vadd.f32 %v2877, %v2869
        %v2879 = vadd.f32 %v2878, %v2871
        %v2880 = vadd.f32 %v2879, %v2873
        %v2881 = vrot.slane %v2880, 4
        %v2882 = vadd.f32 %v2880, %v2881
        %v2883 = vrot.slane %v2882, 2
        %v2884 = vadd.f32 %v2882, %v2883
        %v2885 = vrot.slane %v2884, 1
        %v2886 = vadd.f32 %v2884, %v2885
        %v2887 = vadd.f32 %v2739, %v2886
        %2889 = vset.pattern.permute.xlu0 0
        %2890 = vperm.xlu0 %2889, %v2522
        %v2891 = vpop.permute.xlu0 %2890
        %2894 = vset.pattern.permute.xlu0 0
        %2895 = vperm.xlu0 %2894, %v2523
        %v2896 = vpop.permute.xlu0 %2895
        %2899 = vset.pattern.permute.xlu0 0
        %2900 = vperm.xlu0 %2899, %v2524
        %v2901 = vpop.permute.xlu0 %2900
        %2904 = vset.pattern.permute.xlu0 0
        %2905 = vperm.xlu0 %2904, %v2525
        %v2906 = vpop.permute.xlu0 %2905
        %2909 = vset.pattern.permute.xlu0 0
        %2910 = vperm.xlu0 %2909, %v2526
        %v2911 = vpop.permute.xlu0 %2910
        %2914 = vset.pattern.permute.xlu0 0
        %2915 = vperm.xlu0 %2914, %v2527
        %v2916 = vpop.permute.xlu0 %2915
        %2919 = vset.pattern.permute.xlu0 0
        %2920 = vperm.xlu0 %2919, %v2528
        %v2921 = vpop.permute.xlu0 %2920
        %2924 = vset.pattern.permute.xlu0 0
        %2925 = vperm.xlu0 %2924, %v2529
        %v2926 = vpop.permute.xlu0 %2925
        %v2928 = vmul.f32 %v2859, %v2891
        %v2929 = vmul.f32 %v2861, %v2896
        %v2930 = vmul.f32 %v2863, %v2901
        %v2931 = vmul.f32 %v2865, %v2906
        %v2932 = vmul.f32 %v2867, %v2911
        %v2933 = vmul.f32 %v2869, %v2916
        %v2934 = vmul.f32 %v2871, %v2921
        %v2935 = vmul.f32 %v2873, %v2926
        %v2936 = vadd.f32 %v2928, %v2929
        %v2937 = vadd.f32 %v2936, %v2930
        %v2938 = vadd.f32 %v2937, %v2931
        %v2939 = vadd.f32 %v2938, %v2932
        %v2940 = vadd.f32 %v2939, %v2933
        %v2941 = vadd.f32 %v2940, %v2934
        %v2942 = vadd.f32 %v2941, %v2935
        %v2943 = vrot.slane %v2942, 4
        %v2944 = vadd.f32 %v2942, %v2943
        %v2945 = vrot.slane %v2944, 2
        %v2946 = vadd.f32 %v2944, %v2945
        %v2947 = vrot.slane %v2946, 1
        %v2948 = vadd.f32 %v2946, %v2947
        %v2949 = vadd.f32 %v2801, %v2948
        %v2950 = vrcp.pop %v2887
        %v2951 = vmul.f32 %v2887, %v2950
        %v2952 = vsub.f32 2.0, %v2951
        %v2953 = vmul.f32 %v2950, %v2952
        %v2954 = vmul.f32 %v2949, %v2953
        %v2955 = vadd.f32 %v2954, %v2497
        %s2956 = scalar_lea.vmem %s176, 5 [#allocation7]
        %2957 = vst [vmem:[%s2956] sm:$0x1] %v2955
        %s2958 = scalar_lea.vmem %s154, 6 [#allocation6]
        %v2959 = vld [vmem:[%s2958] sm:$0x1]
        %2960 = vxpose.xlu0.b32.start [1/16] %v2959, 128
        %2961 = vxpose.xlu0.b32.cont [2/16] 0.0, 128
        %2962 = vxpose.xlu0.b32.cont [3/16] 0.0, 128
        %2963 = vxpose.xlu0.b32.cont [4/16] 0.0, 128
        %2964 = vxpose.xlu0.b32.cont [5/16] 0.0, 128
        %2965 = vxpose.xlu0.b32.cont [6/16] 0.0, 128
        %2966 = vxpose.xlu0.b32.cont [7/16] 0.0, 128
        %2967 = vxpose.xlu0.b32.cont [8/16] 0.0, 128
        %2968 = vxpose.xlu0.b32.cont [9/16] 0.0, 128
        %2969 = vxpose.xlu0.b32.cont [10/16] 0.0, 128
        %2970 = vxpose.xlu0.b32.cont [11/16] 0.0, 128
        %2971 = vxpose.xlu0.b32.cont [12/16] 0.0, 128
        %2972 = vxpose.xlu0.b32.cont [13/16] 0.0, 128
        %2973 = vxpose.xlu0.b32.cont [14/16] 0.0, 128
        %2974 = vxpose.xlu0.b32.cont [15/16] 0.0, 128
        %2975 = vxpose.xlu0.b32.end [16/16] 0.0, 128
        %v2976 = vpop.trf.xlu0
        %v2977 = vpop.trf.xlu0
        %v2978 = vpop.trf.xlu0
        %v2979 = vpop.trf.xlu0
        %v2980 = vpop.trf.xlu0
        %v2981 = vpop.trf.xlu0
        %v2982 = vpop.trf.xlu0
        %v2983 = vpop.trf.xlu0
        %v2984 = vpop.trf.xlu0
        %v2985 = vpop.trf.xlu0
        %v2986 = vpop.trf.xlu0
        %v2987 = vpop.trf.xlu0
        %v2988 = vpop.trf.xlu0
        %v2989 = vpop.trf.xlu0
        %v2990 = vpop.trf.xlu0
        %v2991 = vpop.trf.xlu0
        %v2992 = vmul.f32 %v216, %v2959
        %v2993 = vadd.f32 %v2992, %v218
        %v2994 = vmul.f32 %v220, %v2976
        %v2995 = vmul.f32 %v220, %v2977
        %v2996 = vmul.f32 %v220, %v2978
        %v2997 = vmul.f32 %v220, %v2979
        %v2998 = vmul.f32 %v220, %v2980
        %v2999 = vmul.f32 %v220, %v2981
        %v3000 = vmul.f32 %v220, %v2982
        %v3001 = vmul.f32 %v220, %v2983
        %v3002 = vmul.f32 %v220, %v2984
        %v3003 = vmul.f32 %v220, %v2985
        %v3004 = vmul.f32 %v220, %v2986
        %v3005 = vmul.f32 %v220, %v2987
        %v3006 = vmul.f32 %v220, %v2988
        %v3007 = vmul.f32 %v220, %v2989
        %v3008 = vmul.f32 %v220, %v2990
        %v3009 = vmul.f32 %v220, %v2991
        %v3010 = vadd.f32 %v2994, %v237
        %v3011 = vadd.f32 %v2995, %v237
        %v3012 = vadd.f32 %v2996, %v237
        %v3013 = vadd.f32 %v2997, %v237
        %v3014 = vadd.f32 %v2998, %v237
        %v3015 = vadd.f32 %v2999, %v237
        %v3016 = vadd.f32 %v3000, %v237
        %v3017 = vadd.f32 %v3001, %v237
        %v3018 = vadd.f32 %v3002, %v237
        %v3019 = vadd.f32 %v3003, %v237
        %v3020 = vadd.f32 %v3004, %v237
        %v3021 = vadd.f32 %v3005, %v237
        %v3022 = vadd.f32 %v3006, %v237
        %v3023 = vadd.f32 %v3007, %v237
        %v3024 = vadd.f32 %v3008, %v237
        %v3025 = vadd.f32 %v3009, %v237
        %v3026 = vsel %vm254, %v3010, -inf
        %v3027 = vsel %vm254, %v3011, -inf
        %v3028 = vsel %vm254, %v3012, -inf
        %v3029 = vsel %vm254, %v3013, -inf
        %v3030 = vsel %vm254, %v3014, -inf
        %v3031 = vmax.f32 %v3026, %v3030
        %v3032 = vsel %vm254, %v3015, -inf
        %v3033 = vmax.f32 %v3027, %v3032
        %v3034 = vsel %vm254, %v3016, -inf
        %v3035 = vmax.f32 %v3028, %v3034
        %v3036 = vsel %vm254, %v3017, -inf
        %v3037 = vmax.f32 %v3029, %v3036
        %v3038 = vsel %vm254, %v3018, -inf
        %v3039 = vmax.f32 %v3031, %v3038
        %v3040 = vsel %vm254, %v3019, -inf
        %v3041 = vmax.f32 %v3033, %v3040
        %v3042 = vsel %vm254, %v3020, -inf
        %v3043 = vmax.f32 %v3035, %v3042
        %v3044 = vsel %vm254, %v3021, -inf
        %v3045 = vmax.f32 %v3037, %v3044
        %v3046 = vsel %vm254, %v3022, -inf
        %v3047 = vmax.f32 %v3039, %v3046
        %v3048 = vsel %vm254, %v3023, -inf
        %v3049 = vmax.f32 %v3041, %v3048
        %v3050 = vsel %vm254, %v3024, -inf
        %v3051 = vmax.f32 %v3043, %v3050
        %v3052 = vsel %vm254, %v3025, -inf
        %v3053 = vmax.f32 %v3045, %v3052
        %v3054 = vmax.f32 %v3047, %v3049
        %v3055 = vmax.f32 %v3051, %v3053
        %v3056 = vmax.f32 %v3054, %v3055
        %3057 = vmax.xlane.f32.xlu0 %v3056
        %v3058 = vpop.xlane.xlu0 %3057
        %v3059 = vrot.slane %v3058, 4
        %v3060 = vmax.f32 %v3058, %v3059
        %v3061 = vrot.slane %v3060, 2
        %v3062 = vmax.f32 %v3060, %v3061
        %v3063 = vrot.slane %v3062, 1
        %v3064 = vmax.f32 %v3062, %v3063
        %s3065 = vtos %v3064
        %v3066 = vsel %vm254, %v3010, inf
        %v3067 = vsel %vm254, %v3011, inf
        %v3068 = vsel %vm254, %v3012, inf
        %v3069 = vsel %vm254, %v3013, inf
        %v3070 = vsel %vm254, %v3014, inf
        %v3071 = vmin.f32 %v3066, %v3070
        %v3072 = vsel %vm254, %v3015, inf
        %v3073 = vmin.f32 %v3067, %v3072
        %v3074 = vsel %vm254, %v3016, inf
        %v3075 = vmin.f32 %v3068, %v3074
        %v3076 = vsel %vm254, %v3017, inf
        %v3077 = vmin.f32 %v3069, %v3076
        %v3078 = vsel %vm254, %v3018, inf
        %v3079 = vmin.f32 %v3071, %v3078
        %v3080 = vsel %vm254, %v3019, inf
        %v3081 = vmin.f32 %v3073, %v3080
        %v3082 = vsel %vm254, %v3020, inf
        %v3083 = vmin.f32 %v3075, %v3082
        %v3084 = vsel %vm254, %v3021, inf
        %v3085 = vmin.f32 %v3077, %v3084
        %v3086 = vsel %vm254, %v3022, inf
        %v3087 = vmin.f32 %v3079, %v3086
        %v3088 = vsel %vm254, %v3023, inf
        %v3089 = vmin.f32 %v3081, %v3088
        %v3090 = vsel %vm254, %v3024, inf
        %v3091 = vmin.f32 %v3083, %v3090
        %v3092 = vsel %vm254, %v3025, inf
        %v3093 = vmin.f32 %v3085, %v3092
        %v3094 = vmin.f32 %v3087, %v3089
        %v3095 = vmin.f32 %v3091, %v3093
        %v3096 = vmin.f32 %v3094, %v3095
        %3097 = vmin.xlane.f32.xlu0 %v3096
        %v3098 = vpop.xlane.xlu0 %3097
        %v3099 = vrot.slane %v3098, 4
        %v3100 = vmin.f32 %v3098, %v3099
        %v3101 = vrot.slane %v3100, 2
        %v3102 = vmin.f32 %v3100, %v3101
        %v3103 = vrot.slane %v3102, 1
        %v3104 = vmin.f32 %v3102, %v3103
        %s3105 = vtos %v3104
        %vm3106 = vcmp.ge.f32.partialorder %v2993, 0.0
        %v3107 = vstv %s3065
        %v3108 = vstv %s3105
        %v3109 = vsel %vm3106, %v3107, %v3108
        %3111 = vset.pattern.permute.xlu0 0
        %3112 = vperm.xlu0 %3111, %v3010
        %v3113 = vpop.permute.xlu0 %3112
        %3116 = vset.pattern.permute.xlu0 0
        %3117 = vperm.xlu0 %3116, %v3011
        %v3118 = vpop.permute.xlu0 %3117
        %3121 = vset.pattern.permute.xlu0 0
        %3122 = vperm.xlu0 %3121, %v3012
        %v3123 = vpop.permute.xlu0 %3122
        %3126 = vset.pattern.permute.xlu0 0
        %3127 = vperm.xlu0 %3126, %v3013
        %v3128 = vpop.permute.xlu0 %3127
        %3131 = vset.pattern.permute.xlu0 0
        %3132 = vperm.xlu0 %3131, %v3014
        %v3133 = vpop.permute.xlu0 %3132
        %3136 = vset.pattern.permute.xlu0 0
        %3137 = vperm.xlu0 %3136, %v3015
        %v3138 = vpop.permute.xlu0 %3137
        %3141 = vset.pattern.permute.xlu0 0
        %3142 = vperm.xlu0 %3141, %v3016
        %v3143 = vpop.permute.xlu0 %3142
        %3146 = vset.pattern.permute.xlu0 0
        %3147 = vperm.xlu0 %3146, %v3017
        %v3148 = vpop.permute.xlu0 %3147
        %v3151 = vperm.slane %v3109, 0
        %v3153 = vsub.f32 %v3113, %v3151
        %v3154 = vsub.f32 %v3118, %v3151
        %v3155 = vsub.f32 %v3123, %v3151
        %v3156 = vsub.f32 %v3128, %v3151
        %v3157 = vsub.f32 %v3133, %v3151
        %v3158 = vsub.f32 %v3138, %v3151
        %v3159 = vsub.f32 %v3143, %v3151
        %v3160 = vsub.f32 %v3148, %v3151
        %v3162 = vperm.slane %v2993, 0
        %v3164 = vmul.f32 %v3162, %v3153
        %v3165 = vmul.f32 %v3162, %v3154
        %v3166 = vmul.f32 %v3162, %v3155
        %v3167 = vmul.f32 %v3162, %v3156
        %v3168 = vmul.f32 %v3162, %v3157
        %v3169 = vmul.f32 %v3162, %v3158
        %v3170 = vmul.f32 %v3162, %v3159
        %v3171 = vmul.f32 %v3162, %v3160
        %v3172 = vmul.f32 %v3164, 1.442695
        %v3173 = vpow.pop %v3172
        %v3174 = vmul.f32 %v3165, 1.442695
        %v3175 = vpow.pop %v3174
        %v3176 = vmul.f32 %v3166, 1.442695
        %v3177 = vpow.pop %v3176
        %v3178 = vmul.f32 %v3167, 1.442695
        %v3179 = vpow.pop %v3178
        %v3180 = vmul.f32 %v3168, 1.442695
        %v3181 = vpow.pop %v3180
        %v3182 = vmul.f32 %v3169, 1.442695
        %v3183 = vpow.pop %v3182
        %v3184 = vmul.f32 %v3170, 1.442695
        %v3185 = vpow.pop %v3184
        %v3186 = vmul.f32 %v3171, 1.442695
        %v3187 = vpow.pop %v3186
        %v3188 = vadd.f32 %v3173, %v3175
        %v3189 = vadd.f32 %v3188, %v3177
        %v3190 = vadd.f32 %v3189, %v3179
        %v3191 = vadd.f32 %v3190, %v3181
        %v3192 = vadd.f32 %v3191, %v3183
        %v3193 = vadd.f32 %v3192, %v3185
        %v3194 = vadd.f32 %v3193, %v3187
        %v3195 = vrot.slane %v3194, 4
        %v3196 = vadd.f32 %v3194, %v3195
        %v3197 = vrot.slane %v3196, 2
        %v3198 = vadd.f32 %v3196, %v3197
        %v3199 = vrot.slane %v3198, 1
        %v3200 = vadd.f32 %v3198, %v3199
        %v3201 = vadd.f32 %v3200, 0.0
        %3203 = vset.pattern.permute.xlu0 0
        %3204 = vperm.xlu0 %3203, %v2976
        %v3205 = vpop.permute.xlu0 %3204
        %3208 = vset.pattern.permute.xlu0 0
        %3209 = vperm.xlu0 %3208, %v2977
        %v3210 = vpop.permute.xlu0 %3209
        %3213 = vset.pattern.permute.xlu0 0
        %3214 = vperm.xlu0 %3213, %v2978
        %v3215 = vpop.permute.xlu0 %3214
        %3218 = vset.pattern.permute.xlu0 0
        %3219 = vperm.xlu0 %3218, %v2979
        %v3220 = vpop.permute.xlu0 %3219
        %3223 = vset.pattern.permute.xlu0 0
        %3224 = vperm.xlu0 %3223, %v2980
        %v3225 = vpop.permute.xlu0 %3224
        %3228 = vset.pattern.permute.xlu0 0
        %3229 = vperm.xlu0 %3228, %v2981
        %v3230 = vpop.permute.xlu0 %3229
        %3233 = vset.pattern.permute.xlu0 0
        %3234 = vperm.xlu0 %3233, %v2982
        %v3235 = vpop.permute.xlu0 %3234
        %3238 = vset.pattern.permute.xlu0 0
        %3239 = vperm.xlu0 %3238, %v2983
        %v3240 = vpop.permute.xlu0 %3239
        %v3242 = vmul.f32 %v3173, %v3205
        %v3243 = vmul.f32 %v3175, %v3210
        %v3244 = vmul.f32 %v3177, %v3215
        %v3245 = vmul.f32 %v3179, %v3220
        %v3246 = vmul.f32 %v3181, %v3225
        %v3247 = vmul.f32 %v3183, %v3230
        %v3248 = vmul.f32 %v3185, %v3235
        %v3249 = vmul.f32 %v3187, %v3240
        %v3250 = vadd.f32 %v3242, %v3243
        %v3251 = vadd.f32 %v3250, %v3244
        %v3252 = vadd.f32 %v3251, %v3245
        %v3253 = vadd.f32 %v3252, %v3246
        %v3254 = vadd.f32 %v3253, %v3247
        %v3255 = vadd.f32 %v3254, %v3248
        %v3256 = vadd.f32 %v3255, %v3249
        %v3257 = vrot.slane %v3256, 4
        %v3258 = vadd.f32 %v3256, %v3257
        %v3259 = vrot.slane %v3258, 2
        %v3260 = vadd.f32 %v3258, %v3259
        %v3261 = vrot.slane %v3260, 1
        %v3262 = vadd.f32 %v3260, %v3261
        %v3263 = vadd.f32 %v3262, 0.0
        %3265 = vset.pattern.permute.xlu0 0
        %3266 = vperm.xlu0 %3265, %v3018
        %v3267 = vpop.permute.xlu0 %3266
        %3270 = vset.pattern.permute.xlu0 0
        %3271 = vperm.xlu0 %3270, %v3019
        %v3272 = vpop.permute.xlu0 %3271
        %3275 = vset.pattern.permute.xlu0 0
        %3276 = vperm.xlu0 %3275, %v3020
        %v3277 = vpop.permute.xlu0 %3276
        %3280 = vset.pattern.permute.xlu0 0
        %3281 = vperm.xlu0 %3280, %v3021
        %v3282 = vpop.permute.xlu0 %3281
        %3285 = vset.pattern.permute.xlu0 0
        %3286 = vperm.xlu0 %3285, %v3022
        %v3287 = vpop.permute.xlu0 %3286
        %3290 = vset.pattern.permute.xlu0 0
        %3291 = vperm.xlu0 %3290, %v3023
        %v3292 = vpop.permute.xlu0 %3291
        %3295 = vset.pattern.permute.xlu0 0
        %3296 = vperm.xlu0 %3295, %v3024
        %v3297 = vpop.permute.xlu0 %3296
        %3300 = vset.pattern.permute.xlu0 0
        %3301 = vperm.xlu0 %3300, %v3025
        %v3302 = vpop.permute.xlu0 %3301
        %v3304 = vsub.f32 %v3267, %v3151
        %v3305 = vsub.f32 %v3272, %v3151
        %v3306 = vsub.f32 %v3277, %v3151
        %v3307 = vsub.f32 %v3282, %v3151
        %v3308 = vsub.f32 %v3287, %v3151
        %v3309 = vsub.f32 %v3292, %v3151
        %v3310 = vsub.f32 %v3297, %v3151
        %v3311 = vsub.f32 %v3302, %v3151
        %v3312 = vmul.f32 %v3162, %v3304
        %v3313 = vmul.f32 %v3162, %v3305
        %v3314 = vmul.f32 %v3162, %v3306
        %v3315 = vmul.f32 %v3162, %v3307
        %v3316 = vmul.f32 %v3162, %v3308
        %v3317 = vmul.f32 %v3162, %v3309
        %v3318 = vmul.f32 %v3162, %v3310
        %v3319 = vmul.f32 %v3162, %v3311
        %v3320 = vmul.f32 %v3312, 1.442695
        %v3321 = vpow.pop %v3320
        %v3322 = vmul.f32 %v3313, 1.442695
        %v3323 = vpow.pop %v3322
        %v3324 = vmul.f32 %v3314, 1.442695
        %v3325 = vpow.pop %v3324
        %v3326 = vmul.f32 %v3315, 1.442695
        %v3327 = vpow.pop %v3326
        %v3328 = vmul.f32 %v3316, 1.442695
        %v3329 = vpow.pop %v3328
        %v3330 = vmul.f32 %v3317, 1.442695
        %v3331 = vpow.pop %v3330
        %v3332 = vmul.f32 %v3318, 1.442695
        %v3333 = vpow.pop %v3332
        %v3334 = vmul.f32 %v3319, 1.442695
        %v3335 = vpow.pop %v3334
        %v3336 = vadd.f32 %v3321, %v3323
        %v3337 = vadd.f32 %v3336, %v3325
        %v3338 = vadd.f32 %v3337, %v3327
        %v3339 = vadd.f32 %v3338, %v3329
        %v3340 = vadd.f32 %v3339, %v3331
        %v3341 = vadd.f32 %v3340, %v3333
        %v3342 = vadd.f32 %v3341, %v3335
        %v3343 = vrot.slane %v3342, 4
        %v3344 = vadd.f32 %v3342, %v3343
        %v3345 = vrot.slane %v3344, 2
        %v3346 = vadd.f32 %v3344, %v3345
        %v3347 = vrot.slane %v3346, 1
        %v3348 = vadd.f32 %v3346, %v3347
        %v3349 = vadd.f32 %v3201, %v3348
        %3351 = vset.pattern.permute.xlu0 0
        %3352 = vperm.xlu0 %3351, %v2984
        %v3353 = vpop.permute.xlu0 %3352
        %3356 = vset.pattern.permute.xlu0 0
        %3357 = vperm.xlu0 %3356, %v2985
        %v3358 = vpop.permute.xlu0 %3357
        %3361 = vset.pattern.permute.xlu0 0
        %3362 = vperm.xlu0 %3361, %v2986
        %v3363 = vpop.permute.xlu0 %3362
        %3366 = vset.pattern.permute.xlu0 0
        %3367 = vperm.xlu0 %3366, %v2987
        %v3368 = vpop.permute.xlu0 %3367
        %3371 = vset.pattern.permute.xlu0 0
        %3372 = vperm.xlu0 %3371, %v2988
        %v3373 = vpop.permute.xlu0 %3372
        %3376 = vset.pattern.permute.xlu0 0
        %3377 = vperm.xlu0 %3376, %v2989
        %v3378 = vpop.permute.xlu0 %3377
        %3381 = vset.pattern.permute.xlu0 0
        %3382 = vperm.xlu0 %3381, %v2990
        %v3383 = vpop.permute.xlu0 %3382
        %3386 = vset.pattern.permute.xlu0 0
        %3387 = vperm.xlu0 %3386, %v2991
        %v3388 = vpop.permute.xlu0 %3387
        %v3390 = vmul.f32 %v3321, %v3353
        %v3391 = vmul.f32 %v3323, %v3358
        %v3392 = vmul.f32 %v3325, %v3363
        %v3393 = vmul.f32 %v3327, %v3368
        %v3394 = vmul.f32 %v3329, %v3373
        %v3395 = vmul.f32 %v3331, %v3378
        %v3396 = vmul.f32 %v3333, %v3383
        %v3397 = vmul.f32 %v3335, %v3388
        %v3398 = vadd.f32 %v3390, %v3391
        %v3399 = vadd.f32 %v3398, %v3392
        %v3400 = vadd.f32 %v3399, %v3393
        %v3401 = vadd.f32 %v3400, %v3394
        %v3402 = vadd.f32 %v3401, %v3395
        %v3403 = vadd.f32 %v3402, %v3396
        %v3404 = vadd.f32 %v3403, %v3397
        %v3405 = vrot.slane %v3404, 4
        %v3406 = vadd.f32 %v3404, %v3405
        %v3407 = vrot.slane %v3406, 2
        %v3408 = vadd.f32 %v3406, %v3407
        %v3409 = vrot.slane %v3408, 1
        %v3410 = vadd.f32 %v3408, %v3409
        %v3411 = vadd.f32 %v3263, %v3410
        %v3412 = vrcp.pop %v3349
        %v3413 = vmul.f32 %v3349, %v3412
        %v3414 = vsub.f32 2.0, %v3413
        %v3415 = vmul.f32 %v3412, %v3414
        %v3416 = vmul.f32 %v3411, %v3415
        %v3417 = vadd.f32 %v3416, %v2959
        %s3418 = scalar_lea.vmem %s176, 6 [#allocation7]
        %3419 = vst [vmem:[%s3418] sm:$0x1] %v3417
        %s3420 = scalar_lea.vmem %s154, 7 [#allocation6]
        %v3421 = vld [vmem:[%s3420] sm:$0x1]
        %3422 = vxpose.xlu0.b32.start [1/16] %v3421, 128
        %3423 = vxpose.xlu0.b32.cont [2/16] 0.0, 128
        %3424 = vxpose.xlu0.b32.cont [3/16] 0.0, 128
        %3425 = vxpose.xlu0.b32.cont [4/16] 0.0, 128
        %3426 = vxpose.xlu0.b32.cont [5/16] 0.0, 128
        %3427 = vxpose.xlu0.b32.cont [6/16] 0.0, 128
        %3428 = vxpose.xlu0.b32.cont [7/16] 0.0, 128
        %3429 = vxpose.xlu0.b32.cont [8/16] 0.0, 128
        %3430 = vxpose.xlu0.b32.cont [9/16] 0.0, 128
        %3431 = vxpose.xlu0.b32.cont [10/16] 0.0, 128
        %3432 = vxpose.xlu0.b32.cont [11/16] 0.0, 128
        %3433 = vxpose.xlu0.b32.cont [12/16] 0.0, 128
        %3434 = vxpose.xlu0.b32.cont [13/16] 0.0, 128
        %3435 = vxpose.xlu0.b32.cont [14/16] 0.0, 128
        %3436 = vxpose.xlu0.b32.cont [15/16] 0.0, 128
        %3437 = vxpose.xlu0.b32.end [16/16] 0.0, 128
        %v3438 = vpop.trf.xlu0
        %v3439 = vpop.trf.xlu0
        %v3440 = vpop.trf.xlu0
        %v3441 = vpop.trf.xlu0
        %v3442 = vpop.trf.xlu0
        %v3443 = vpop.trf.xlu0
        %v3444 = vpop.trf.xlu0
        %v3445 = vpop.trf.xlu0
        %v3446 = vpop.trf.xlu0
        %v3447 = vpop.trf.xlu0
        %v3448 = vpop.trf.xlu0
        %v3449 = vpop.trf.xlu0
        %v3450 = vpop.trf.xlu0
        %v3451 = vpop.trf.xlu0
        %v3452 = vpop.trf.xlu0
        %v3453 = vpop.trf.xlu0
        %v3454 = vmul.f32 %v216, %v3421
        %v3455 = vadd.f32 %v3454, %v218
        %v3456 = vmul.f32 %v220, %v3438
        %v3457 = vmul.f32 %v220, %v3439
        %v3458 = vmul.f32 %v220, %v3440
        %v3459 = vmul.f32 %v220, %v3441
        %v3460 = vmul.f32 %v220, %v3442
        %v3461 = vmul.f32 %v220, %v3443
        %v3462 = vmul.f32 %v220, %v3444
        %v3463 = vmul.f32 %v220, %v3445
        %v3464 = vmul.f32 %v220, %v3446
        %v3465 = vmul.f32 %v220, %v3447
        %v3466 = vmul.f32 %v220, %v3448
        %v3467 = vmul.f32 %v220, %v3449
        %v3468 = vmul.f32 %v220, %v3450
        %v3469 = vmul.f32 %v220, %v3451
        %v3470 = vmul.f32 %v220, %v3452
        %v3471 = vmul.f32 %v220, %v3453
        %v3472 = vadd.f32 %v3456, %v237
        %v3473 = vadd.f32 %v3457, %v237
        %v3474 = vadd.f32 %v3458, %v237
        %v3475 = vadd.f32 %v3459, %v237
        %v3476 = vadd.f32 %v3460, %v237
        %v3477 = vadd.f32 %v3461, %v237
        %v3478 = vadd.f32 %v3462, %v237
        %v3479 = vadd.f32 %v3463, %v237
        %v3480 = vadd.f32 %v3464, %v237
        %v3481 = vadd.f32 %v3465, %v237
        %v3482 = vadd.f32 %v3466, %v237
        %v3483 = vadd.f32 %v3467, %v237
        %v3484 = vadd.f32 %v3468, %v237
        %v3485 = vadd.f32 %v3469, %v237
        %v3486 = vadd.f32 %v3470, %v237
        %v3487 = vadd.f32 %v3471, %v237
        %v3488 = vsel %vm254, %v3472, -inf
        %v3489 = vsel %vm254, %v3473, -inf
        %v3490 = vsel %vm254, %v3474, -inf
        %v3491 = vsel %vm254, %v3475, -inf
        %v3492 = vsel %vm254, %v3476, -inf
        %v3493 = vmax.f32 %v3488, %v3492
        %v3494 = vsel %vm254, %v3477, -inf
        %v3495 = vmax.f32 %v3489, %v3494
        %v3496 = vsel %vm254, %v3478, -inf
        %v3497 = vmax.f32 %v3490, %v3496
        %v3498 = vsel %vm254, %v3479, -inf
        %v3499 = vmax.f32 %v3491, %v3498
        %v3500 = vsel %vm254, %v3480, -inf
        %v3501 = vmax.f32 %v3493, %v3500
        %v3502 = vsel %vm254, %v3481, -inf
        %v3503 = vmax.f32 %v3495, %v3502
        %v3504 = vsel %vm254, %v3482, -inf
        %v3505 = vmax.f32 %v3497, %v3504
        %v3506 = vsel %vm254, %v3483, -inf
        %v3507 = vmax.f32 %v3499, %v3506
        %v3508 = vsel %vm254, %v3484, -inf
        %v3509 = vmax.f32 %v3501, %v3508
        %v3510 = vsel %vm254, %v3485, -inf
        %v3511 = vmax.f32 %v3503, %v3510
        %v3512 = vsel %vm254, %v3486, -inf
        %v3513 = vmax.f32 %v3505, %v3512
        %v3514 = vsel %vm254, %v3487, -inf
        %v3515 = vmax.f32 %v3507, %v3514
        %v3516 = vmax.f32 %v3509, %v3511
        %v3517 = vmax.f32 %v3513, %v3515
        %v3518 = vmax.f32 %v3516, %v3517
        %3519 = vmax.xlane.f32.xlu0 %v3518
        %v3520 = vpop.xlane.xlu0 %3519
        %v3521 = vrot.slane %v3520, 4
        %v3522 = vmax.f32 %v3520, %v3521
        %v3523 = vrot.slane %v3522, 2
        %v3524 = vmax.f32 %v3522, %v3523
        %v3525 = vrot.slane %v3524, 1
        %v3526 = vmax.f32 %v3524, %v3525
        %s3527 = vtos %v3526
        %v3528 = vsel %vm254, %v3472, inf
        %v3529 = vsel %vm254, %v3473, inf
        %v3530 = vsel %vm254, %v3474, inf
        %v3531 = vsel %vm254, %v3475, inf
        %v3532 = vsel %vm254, %v3476, inf
        %v3533 = vmin.f32 %v3528, %v3532
        %v3534 = vsel %vm254, %v3477, inf
        %v3535 = vmin.f32 %v3529, %v3534
        %v3536 = vsel %vm254, %v3478, inf
        %v3537 = vmin.f32 %v3530, %v3536
        %v3538 = vsel %vm254, %v3479, inf
        %v3539 = vmin.f32 %v3531, %v3538
        %v3540 = vsel %vm254, %v3480, inf
        %v3541 = vmin.f32 %v3533, %v3540
        %v3542 = vsel %vm254, %v3481, inf
        %v3543 = vmin.f32 %v3535, %v3542
        %v3544 = vsel %vm254, %v3482, inf
        %v3545 = vmin.f32 %v3537, %v3544
        %v3546 = vsel %vm254, %v3483, inf
        %v3547 = vmin.f32 %v3539, %v3546
        %v3548 = vsel %vm254, %v3484, inf
        %v3549 = vmin.f32 %v3541, %v3548
        %v3550 = vsel %vm254, %v3485, inf
        %v3551 = vmin.f32 %v3543, %v3550
        %v3552 = vsel %vm254, %v3486, inf
        %v3553 = vmin.f32 %v3545, %v3552
        %v3554 = vsel %vm254, %v3487, inf
        %v3555 = vmin.f32 %v3547, %v3554
        %v3556 = vmin.f32 %v3549, %v3551
        %v3557 = vmin.f32 %v3553, %v3555
        %v3558 = vmin.f32 %v3556, %v3557
        %3559 = vmin.xlane.f32.xlu0 %v3558
        %v3560 = vpop.xlane.xlu0 %3559
        %v3561 = vrot.slane %v3560, 4
        %v3562 = vmin.f32 %v3560, %v3561
        %v3563 = vrot.slane %v3562, 2
        %v3564 = vmin.f32 %v3562, %v3563
        %v3565 = vrot.slane %v3564, 1
        %v3566 = vmin.f32 %v3564, %v3565
        %s3567 = vtos %v3566
        %vm3568 = vcmp.ge.f32.partialorder %v3455, 0.0
        %v3569 = vstv %s3527
        %v3570 = vstv %s3567
        %v3571 = vsel %vm3568, %v3569, %v3570
        %3573 = vset.pattern.permute.xlu0 0
        %3574 = vperm.xlu0 %3573, %v3472
        %v3575 = vpop.permute.xlu0 %3574
        %3578 = vset.pattern.permute.xlu0 0
        %3579 = vperm.xlu0 %3578, %v3473
        %v3580 = vpop.permute.xlu0 %3579
        %3583 = vset.pattern.permute.xlu0 0
        %3584 = vperm.xlu0 %3583, %v3474
        %v3585 = vpop.permute.xlu0 %3584
        %3588 = vset.pattern.permute.xlu0 0
        %3589 = vperm.xlu0 %3588, %v3475
        %v3590 = vpop.permute.xlu0 %3589
        %3593 = vset.pattern.permute.xlu0 0
        %3594 = vperm.xlu0 %3593, %v3476
        %v3595 = vpop.permute.xlu0 %3594
        %3598 = vset.pattern.permute.xlu0 0
        %3599 = vperm.xlu0 %3598, %v3477
        %v3600 = vpop.permute.xlu0 %3599
        %3603 = vset.pattern.permute.xlu0 0
        %3604 = vperm.xlu0 %3603, %v3478
        %v3605 = vpop.permute.xlu0 %3604
        %3608 = vset.pattern.permute.xlu0 0
        %3609 = vperm.xlu0 %3608, %v3479
        %v3610 = vpop.permute.xlu0 %3609
        %v3613 = vperm.slane %v3571, 0
        %v3615 = vsub.f32 %v3575, %v3613
        %v3616 = vsub.f32 %v3580, %v3613
        %v3617 = vsub.f32 %v3585, %v3613
        %v3618 = vsub.f32 %v3590, %v3613
        %v3619 = vsub.f32 %v3595, %v3613
        %v3620 = vsub.f32 %v3600, %v3613
        %v3621 = vsub.f32 %v3605, %v3613
        %v3622 = vsub.f32 %v3610, %v3613
        %v3624 = vperm.slane %v3455, 0
        %v3626 = vmul.f32 %v3624, %v3615
        %v3627 = vmul.f32 %v3624, %v3616
        %v3628 = vmul.f32 %v3624, %v3617
        %v3629 = vmul.f32 %v3624, %v3618
        %v3630 = vmul.f32 %v3624, %v3619
        %v3631 = vmul.f32 %v3624, %v3620
        %v3632 = vmul.f32 %v3624, %v3621
        %v3633 = vmul.f32 %v3624, %v3622
        %v3634 = vmul.f32 %v3626, 1.442695
        %v3635 = vpow.pop %v3634
        %v3636 = vmul.f32 %v3627, 1.442695
        %v3637 = vpow.pop %v3636
        %v3638 = vmul.f32 %v3628, 1.442695
        %v3639 = vpow.pop %v3638
        %v3640 = vmul.f32 %v3629, 1.442695
        %v3641 = vpow.pop %v3640
        %v3642 = vmul.f32 %v3630, 1.442695
        %v3643 = vpow.pop %v3642
        %v3644 = vmul.f32 %v3631, 1.442695
        %v3645 = vpow.pop %v3644
        %v3646 = vmul.f32 %v3632, 1.442695
        %v3647 = vpow.pop %v3646
        %v3648 = vmul.f32 %v3633, 1.442695
        %v3649 = vpow.pop %v3648
        %v3650 = vadd.f32 %v3635, %v3637
        %v3651 = vadd.f32 %v3650, %v3639
        %v3652 = vadd.f32 %v3651, %v3641
        %v3653 = vadd.f32 %v3652, %v3643
        %v3654 = vadd.f32 %v3653, %v3645
        %v3655 = vadd.f32 %v3654, %v3647
        %v3656 = vadd.f32 %v3655, %v3649
        %v3657 = vrot.slane %v3656, 4
        %v3658 = vadd.f32 %v3656, %v3657
        %v3659 = vrot.slane %v3658, 2
        %v3660 = vadd.f32 %v3658, %v3659
        %v3661 = vrot.slane %v3660, 1
        %v3662 = vadd.f32 %v3660, %v3661
        %v3663 = vadd.f32 %v3662, 0.0
        %3665 = vset.pattern.permute.xlu0 0
        %3666 = vperm.xlu0 %3665, %v3438
        %v3667 = vpop.permute.xlu0 %3666
        %3670 = vset.pattern.permute.xlu0 0
        %3671 = vperm.xlu0 %3670, %v3439
        %v3672 = vpop.permute.xlu0 %3671
        %3675 = vset.pattern.permute.xlu0 0
        %3676 = vperm.xlu0 %3675, %v3440
        %v3677 = vpop.permute.xlu0 %3676
        %3680 = vset.pattern.permute.xlu0 0
        %3681 = vperm.xlu0 %3680, %v3441
        %v3682 = vpop.permute.xlu0 %3681
        %3685 = vset.pattern.permute.xlu0 0
        %3686 = vperm.xlu0 %3685, %v3442
        %v3687 = vpop.permute.xlu0 %3686
        %3690 = vset.pattern.permute.xlu0 0
        %3691 = vperm.xlu0 %3690, %v3443
        %v3692 = vpop.permute.xlu0 %3691
        %3695 = vset.pattern.permute.xlu0 0
        %3696 = vperm.xlu0 %3695, %v3444
        %v3697 = vpop.permute.xlu0 %3696
        %3700 = vset.pattern.permute.xlu0 0
        %3701 = vperm.xlu0 %3700, %v3445
        %v3702 = vpop.permute.xlu0 %3701
        %v3704 = vmul.f32 %v3635, %v3667
        %v3705 = vmul.f32 %v3637, %v3672
        %v3706 = vmul.f32 %v3639, %v3677
        %v3707 = vmul.f32 %v3641, %v3682
        %v3708 = vmul.f32 %v3643, %v3687
        %v3709 = vmul.f32 %v3645, %v3692
        %v3710 = vmul.f32 %v3647, %v3697
        %v3711 = vmul.f32 %v3649, %v3702
        %v3712 = vadd.f32 %v3704, %v3705
        %v3713 = vadd.f32 %v3712, %v3706
        %v3714 = vadd.f32 %v3713, %v3707
        %v3715 = vadd.f32 %v3714, %v3708
        %v3716 = vadd.f32 %v3715, %v3709
        %v3717 = vadd.f32 %v3716, %v3710
        %v3718 = vadd.f32 %v3717, %v3711
        %v3719 = vrot.slane %v3718, 4
        %v3720 = vadd.f32 %v3718, %v3719
        %v3721 = vrot.slane %v3720, 2
        %v3722 = vadd.f32 %v3720, %v3721
        %v3723 = vrot.slane %v3722, 1
        %v3724 = vadd.f32 %v3722, %v3723
        %v3725 = vadd.f32 %v3724, 0.0
        %3727 = vset.pattern.permute.xlu0 0
        %3728 = vperm.xlu0 %3727, %v3480
        %v3729 = vpop.permute.xlu0 %3728
        %3732 = vset.pattern.permute.xlu0 0
        %3733 = vperm.xlu0 %3732, %v3481
        %v3734 = vpop.permute.xlu0 %3733
        %3737 = vset.pattern.permute.xlu0 0
        %3738 = vperm.xlu0 %3737, %v3482
        %v3739 = vpop.permute.xlu0 %3738
        %3742 = vset.pattern.permute.xlu0 0
        %3743 = vperm.xlu0 %3742, %v3483
        %v3744 = vpop.permute.xlu0 %3743
        %3747 = vset.pattern.permute.xlu0 0
        %3748 = vperm.xlu0 %3747, %v3484
        %v3749 = vpop.permute.xlu0 %3748
        %3752 = vset.pattern.permute.xlu0 0
        %3753 = vperm.xlu0 %3752, %v3485
        %v3754 = vpop.permute.xlu0 %3753
        %3757 = vset.pattern.permute.xlu0 0
        %3758 = vperm.xlu0 %3757, %v3486
        %v3759 = vpop.permute.xlu0 %3758
        %3762 = vset.pattern.permute.xlu0 0
        %3763 = vperm.xlu0 %3762, %v3487
        %v3764 = vpop.permute.xlu0 %3763
        %v3766 = vsub.f32 %v3729, %v3613
        %v3767 = vsub.f32 %v3734, %v3613
        %v3768 = vsub.f32 %v3739, %v3613
        %v3769 = vsub.f32 %v3744, %v3613
        %v3770 = vsub.f32 %v3749, %v3613
        %v3771 = vsub.f32 %v3754, %v3613
        %v3772 = vsub.f32 %v3759, %v3613
        %v3773 = vsub.f32 %v3764, %v3613
        %v3774 = vmul.f32 %v3624, %v3766
        %v3775 = vmul.f32 %v3624, %v3767
        %v3776 = vmul.f32 %v3624, %v3768
        %v3777 = vmul.f32 %v3624, %v3769
        %v3778 = vmul.f32 %v3624, %v3770
        %v3779 = vmul.f32 %v3624, %v3771
        %v3780 = vmul.f32 %v3624, %v3772
        %v3781 = vmul.f32 %v3624, %v3773
        %v3782 = vmul.f32 %v3774, 1.442695
        %v3783 = vpow.pop %v3782
        %v3784 = vmul.f32 %v3775, 1.442695
        %v3785 = vpow.pop %v3784
        %v3786 = vmul.f32 %v3776, 1.442695
        %v3787 = vpow.pop %v3786
        %v3788 = vmul.f32 %v3777, 1.442695
        %v3789 = vpow.pop %v3788
        %v3790 = vmul.f32 %v3778, 1.442695
        %v3791 = vpow.pop %v3790
        %v3792 = vmul.f32 %v3779, 1.442695
        %v3793 = vpow.pop %v3792
        %v3794 = vmul.f32 %v3780, 1.442695
        %v3795 = vpow.pop %v3794
        %v3796 = vmul.f32 %v3781, 1.442695
        %v3797 = vpow.pop %v3796
        %v3798 = vadd.f32 %v3783, %v3785
        %v3799 = vadd.f32 %v3798, %v3787
        %v3800 = vadd.f32 %v3799, %v3789
        %v3801 = vadd.f32 %v3800, %v3791
        %v3802 = vadd.f32 %v3801, %v3793
        %v3803 = vadd.f32 %v3802, %v3795
        %v3804 = vadd.f32 %v3803, %v3797
        %v3805 = vrot.slane %v3804, 4
        %v3806 = vadd.f32 %v3804, %v3805
        %v3807 = vrot.slane %v3806, 2
        %v3808 = vadd.f32 %v3806, %v3807
        %v3809 = vrot.slane %v3808, 1
        %v3810 = vadd.f32 %v3808, %v3809
        %v3811 = vadd.f32 %v3663, %v3810
        %3813 = vset.pattern.permute.xlu0 0
        %3814 = vperm.xlu0 %3813, %v3446
        %v3815 = vpop.permute.xlu0 %3814
        %3818 = vset.pattern.permute.xlu0 0
        %3819 = vperm.xlu0 %3818, %v3447
        %v3820 = vpop.permute.xlu0 %3819
        %3823 = vset.pattern.permute.xlu0 0
        %3824 = vperm.xlu0 %3823, %v3448
        %v3825 = vpop.permute.xlu0 %3824
        %3828 = vset.pattern.permute.xlu0 0
        %3829 = vperm.xlu0 %3828, %v3449
        %v3830 = vpop.permute.xlu0 %3829
        %3833 = vset.pattern.permute.xlu0 0
        %3834 = vperm.xlu0 %3833, %v3450
        %v3835 = vpop.permute.xlu0 %3834
        %3838 = vset.pattern.permute.xlu0 0
        %3839 = vperm.xlu0 %3838, %v3451
        %v3840 = vpop.permute.xlu0 %3839
        %3843 = vset.pattern.permute.xlu0 0
        %3844 = vperm.xlu0 %3843, %v3452
        %v3845 = vpop.permute.xlu0 %3844
        %3848 = vset.pattern.permute.xlu0 0
        %3849 = vperm.xlu0 %3848, %v3453
        %v3850 = vpop.permute.xlu0 %3849
        %v3852 = vmul.f32 %v3783, %v3815
        %v3853 = vmul.f32 %v3785, %v3820
        %v3854 = vmul.f32 %v3787, %v3825
        %v3855 = vmul.f32 %v3789, %v3830
        %v3856 = vmul.f32 %v3791, %v3835
        %v3857 = vmul.f32 %v3793, %v3840
        %v3858 = vmul.f32 %v3795, %v3845
        %v3859 = vmul.f32 %v3797, %v3850
        %v3860 = vadd.f32 %v3852, %v3853
        %v3861 = vadd.f32 %v3860, %v3854
        %v3862 = vadd.f32 %v3861, %v3855
        %v3863 = vadd.f32 %v3862, %v3856
        %v3864 = vadd.f32 %v3863, %v3857
        %v3865 = vadd.f32 %v3864, %v3858
        %v3866 = vadd.f32 %v3865, %v3859
        %v3867 = vrot.slane %v3866, 4
        %v3868 = vadd.f32 %v3866, %v3867
        %v3869 = vrot.slane %v3868, 2
        %v3870 = vadd.f32 %v3868, %v3869
        %v3871 = vrot.slane %v3870, 1
        %v3872 = vadd.f32 %v3870, %v3871
        %v3873 = vadd.f32 %v3725, %v3872
        %v3874 = vrcp.pop %v3811
        %v3875 = vmul.f32 %v3811, %v3874
        %v3876 = vsub.f32 2.0, %v3875
        %v3877 = vmul.f32 %v3874, %v3876
        %v3878 = vmul.f32 %v3873, %v3877
        %v3879 = vadd.f32 %v3878, %v3421
        %s3880 = scalar_lea.vmem %s176, 7 [#allocation7]
        %3881 = vst [vmem:[%s3880] sm:$0x1] %v3879
        %s3882 = sand.u32 %s75, 1
        %s3883 = scalar_lea.sflag [#allocation4], %s3882
        %s3884 = sand.u32 %s75, 1
        %s3885 = smul.addr %s3884, 8
        %s3886 = scalar_lea.vmem [#allocation7], %s3885
        // Predicated region
        $region37: #{tpu_custom_call.1} parent=27 // pred_check
          %p3887 = pneg %p85
        $region38: #{tpu_custom_call.1} parent=27 // pred_check_branch
          %3889 = sbr.rel (%p3887) target = $region40
        $region39: #{tpu_custom_call.1} parent=27 // pred_region
          %s3890 = smul.u32 8, %s20
          %3892 = vsyncadd %s3883, 0
          %s3893 = scalar_lea.hbm %s2, %s3890
          %s3894 = sshll.u32 %s3886, 4
          %s3895 = int_to_ptr.vmem [resolvable:$true] %s3894
          %s3896 = sshll.u32 %s3893, 4
          %s3897 = int_to_ptr.hbm [resolvable:$true] %s3896
          %3902 = dma.vmem_to_hbm [thread:$0]  %s3895, 128, %s3897, %s3883, 16, 16, 1
        $region40: #{tpu_custom_call.1} parent=27 // pred_fallthru
          _
      $region28: #{tpu_custom_call.1} parent=5 // pred_fallthru
        _
      %p3903 = scmp.le.s32.totalorder 2, %s15
      // Predicated region
      $region41: #{tpu_custom_call.1} parent=5 // pred_check
        %p3904 = pneg %p3903
      $region42: #{tpu_custom_call.1} parent=5 // pred_check_branch
        %3906 = sbr.rel (%p3904) target = $region44
      $region43: #{tpu_custom_call.1} parent=5 // pred_region
        %s3907 = ssub.s32 %s15, 2
        // Predicated region
        $region45: #{tpu_custom_call.1} parent=43 // pred_check
          %p3908 = pneg %p91
        $region46: #{tpu_custom_call.1} parent=43 // pred_check_branch
          %3910 = sbr.rel (%p3908) target = $region48
        $region47: #{tpu_custom_call.1} parent=43 // pred_region
          %s3911 = sand.u32 %s76, 1
          %s3912 = scalar_lea.sflag [#allocation4], %s3911
          %s3913 = sand.u32 %s76, 1
          %s3914 = smul.addr %s3913, 8
          %s3915 = scalar_lea.vmem [#allocation7], %s3914
          %3917 = dma.done %s3912, 128
        $region48: #{tpu_custom_call.1} parent=43 // pred_fallthru
          _
      $region44: #{tpu_custom_call.1} parent=5 // pred_fallthru
        _
    $region6: #{tpu_custom_call.1} parent=1 // loop_footer
      %s19 = sadd.s32 1, %s15
    $region7: #{tpu_custom_call.1} parent=1 // loop_footer_branch
      %14 = sbr.rel target = $region3
    $region8: #{tpu_custom_call.1} parent=1 // loop_exit
      _
    %3918 = vsyncpa [#allocation3], 1
    %s3919 = scalar_lea.sflag [#allocation3], 1
    %3920 = vsyncpa %s3919, 1
    %3921 = vsyncpa [#allocation4], 1
    %s3922 = scalar_lea.sflag [#allocation4], 1
    %3923 = vsyncpa %s3922, 1
    %3924 = vsyncpa [#allocation5], 1
    %s3925 = scalar_lea.sflag [#allocation5], 1
    %3926 = vsyncpa %s3925, 1

</llo_original>
